<compile_context>
chip_gen: v7x
topology: tpu7x:2x2x1
jax: 0.10.0
libtpu: 0.0.40
codegen_flags: <defaults>
</compile_context>

<pallas_src>
import functools

import jax
import jax.numpy as jnp
from jax.experimental import pallas as pl
from jax.experimental.pallas import tpu as pltpu

LEAKY_SLOPE = 0.01   # nn.LeakyReLU() default
EPS = 1e-5           # nn.InstanceNorm3d default eps


def _post_pipeline(y, x_res, w1, b1, w2, b2):
    """InstanceNorm -> pwconv1 (x4, groups=dim) -> LeakyReLU -> pwconv2 -> + residual.

    y, x_res: (c, L) lane-dense slabs; w1, b1, w2: (c, 4); b2: (c, 1).
    Fully channel-vectorized (no per-channel Python loop).
    """
    mean = jnp.mean(y, axis=1, keepdims=True)                  # (c, 1)
    yc = y - mean
    var = jnp.mean(yc * yc, axis=1, keepdims=True)             # biased var (PyTorch IN)
    yn = yc * jax.lax.rsqrt(var + EPS)

    acc = jnp.zeros_like(y)
    for j in range(4):                                         # 4-wide group expansion
        t = w1[:, j:j + 1] * yn + b1[:, j:j + 1]               # pwconv1 (groups=dim)
        t = jnp.where(t >= 0.0, t, LEAKY_SLOPE * t)            # LeakyReLU
        acc = acc + w2[:, j:j + 1] * t                         # pwconv2 (groups=dim)
    # TODO(synk): DropPath training-mode stochastic depth omitted (identity at eval).
    return x_res + acc + b2


def _pconv_block_kernel(cols_ref, xf_ref, w3_ref, w1_ref, b1_ref, w2_ref, b2_ref,
                        o_ref, *, C, C1):
    x_all = xf_ref[...]                       # (C, L) original input (residual path)
    w1 = w1_ref[...]                          # (C, 4)
    b1 = b1_ref[...]                          # (C, 4)
    w2 = w2_ref[...]                          # (C, 4)
    b2 = b2_ref[...]                          # (C, 1)
    L = x_all.shape[1]

    # ---- Partial_conv3: 3x3x3 conv (stride 1, pad 1, no bias) on the first C1
    # channels, accumulated per-tap on lane-dense (C1, L) slabs.
    conv = jnp.zeros((C1, L), jnp.float32)
    for tap in range(27):
        col = cols_ref[tap]                   # (C1_in, L) shifted, zero-padded window
        wt = w3_ref[tap]                      # (C1_out, C1_in)
        for ic in range(C1):
            conv = conv + wt[:, ic:ic + 1] * col[ic:ic + 1, :]

    # ---- First C1 channels use the conv result; the rest pass through untouched
    # (split/cat of Partial_conv3). Both slabs share the same channel-vectorized
    # post-pipeline; stores are lane-dense along L.
    o_ref[pl.ds(0, C1), :] = _post_pipeline(
        conv, x_all[:C1], w1[:C1], b1[:C1], w2[:C1], b2[:C1])
    o_ref[pl.ds(C1, C - C1), :] = _post_pipeline(
        x_all[C1:], x_all[C1:], w1[C1:], b1[C1:], w2[C1:], b2[C1:])


def pconv_block_forward(x, w3, w1, b1, w2, b2):
    N, C, D, H, W = x.shape
    C1 = C // 4           # n_div = 4
    L = D * H * W         # 512 here -> multiple of 128 (lane-dense)

    x = x.astype(jnp.float32)
    x_flat = x.reshape(N, C, L)

    # 27 shifted & zero-padded "tap columns" of the conv channels, built once in XLA:
    # cols[n, tap, ic, d*H*W + h*W + w] = x_padded[n, ic, d + kd, h + kh, w + kw].
    xp = jnp.pad(x[:, :C1], ((0, 0), (0, 0), (1, 1), (1, 1), (1, 1)))
    cols = jnp.stack(
        [xp[:, :, kd:kd + D, kh:kh + H, kw:kw + W].reshape(N, C1, L)
         for kd in range(3) for kh in range(3) for kw in range(3)],
        axis=1)                                                  # (N, 27, C1, L)

    w3_t = w3.reshape(C1, C1, 27).transpose(2, 0, 1).astype(jnp.float32)  # (27, oc, ic)
    w1_t = w1.reshape(C, 4).astype(jnp.float32)
    b1_t = b1.reshape(C, 4).astype(jnp.float32)
    w2_t = w2.reshape(C, 4).astype(jnp.float32)
    b2_t = b2.reshape(C, 1).astype(jnp.float32)

    kernel = functools.partial(_pconv_block_kernel, C=C, C1=C1)

    flops = N * (2 * 27 * C1 * C1 * L + 24 * C * L)
    bytes_accessed = 4 * (2 * N * C * L + N * 27 * C1 * L
                          + 27 * C1 * C1 + 3 * C * 4 + C)

    out_flat = pl.pallas_call(
        kernel,
        out_shape=jax.ShapeDtypeStruct((N, C, L), jnp.float32),
        grid=(N,),
        in_specs=[
            pl.BlockSpec((None, 27, C1, L), lambda n: (n, 0, 0, 0)),   # tap columns
            pl.BlockSpec((None, C, L), lambda n: (n, 0, 0)),           # flat activations
            pl.BlockSpec((27, C1, C1), lambda n: (0, 0, 0)),           # conv weights
            pl.BlockSpec((C, 4), lambda n: (0, 0)),                    # pwconv1 weight
            pl.BlockSpec((C, 4), lambda n: (0, 0)),                    # pwconv1 bias
            pl.BlockSpec((C, 4), lambda n: (0, 0)),                    # pwconv2 weight
            pl.BlockSpec((C, 1), lambda n: (0, 0)),                    # pwconv2 bias
        ],
        out_specs=pl.BlockSpec((None, C, L), lambda n: (n, 0, 0)),
        compiler_params=pltpu.CompilerParams(
            dimension_semantics=("parallel",)),                        # v7x: 2 TCs
        cost_estimate=pl.CostEstimate(
            flops=flops, transcendentals=N * C, bytes_accessed=bytes_accessed),
    )(cols, x_flat, w3_t, w1_t, b1_t, w2_t, b2_t)

    return out_flat.reshape(N, C, D, H, W)


def _reference(x, w3, w1, b1, w2, b2):
    """Pure-JAX reference with identical arithmetic formulation."""
    N, C, D, H, W = x.shape
    C1 = C // 4
    xp = jnp.pad(x[:, :C1], ((0, 0), (0, 0), (1, 1), (1, 1), (1, 1)))
    conv = []
    for oc in range(C1):
        acc = jnp.zeros((N, D, H, W), jnp.float32)
        for ic in range(C1):
            for kd in range(3):
                for kh in range(3):
                    for kw in range(3):
                        acc = acc + w3[oc, ic, kd, kh, kw] * xp[:, ic, kd:kd + D,
                                                                kh:kh + H, kw:kw + W]
        conv.append(acc)
    y = jnp.concatenate([jnp.stack(conv, axis=1), x[:, C1:]], axis=1)
    mean = y.mean(axis=(2, 3, 4), keepdims=True)
    var = ((y - mean) ** 2).mean(axis=(2, 3, 4), keepdims=True)
    yn = (y - mean) * jax.lax.rsqrt(var + EPS)
    w1r = w1.reshape(C, 4)
    b1r = b1.reshape(C, 4)
    w2r = w2.reshape(C, 4)
    z = (w1r[None, :, :, None, None, None] * yn[:, :, None]
         + b1r[None, :, :, None, None, None])
    z = jnp.where(z >= 0.0, z, LEAKY_SLOPE * z)
    out = (w2r[None, :, :, None, None, None] * z).sum(axis=2) \
        + b2[None, :, None, None, None]
    return x + out


if __name__ == "__main__":
    key = jax.random.PRNGKey(0)
    N, C, D, H, W = 2, 8, 8, 8, 8          # dim = 8 -> dim_conv3 = 2
    C1 = C // 4
    kx, k3, k1, kb1, k2, kb2 = jax.random.split(key, 6)

    x = jax.random.normal(kx, (N, C, D, H, W), jnp.float32)
    # Parameter shapes follow the module's __init__:
    #   partial_conv3.weight : (dim_conv3, dim_conv3, 3, 3, 3), no bias
    #   pwconv1.weight       : (4*dim, 1, 1, 1, 1)  (groups = dim)  -> flattened
    #   pwconv1.bias         : (4*dim,)
    #   pwconv2.weight       : (dim, 4, 1, 1, 1)    (groups = dim)
    #   pwconv2.bias         : (dim,)
    w3 = jax.random.normal(k3, (C1, C1, 3, 3, 3), jnp.float32) * 0.2
    w1 = jax.random.normal(k1, (4 * C,), jnp.float32) * 0.5
    b1 = jax.random.normal(kb1, (4 * C,), jnp.float32) * 0.1
    w2 = jax.random.normal(k2, (C, 4), jnp.float32) * 0.5
    b2 = jax.random.normal(kb2, (C,), jnp.float32) * 0.1

    out = jax.block_until_ready(pconv_block_forward(x, w3, w1, b1, w2, b2))

    ref = _reference(x, w3, w1, b1, w2, b2)
    assert out.shape == ref.shape == (N, C, D, H, W)
    max_err = float(jnp.max(jnp.abs(out - ref)))
    assert max_err < 1e-4, f"max abs err {max_err}"
    print("KERNEL_OK")
</pallas_src>

<mosaic_0001>
module attributes {stable_mosaic.version = 11 : i64} {
  func.func @_pconv_block_kernel(%arg0: i32, %arg1: memref<1x27x2x512xf32, #tpu.memory_space<vmem>>, %arg2: memref<1x8x512xf32, #tpu.memory_space<vmem>>, %arg3: memref<27x2x2xf32, #tpu.memory_space<vmem>>, %arg4: memref<8x4xf32, #tpu.memory_space<vmem>>, %arg5: memref<8x4xf32, #tpu.memory_space<vmem>>, %arg6: memref<8x4xf32, #tpu.memory_space<vmem>>, %arg7: memref<8x1xf32, #tpu.memory_space<vmem>>, %arg8: memref<1x8x512xf32, #tpu.memory_space<vmem>>) attributes {dimension_semantics = [#tpu.dimension_semantics<parallel>], iteration_bounds = array<i64: 2>, scalar_prefetch = 0 : i64, scratch_operands = 0 : i64, tpu.core_type = #tpu.core_type<tc>, window_params = [{transform_indices = @transform_0, window_bounds = array<i64: 1, 27, 2, 512>}, {transform_indices = @transform_1, window_bounds = array<i64: 1, 8, 512>}, {pipeline_mode = #tpu.pipeline_mode<synchronous>, transform_indices = @transform_2, window_bounds = array<i64: 27, 2, 2>}, {pipeline_mode = #tpu.pipeline_mode<synchronous>, transform_indices = @transform_3, window_bounds = array<i64: 8, 4>}, {pipeline_mode = #tpu.pipeline_mode<synchronous>, transform_indices = @transform_4, window_bounds = array<i64: 8, 4>}, {pipeline_mode = #tpu.pipeline_mode<synchronous>, transform_indices = @transform_5, window_bounds = array<i64: 8, 4>}, {pipeline_mode = #tpu.pipeline_mode<synchronous>, transform_indices = @transform_6, window_bounds = array<i64: 8, 1>}, {transform_indices = @transform_7, window_bounds = array<i64: 1, 8, 512>}]} {
    %c0 = arith.constant 0 : index
    %c0_0 = arith.constant 0 : index
    %c0_1 = arith.constant 0 : index
    %0 = vector.load %arg2[%c0, %c0_0, %c0_1] : memref<1x8x512xf32, #tpu.memory_space<vmem>>, vector<1x8x512xf32>
    %1 = vector.shape_cast %0 : vector<1x8x512xf32> to vector<8x512xf32>
    %c0_2 = arith.constant 0 : index
    %c0_3 = arith.constant 0 : index
    %2 = vector.load %arg4[%c0_2, %c0_3] : memref<8x4xf32, #tpu.memory_space<vmem>>, vector<8x4xf32>
    %c0_4 = arith.constant 0 : index
    %c0_5 = arith.constant 0 : index
    %3 = vector.load %arg5[%c0_4, %c0_5] : memref<8x4xf32, #tpu.memory_space<vmem>>, vector<8x4xf32>
    %c0_6 = arith.constant 0 : index
    %c0_7 = arith.constant 0 : index
    %4 = vector.load %arg6[%c0_6, %c0_7] : memref<8x4xf32, #tpu.memory_space<vmem>>, vector<8x4xf32>
    %c0_8 = arith.constant 0 : index
    %c0_9 = arith.constant 0 : index
    %5 = vector.load %arg7[%c0_8, %c0_9] : memref<8x1xf32, #tpu.memory_space<vmem>>, vector<8x1xf32>
    %cst = arith.constant 0.000000e+00 : f32
    %6 = vector.broadcast %cst : f32 to vector<2x512xf32>
    %c0_10 = arith.constant 0 : index
    %c0_11 = arith.constant 0 : index
    %c0_12 = arith.constant 0 : index
    %c0_13 = arith.constant 0 : index
    %7 = vector.load %arg1[%c0_10, %c0_11, %c0_12, %c0_13] : memref<1x27x2x512xf32, #tpu.memory_space<vmem>>, vector<1x1x2x512xf32>
    %8 = vector.shape_cast %7 : vector<1x1x2x512xf32> to vector<2x512xf32>
    %c0_14 = arith.constant 0 : index
    %c0_15 = arith.constant 0 : index
    %c0_16 = arith.constant 0 : index
    %9 = vector.load %arg3[%c0_14, %c0_15, %c0_16] : memref<27x2x2xf32, #tpu.memory_space<vmem>>, vector<1x2x2xf32>
    %10 = vector.shape_cast %9 : vector<1x2x2xf32> to vector<2x2xf32>
    %11 = vector.extract_strided_slice %10 {offsets = [0, 0], sizes = [2, 1], strides = [1, 1]} : vector<2x2xf32> to vector<2x1xf32>
    %12 = vector.extract_strided_slice %8 {offsets = [0, 0], sizes = [1, 512], strides = [1, 1]} : vector<2x512xf32> to vector<1x512xf32>
    %13 = vector.broadcast %11 : vector<2x1xf32> to vector<2x512xf32>
    %14 = vector.broadcast %12 : vector<1x512xf32> to vector<2x512xf32>
    %15 = arith.mulf %13, %14 : vector<2x512xf32>
    %16 = arith.addf %6, %15 : vector<2x512xf32>
    %17 = vector.extract_strided_slice %10 {offsets = [0, 1], sizes = [2, 1], strides = [1, 1]} : vector<2x2xf32> to vector<2x1xf32>
    %18 = vector.extract_strided_slice %8 {offsets = [1, 0], sizes = [1, 512], strides = [1, 1]} : vector<2x512xf32> to vector<1x512xf32>
    %19 = vector.broadcast %17 : vector<2x1xf32> to vector<2x512xf32>
    %20 = vector.broadcast %18 : vector<1x512xf32> to vector<2x512xf32>
    %21 = arith.mulf %19, %20 : vector<2x512xf32>
    %22 = arith.addf %16, %21 : vector<2x512xf32>
    %c0_17 = arith.constant 0 : index
    %c1 = arith.constant 1 : index
    %c0_18 = arith.constant 0 : index
    %c0_19 = arith.constant 0 : index
    %23 = vector.load %arg1[%c0_17, %c1, %c0_18, %c0_19] : memref<1x27x2x512xf32, #tpu.memory_space<vmem>>, vector<1x1x2x512xf32>
    %24 = vector.shape_cast %23 : vector<1x1x2x512xf32> to vector<2x512xf32>
    %c1_20 = arith.constant 1 : index
    %c0_21 = arith.constant 0 : index
    %c0_22 = arith.constant 0 : index
    %25 = vector.load %arg3[%c1_20, %c0_21, %c0_22] : memref<27x2x2xf32, #tpu.memory_space<vmem>>, vector<1x2x2xf32>
    %26 = vector.shape_cast %25 : vector<1x2x2xf32> to vector<2x2xf32>
    %27 = vector.extract_strided_slice %26 {offsets = [0, 0], sizes = [2, 1], strides = [1, 1]} : vector<2x2xf32> to vector<2x1xf32>
    %28 = vector.extract_strided_slice %24 {offsets = [0, 0], sizes = [1, 512], strides = [1, 1]} : vector<2x512xf32> to vector<1x512xf32>
    %29 = vector.broadcast %27 : vector<2x1xf32> to vector<2x512xf32>
    %30 = vector.broadcast %28 : vector<1x512xf32> to vector<2x512xf32>
    %31 = arith.mulf %29, %30 : vector<2x512xf32>
    %32 = arith.addf %22, %31 : vector<2x512xf32>
    %33 = vector.extract_strided_slice %26 {offsets = [0, 1], sizes = [2, 1], strides = [1, 1]} : vector<2x2xf32> to vector<2x1xf32>
    %34 = vector.extract_strided_slice %24 {offsets = [1, 0], sizes = [1, 512], strides = [1, 1]} : vector<2x512xf32> to vector<1x512xf32>
    %35 = vector.broadcast %33 : vector<2x1xf32> to vector<2x512xf32>
    %36 = vector.broadcast %34 : vector<1x512xf32> to vector<2x512xf32>
    %37 = arith.mulf %35, %36 : vector<2x512xf32>
    %38 = arith.addf %32, %37 : vector<2x512xf32>
    %c0_23 = arith.constant 0 : index
    %c2 = arith.constant 2 : index
    %c0_24 = arith.constant 0 : index
    %c0_25 = arith.constant 0 : index
    %39 = vector.load %arg1[%c0_23, %c2, %c0_24, %c0_25] : memref<1x27x2x512xf32, #tpu.memory_space<vmem>>, vector<1x1x2x512xf32>
    %40 = vector.shape_cast %39 : vector<1x1x2x512xf32> to vector<2x512xf32>
    %c2_26 = arith.constant 2 : index
    %c0_27 = arith.constant 0 : index
    %c0_28 = arith.constant 0 : index
    %41 = vector.load %arg3[%c2_26, %c0_27, %c0_28] : memref<27x2x2xf32, #tpu.memory_space<vmem>>, vector<1x2x2xf32>
    %42 = vector.shape_cast %41 : vector<1x2x2xf32> to vector<2x2xf32>
    %43 = vector.extract_strided_slice %42 {offsets = [0, 0], sizes = [2, 1], strides = [1, 1]} : vector<2x2xf32> to vector<2x1xf32>
    %44 = vector.extract_strided_slice %40 {offsets = [0, 0], sizes = [1, 512], strides = [1, 1]} : vector<2x512xf32> to vector<1x512xf32>
    %45 = vector.broadcast %43 : vector<2x1xf32> to vector<2x512xf32>
    %46 = vector.broadcast %44 : vector<1x512xf32> to vector<2x512xf32>
    %47 = arith.mulf %45, %46 : vector<2x512xf32>
    %48 = arith.addf %38, %47 : vector<2x512xf32>
    %49 = vector.extract_strided_slice %42 {offsets = [0, 1], sizes = [2, 1], strides = [1, 1]} : vector<2x2xf32> to vector<2x1xf32>
    %50 = vector.extract_strided_slice %40 {offsets = [1, 0], sizes = [1, 512], strides = [1, 1]} : vector<2x512xf32> to vector<1x512xf32>
    %51 = vector.broadcast %49 : vector<2x1xf32> to vector<2x512xf32>
    %52 = vector.broadcast %50 : vector<1x512xf32> to vector<2x512xf32>
    %53 = arith.mulf %51, %52 : vector<2x512xf32>
    %54 = arith.addf %48, %53 : vector<2x512xf32>
    %c0_29 = arith.constant 0 : index
    %c3 = arith.constant 3 : index
    %c0_30 = arith.constant 0 : index
    %c0_31 = arith.constant 0 : index
    %55 = vector.load %arg1[%c0_29, %c3, %c0_30, %c0_31] : memref<1x27x2x512xf32, #tpu.memory_space<vmem>>, vector<1x1x2x512xf32>
    %56 = vector.shape_cast %55 : vector<1x1x2x512xf32> to vector<2x512xf32>
    %c3_32 = arith.constant 3 : index
    %c0_33 = arith.constant 0 : index
    %c0_34 = arith.constant 0 : index
    %57 = vector.load %arg3[%c3_32, %c0_33, %c0_34] : memref<27x2x2xf32, #tpu.memory_space<vmem>>, vector<1x2x2xf32>
    %58 = vector.shape_cast %57 : vector<1x2x2xf32> to vector<2x2xf32>
    %59 = vector.extract_strided_slice %58 {offsets = [0, 0], sizes = [2, 1], strides = [1, 1]} : vector<2x2xf32> to vector<2x1xf32>
    %60 = vector.extract_strided_slice %56 {offsets = [0, 0], sizes = [1, 512], strides = [1, 1]} : vector<2x512xf32> to vector<1x512xf32>
    %61 = vector.broadcast %59 : vector<2x1xf32> to vector<2x512xf32>
    %62 = vector.broadcast %60 : vector<1x512xf32> to vector<2x512xf32>
    %63 = arith.mulf %61, %62 : vector<2x512xf32>
    %64 = arith.addf %54, %63 : vector<2x512xf32>
    %65 = vector.extract_strided_slice %58 {offsets = [0, 1], sizes = [2, 1], strides = [1, 1]} : vector<2x2xf32> to vector<2x1xf32>
    %66 = vector.extract_strided_slice %56 {offsets = [1, 0], sizes = [1, 512], strides = [1, 1]} : vector<2x512xf32> to vector<1x512xf32>
    %67 = vector.broadcast %65 : vector<2x1xf32> to vector<2x512xf32>
    %68 = vector.broadcast %66 : vector<1x512xf32> to vector<2x512xf32>
    %69 = arith.mulf %67, %68 : vector<2x512xf32>
    %70 = arith.addf %64, %69 : vector<2x512xf32>
    %c0_35 = arith.constant 0 : index
    %c4 = arith.constant 4 : index
    %c0_36 = arith.constant 0 : index
    %c0_37 = arith.constant 0 : index
    %71 = vector.load %arg1[%c0_35, %c4, %c0_36, %c0_37] : memref<1x27x2x512xf32, #tpu.memory_space<vmem>>, vector<1x1x2x512xf32>
    %72 = vector.shape_cast %71 : vector<1x1x2x512xf32> to vector<2x512xf32>
    %c4_38 = arith.constant 4 : index
    %c0_39 = arith.constant 0 : index
    %c0_40 = arith.constant 0 : index
    %73 = vector.load %arg3[%c4_38, %c0_39, %c0_40] : memref<27x2x2xf32, #tpu.memory_space<vmem>>, vector<1x2x2xf32>
    %74 = vector.shape_cast %73 : vector<1x2x2xf32> to vector<2x2xf32>
    %75 = vector.extract_strided_slice %74 {offsets = [0, 0], sizes = [2, 1], strides = [1, 1]} : vector<2x2xf32> to vector<2x1xf32>
    %76 = vector.extract_strided_slice %72 {offsets = [0, 0], sizes = [1, 512], strides = [1, 1]} : vector<2x512xf32> to vector<1x512xf32>
    %77 = vector.broadcast %75 : vector<2x1xf32> to vector<2x512xf32>
    %78 = vector.broadcast %76 : vector<1x512xf32> to vector<2x512xf32>
    %79 = arith.mulf %77, %78 : vector<2x512xf32>
    %80 = arith.addf %70, %79 : vector<2x512xf32>
    %81 = vector.extract_strided_slice %74 {offsets = [0, 1], sizes = [2, 1], strides = [1, 1]} : vector<2x2xf32> to vector<2x1xf32>
    %82 = vector.extract_strided_slice %72 {offsets = [1, 0], sizes = [1, 512], strides = [1, 1]} : vector<2x512xf32> to vector<1x512xf32>
    %83 = vector.broadcast %81 : vector<2x1xf32> to vector<2x512xf32>
    %84 = vector.broadcast %82 : vector<1x512xf32> to vector<2x512xf32>
    %85 = arith.mulf %83, %84 : vector<2x512xf32>
    %86 = arith.addf %80, %85 : vector<2x512xf32>
    %c0_41 = arith.constant 0 : index
    %c5 = arith.constant 5 : index
    %c0_42 = arith.constant 0 : index
    %c0_43 = arith.constant 0 : index
    %87 = vector.load %arg1[%c0_41, %c5, %c0_42, %c0_43] : memref<1x27x2x512xf32, #tpu.memory_space<vmem>>, vector<1x1x2x512xf32>
    %88 = vector.shape_cast %87 : vector<1x1x2x512xf32> to vector<2x512xf32>
    %c5_44 = arith.constant 5 : index
    %c0_45 = arith.constant 0 : index
    %c0_46 = arith.constant 0 : index
    %89 = vector.load %arg3[%c5_44, %c0_45, %c0_46] : memref<27x2x2xf32, #tpu.memory_space<vmem>>, vector<1x2x2xf32>
    %90 = vector.shape_cast %89 : vector<1x2x2xf32> to vector<2x2xf32>
    %91 = vector.extract_strided_slice %90 {offsets = [0, 0], sizes = [2, 1], strides = [1, 1]} : vector<2x2xf32> to vector<2x1xf32>
    %92 = vector.extract_strided_slice %88 {offsets = [0, 0], sizes = [1, 512], strides = [1, 1]} : vector<2x512xf32> to vector<1x512xf32>
    %93 = vector.broadcast %91 : vector<2x1xf32> to vector<2x512xf32>
    %94 = vector.broadcast %92 : vector<1x512xf32> to vector<2x512xf32>
    %95 = arith.mulf %93, %94 : vector<2x512xf32>
    %96 = arith.addf %86, %95 : vector<2x512xf32>
    %97 = vector.extract_strided_slice %90 {offsets = [0, 1], sizes = [2, 1], strides = [1, 1]} : vector<2x2xf32> to vector<2x1xf32>
    %98 = vector.extract_strided_slice %88 {offsets = [1, 0], sizes = [1, 512], strides = [1, 1]} : vector<2x512xf32> to vector<1x512xf32>
    %99 = vector.broadcast %97 : vector<2x1xf32> to vector<2x512xf32>
    %100 = vector.broadcast %98 : vector<1x512xf32> to vector<2x512xf32>
    %101 = arith.mulf %99, %100 : vector<2x512xf32>
    %102 = arith.addf %96, %101 : vector<2x512xf32>
    %c0_47 = arith.constant 0 : index
    %c6 = arith.constant 6 : index
    %c0_48 = arith.constant 0 : index
    %c0_49 = arith.constant 0 : index
    %103 = vector.load %arg1[%c0_47, %c6, %c0_48, %c0_49] : memref<1x27x2x512xf32, #tpu.memory_space<vmem>>, vector<1x1x2x512xf32>
    %104 = vector.shape_cast %103 : vector<1x1x2x512xf32> to vector<2x512xf32>
    %c6_50 = arith.constant 6 : index
    %c0_51 = arith.constant 0 : index
    %c0_52 = arith.constant 0 : index
    %105 = vector.load %arg3[%c6_50, %c0_51, %c0_52] : memref<27x2x2xf32, #tpu.memory_space<vmem>>, vector<1x2x2xf32>
    %106 = vector.shape_cast %105 : vector<1x2x2xf32> to vector<2x2xf32>
    %107 = vector.extract_strided_slice %106 {offsets = [0, 0], sizes = [2, 1], strides = [1, 1]} : vector<2x2xf32> to vector<2x1xf32>
    %108 = vector.extract_strided_slice %104 {offsets = [0, 0], sizes = [1, 512], strides = [1, 1]} : vector<2x512xf32> to vector<1x512xf32>
    %109 = vector.broadcast %107 : vector<2x1xf32> to vector<2x512xf32>
    %110 = vector.broadcast %108 : vector<1x512xf32> to vector<2x512xf32>
    %111 = arith.mulf %109, %110 : vector<2x512xf32>
    %112 = arith.addf %102, %111 : vector<2x512xf32>
    %113 = vector.extract_strided_slice %106 {offsets = [0, 1], sizes = [2, 1], strides = [1, 1]} : vector<2x2xf32> to vector<2x1xf32>
    %114 = vector.extract_strided_slice %104 {offsets = [1, 0], sizes = [1, 512], strides = [1, 1]} : vector<2x512xf32> to vector<1x512xf32>
    %115 = vector.broadcast %113 : vector<2x1xf32> to vector<2x512xf32>
    %116 = vector.broadcast %114 : vector<1x512xf32> to vector<2x512xf32>
    %117 = arith.mulf %115, %116 : vector<2x512xf32>
    %118 = arith.addf %112, %117 : vector<2x512xf32>
    %c0_53 = arith.constant 0 : index
    %c7 = arith.constant 7 : index
    %c0_54 = arith.constant 0 : index
    %c0_55 = arith.constant 0 : index
    %119 = vector.load %arg1[%c0_53, %c7, %c0_54, %c0_55] : memref<1x27x2x512xf32, #tpu.memory_space<vmem>>, vector<1x1x2x512xf32>
    %120 = vector.shape_cast %119 : vector<1x1x2x512xf32> to vector<2x512xf32>
    %c7_56 = arith.constant 7 : index
    %c0_57 = arith.constant 0 : index
    %c0_58 = arith.constant 0 : index
    %121 = vector.load %arg3[%c7_56, %c0_57, %c0_58] : memref<27x2x2xf32, #tpu.memory_space<vmem>>, vector<1x2x2xf32>
    %122 = vector.shape_cast %121 : vector<1x2x2xf32> to vector<2x2xf32>
    %123 = vector.extract_strided_slice %122 {offsets = [0, 0], sizes = [2, 1], strides = [1, 1]} : vector<2x2xf32> to vector<2x1xf32>
    %124 = vector.extract_strided_slice %120 {offsets = [0, 0], sizes = [1, 512], strides = [1, 1]} : vector<2x512xf32> to vector<1x512xf32>
    %125 = vector.broadcast %123 : vector<2x1xf32> to vector<2x512xf32>
    %126 = vector.broadcast %124 : vector<1x512xf32> to vector<2x512xf32>
    %127 = arith.mulf %125, %126 : vector<2x512xf32>
    %128 = arith.addf %118, %127 : vector<2x512xf32>
    %129 = vector.extract_strided_slice %122 {offsets = [0, 1], sizes = [2, 1], strides = [1, 1]} : vector<2x2xf32> to vector<2x1xf32>
    %130 = vector.extract_strided_slice %120 {offsets = [1, 0], sizes = [1, 512], strides = [1, 1]} : vector<2x512xf32> to vector<1x512xf32>
    %131 = vector.broadcast %129 : vector<2x1xf32> to vector<2x512xf32>
    %132 = vector.broadcast %130 : vector<1x512xf32> to vector<2x512xf32>
    %133 = arith.mulf %131, %132 : vector<2x512xf32>
    %134 = arith.addf %128, %133 : vector<2x512xf32>
    %c0_59 = arith.constant 0 : index
    %c8 = arith.constant 8 : index
    %c0_60 = arith.constant 0 : index
    %c0_61 = arith.constant 0 : index
    %135 = vector.load %arg1[%c0_59, %c8, %c0_60, %c0_61] : memref<1x27x2x512xf32, #tpu.memory_space<vmem>>, vector<1x1x2x512xf32>
    %136 = vector.shape_cast %135 : vector<1x1x2x512xf32> to vector<2x512xf32>
    %c8_62 = arith.constant 8 : index
    %c0_63 = arith.constant 0 : index
    %c0_64 = arith.constant 0 : index
    %137 = vector.load %arg3[%c8_62, %c0_63, %c0_64] : memref<27x2x2xf32, #tpu.memory_space<vmem>>, vector<1x2x2xf32>
    %138 = vector.shape_cast %137 : vector<1x2x2xf32> to vector<2x2xf32>
    %139 = vector.extract_strided_slice %138 {offsets = [0, 0], sizes = [2, 1], strides = [1, 1]} : vector<2x2xf32> to vector<2x1xf32>
    %140 = vector.extract_strided_slice %136 {offsets = [0, 0], sizes = [1, 512], strides = [1, 1]} : vector<2x512xf32> to vector<1x512xf32>
    %141 = vector.broadcast %139 : vector<2x1xf32> to vector<2x512xf32>
    %142 = vector.broadcast %140 : vector<1x512xf32> to vector<2x512xf32>
    %143 = arith.mulf %141, %142 : vector<2x512xf32>
    %144 = arith.addf %134, %143 : vector<2x512xf32>
    %145 = vector.extract_strided_slice %138 {offsets = [0, 1], sizes = [2, 1], strides = [1, 1]} : vector<2x2xf32> to vector<2x1xf32>
    %146 = vector.extract_strided_slice %136 {offsets = [1, 0], sizes = [1, 512], strides = [1, 1]} : vector<2x512xf32> to vector<1x512xf32>
    %147 = vector.broadcast %145 : vector<2x1xf32> to vector<2x512xf32>
    %148 = vector.broadcast %146 : vector<1x512xf32> to vector<2x512xf32>
    %149 = arith.mulf %147, %148 : vector<2x512xf32>
    %150 = arith.addf %144, %149 : vector<2x512xf32>
    %c0_65 = arith.constant 0 : index
    %c9 = arith.constant 9 : index
    %c0_66 = arith.constant 0 : index
    %c0_67 = arith.constant 0 : index
    %151 = vector.load %arg1[%c0_65, %c9, %c0_66, %c0_67] : memref<1x27x2x512xf32, #tpu.memory_space<vmem>>, vector<1x1x2x512xf32>
    %152 = vector.shape_cast %151 : vector<1x1x2x512xf32> to vector<2x512xf32>
    %c9_68 = arith.constant 9 : index
    %c0_69 = arith.constant 0 : index
    %c0_70 = arith.constant 0 : index
    %153 = vector.load %arg3[%c9_68, %c0_69, %c0_70] : memref<27x2x2xf32, #tpu.memory_space<vmem>>, vector<1x2x2xf32>
    %154 = vector.shape_cast %153 : vector<1x2x2xf32> to vector<2x2xf32>
    %155 = vector.extract_strided_slice %154 {offsets = [0, 0], sizes = [2, 1], strides = [1, 1]} : vector<2x2xf32> to vector<2x1xf32>
    %156 = vector.extract_strided_slice %152 {offsets = [0, 0], sizes = [1, 512], strides = [1, 1]} : vector<2x512xf32> to vector<1x512xf32>
    %157 = vector.broadcast %155 : vector<2x1xf32> to vector<2x512xf32>
    %158 = vector.broadcast %156 : vector<1x512xf32> to vector<2x512xf32>
    %159 = arith.mulf %157, %158 : vector<2x512xf32>
    %160 = arith.addf %150, %159 : vector<2x512xf32>
    %161 = vector.extract_strided_slice %154 {offsets = [0, 1], sizes = [2, 1], strides = [1, 1]} : vector<2x2xf32> to vector<2x1xf32>
    %162 = vector.extract_strided_slice %152 {offsets = [1, 0], sizes = [1, 512], strides = [1, 1]} : vector<2x512xf32> to vector<1x512xf32>
    %163 = vector.broadcast %161 : vector<2x1xf32> to vector<2x512xf32>
    %164 = vector.broadcast %162 : vector<1x512xf32> to vector<2x512xf32>
    %165 = arith.mulf %163, %164 : vector<2x512xf32>
    %166 = arith.addf %160, %165 : vector<2x512xf32>
    %c0_71 = arith.constant 0 : index
    %c10 = arith.constant 10 : index
    %c0_72 = arith.constant 0 : index
    %c0_73 = arith.constant 0 : index
    %167 = vector.load %arg1[%c0_71, %c10, %c0_72, %c0_73] : memref<1x27x2x512xf32, #tpu.memory_space<vmem>>, vector<1x1x2x512xf32>
    %168 = vector.shape_cast %167 : vector<1x1x2x512xf32> to vector<2x512xf32>
    %c10_74 = arith.constant 10 : index
    %c0_75 = arith.constant 0 : index
    %c0_76 = arith.constant 0 : index
    %169 = vector.load %arg3[%c10_74, %c0_75, %c0_76] : memref<27x2x2xf32, #tpu.memory_space<vmem>>, vector<1x2x2xf32>
    %170 = vector.shape_cast %169 : vector<1x2x2xf32> to vector<2x2xf32>
    %171 = vector.extract_strided_slice %170 {offsets = [0, 0], sizes = [2, 1], strides = [1, 1]} : vector<2x2xf32> to vector<2x1xf32>
    %172 = vector.extract_strided_slice %168 {offsets = [0, 0], sizes = [1, 512], strides = [1, 1]} : vector<2x512xf32> to vector<1x512xf32>
    %173 = vector.broadcast %171 : vector<2x1xf32> to vector<2x512xf32>
    %174 = vector.broadcast %172 : vector<1x512xf32> to vector<2x512xf32>
    %175 = arith.mulf %173, %174 : vector<2x512xf32>
    %176 = arith.addf %166, %175 : vector<2x512xf32>
    %177 = vector.extract_strided_slice %170 {offsets = [0, 1], sizes = [2, 1], strides = [1, 1]} : vector<2x2xf32> to vector<2x1xf32>
    %178 = vector.extract_strided_slice %168 {offsets = [1, 0], sizes = [1, 512], strides = [1, 1]} : vector<2x512xf32> to vector<1x512xf32>
    %179 = vector.broadcast %177 : vector<2x1xf32> to vector<2x512xf32>
    %180 = vector.broadcast %178 : vector<1x512xf32> to vector<2x512xf32>
    %181 = arith.mulf %179, %180 : vector<2x512xf32>
    %182 = arith.addf %176, %181 : vector<2x512xf32>
    %c0_77 = arith.constant 0 : index
    %c11 = arith.constant 11 : index
    %c0_78 = arith.constant 0 : index
    %c0_79 = arith.constant 0 : index
    %183 = vector.load %arg1[%c0_77, %c11, %c0_78, %c0_79] : memref<1x27x2x512xf32, #tpu.memory_space<vmem>>, vector<1x1x2x512xf32>
    %184 = vector.shape_cast %183 : vector<1x1x2x512xf32> to vector<2x512xf32>
    %c11_80 = arith.constant 11 : index
    %c0_81 = arith.constant 0 : index
    %c0_82 = arith.constant 0 : index
    %185 = vector.load %arg3[%c11_80, %c0_81, %c0_82] : memref<27x2x2xf32, #tpu.memory_space<vmem>>, vector<1x2x2xf32>
    %186 = vector.shape_cast %185 : vector<1x2x2xf32> to vector<2x2xf32>
    %187 = vector.extract_strided_slice %186 {offsets = [0, 0], sizes = [2, 1], strides = [1, 1]} : vector<2x2xf32> to vector<2x1xf32>
    %188 = vector.extract_strided_slice %184 {offsets = [0, 0], sizes = [1, 512], strides = [1, 1]} : vector<2x512xf32> to vector<1x512xf32>
    %189 = vector.broadcast %187 : vector<2x1xf32> to vector<2x512xf32>
    %190 = vector.broadcast %188 : vector<1x512xf32> to vector<2x512xf32>
    %191 = arith.mulf %189, %190 : vector<2x512xf32>
    %192 = arith.addf %182, %191 : vector<2x512xf32>
    %193 = vector.extract_strided_slice %186 {offsets = [0, 1], sizes = [2, 1], strides = [1, 1]} : vector<2x2xf32> to vector<2x1xf32>
    %194 = vector.extract_strided_slice %184 {offsets = [1, 0], sizes = [1, 512], strides = [1, 1]} : vector<2x512xf32> to vector<1x512xf32>
    %195 = vector.broadcast %193 : vector<2x1xf32> to vector<2x512xf32>
    %196 = vector.broadcast %194 : vector<1x512xf32> to vector<2x512xf32>
    %197 = arith.mulf %195, %196 : vector<2x512xf32>
    %198 = arith.addf %192, %197 : vector<2x512xf32>
    %c0_83 = arith.constant 0 : index
    %c12 = arith.constant 12 : index
    %c0_84 = arith.constant 0 : index
    %c0_85 = arith.constant 0 : index
    %199 = vector.load %arg1[%c0_83, %c12, %c0_84, %c0_85] : memref<1x27x2x512xf32, #tpu.memory_space<vmem>>, vector<1x1x2x512xf32>
    %200 = vector.shape_cast %199 : vector<1x1x2x512xf32> to vector<2x512xf32>
    %c12_86 = arith.constant 12 : index
    %c0_87 = arith.constant 0 : index
    %c0_88 = arith.constant 0 : index
    %201 = vector.load %arg3[%c12_86, %c0_87, %c0_88] : memref<27x2x2xf32, #tpu.memory_space<vmem>>, vector<1x2x2xf32>
    %202 = vector.shape_cast %201 : vector<1x2x2xf32> to vector<2x2xf32>
    %203 = vector.extract_strided_slice %202 {offsets = [0, 0], sizes = [2, 1], strides = [1, 1]} : vector<2x2xf32> to vector<2x1xf32>
    %204 = vector.extract_strided_slice %200 {offsets = [0, 0], sizes = [1, 512], strides = [1, 1]} : vector<2x512xf32> to vector<1x512xf32>
    %205 = vector.broadcast %203 : vector<2x1xf32> to vector<2x512xf32>
    %206 = vector.broadcast %204 : vector<1x512xf32> to vector<2x512xf32>
    %207 = arith.mulf %205, %206 : vector<2x512xf32>
    %208 = arith.addf %198, %207 : vector<2x512xf32>
    %209 = vector.extract_strided_slice %202 {offsets = [0, 1], sizes = [2, 1], strides = [1, 1]} : vector<2x2xf32> to vector<2x1xf32>
    %210 = vector.extract_strided_slice %200 {offsets = [1, 0], sizes = [1, 512], strides = [1, 1]} : vector<2x512xf32> to vector<1x512xf32>
    %211 = vector.broadcast %209 : vector<2x1xf32> to vector<2x512xf32>
    %212 = vector.broadcast %210 : vector<1x512xf32> to vector<2x512xf32>
    %213 = arith.mulf %211, %212 : vector<2x512xf32>
    %214 = arith.addf %208, %213 : vector<2x512xf32>
    %c0_89 = arith.constant 0 : index
    %c13 = arith.constant 13 : index
    %c0_90 = arith.constant 0 : index
    %c0_91 = arith.constant 0 : index
    %215 = vector.load %arg1[%c0_89, %c13, %c0_90, %c0_91] : memref<1x27x2x512xf32, #tpu.memory_space<vmem>>, vector<1x1x2x512xf32>
    %216 = vector.shape_cast %215 : vector<1x1x2x512xf32> to vector<2x512xf32>
    %c13_92 = arith.constant 13 : index
    %c0_93 = arith.constant 0 : index
    %c0_94 = arith.constant 0 : index
    %217 = vector.load %arg3[%c13_92, %c0_93, %c0_94] : memref<27x2x2xf32, #tpu.memory_space<vmem>>, vector<1x2x2xf32>
    %218 = vector.shape_cast %217 : vector<1x2x2xf32> to vector<2x2xf32>
    %219 = vector.extract_strided_slice %218 {offsets = [0, 0], sizes = [2, 1], strides = [1, 1]} : vector<2x2xf32> to vector<2x1xf32>
    %220 = vector.extract_strided_slice %216 {offsets = [0, 0], sizes = [1, 512], strides = [1, 1]} : vector<2x512xf32> to vector<1x512xf32>
    %221 = vector.broadcast %219 : vector<2x1xf32> to vector<2x512xf32>
    %222 = vector.broadcast %220 : vector<1x512xf32> to vector<2x512xf32>
    %223 = arith.mulf %221, %222 : vector<2x512xf32>
    %224 = arith.addf %214, %223 : vector<2x512xf32>
    %225 = vector.extract_strided_slice %218 {offsets = [0, 1], sizes = [2, 1], strides = [1, 1]} : vector<2x2xf32> to vector<2x1xf32>
    %226 = vector.extract_strided_slice %216 {offsets = [1, 0], sizes = [1, 512], strides = [1, 1]} : vector<2x512xf32> to vector<1x512xf32>
    %227 = vector.broadcast %225 : vector<2x1xf32> to vector<2x512xf32>
    %228 = vector.broadcast %226 : vector<1x512xf32> to vector<2x512xf32>
    %229 = arith.mulf %227, %228 : vector<2x512xf32>
    %230 = arith.addf %224, %229 : vector<2x512xf32>
    %c0_95 = arith.constant 0 : index
    %c14 = arith.constant 14 : index
    %c0_96 = arith.constant 0 : index
    %c0_97 = arith.constant 0 : index
    %231 = vector.load %arg1[%c0_95, %c14, %c0_96, %c0_97] : memref<1x27x2x512xf32, #tpu.memory_space<vmem>>, vector<1x1x2x512xf32>
    %232 = vector.shape_cast %231 : vector<1x1x2x512xf32> to vector<2x512xf32>
    %c14_98 = arith.constant 14 : index
    %c0_99 = arith.constant 0 : index
    %c0_100 = arith.constant 0 : index
    %233 = vector.load %arg3[%c14_98, %c0_99, %c0_100] : memref<27x2x2xf32, #tpu.memory_space<vmem>>, vector<1x2x2xf32>
    %234 = vector.shape_cast %233 : vector<1x2x2xf32> to vector<2x2xf32>
    %235 = vector.extract_strided_slice %234 {offsets = [0, 0], sizes = [2, 1], strides = [1, 1]} : vector<2x2xf32> to vector<2x1xf32>
    %236 = vector.extract_strided_slice %232 {offsets = [0, 0], sizes = [1, 512], strides = [1, 1]} : vector<2x512xf32> to vector<1x512xf32>
    %237 = vector.broadcast %235 : vector<2x1xf32> to vector<2x512xf32>
    %238 = vector.broadcast %236 : vector<1x512xf32> to vector<2x512xf32>
    %239 = arith.mulf %237, %238 : vector<2x512xf32>
    %240 = arith.addf %230, %239 : vector<2x512xf32>
    %241 = vector.extract_strided_slice %234 {offsets = [0, 1], sizes = [2, 1], strides = [1, 1]} : vector<2x2xf32> to vector<2x1xf32>
    %242 = vector.extract_strided_slice %232 {offsets = [1, 0], sizes = [1, 512], strides = [1, 1]} : vector<2x512xf32> to vector<1x512xf32>
    %243 = vector.broadcast %241 : vector<2x1xf32> to vector<2x512xf32>
    %244 = vector.broadcast %242 : vector<1x512xf32> to vector<2x512xf32>
    %245 = arith.mulf %243, %244 : vector<2x512xf32>
    %246 = arith.addf %240, %245 : vector<2x512xf32>
    %c0_101 = arith.constant 0 : index
    %c15 = arith.constant 15 : index
    %c0_102 = arith.constant 0 : index
    %c0_103 = arith.constant 0 : index
    %247 = vector.load %arg1[%c0_101, %c15, %c0_102, %c0_103] : memref<1x27x2x512xf32, #tpu.memory_space<vmem>>, vector<1x1x2x512xf32>
    %248 = vector.shape_cast %247 : vector<1x1x2x512xf32> to vector<2x512xf32>
    %c15_104 = arith.constant 15 : index
    %c0_105 = arith.constant 0 : index
    %c0_106 = arith.constant 0 : index
    %249 = vector.load %arg3[%c15_104, %c0_105, %c0_106] : memref<27x2x2xf32, #tpu.memory_space<vmem>>, vector<1x2x2xf32>
    %250 = vector.shape_cast %249 : vector<1x2x2xf32> to vector<2x2xf32>
    %251 = vector.extract_strided_slice %250 {offsets = [0, 0], sizes = [2, 1], strides = [1, 1]} : vector<2x2xf32> to vector<2x1xf32>
    %252 = vector.extract_strided_slice %248 {offsets = [0, 0], sizes = [1, 512], strides = [1, 1]} : vector<2x512xf32> to vector<1x512xf32>
    %253 = vector.broadcast %251 : vector<2x1xf32> to vector<2x512xf32>
    %254 = vector.broadcast %252 : vector<1x512xf32> to vector<2x512xf32>
    %255 = arith.mulf %253, %254 : vector<2x512xf32>
    %256 = arith.addf %246, %255 : vector<2x512xf32>
    %257 = vector.extract_strided_slice %250 {offsets = [0, 1], sizes = [2, 1], strides = [1, 1]} : vector<2x2xf32> to vector<2x1xf32>
    %258 = vector.extract_strided_slice %248 {offsets = [1, 0], sizes = [1, 512], strides = [1, 1]} : vector<2x512xf32> to vector<1x512xf32>
    %259 = vector.broadcast %257 : vector<2x1xf32> to vector<2x512xf32>
    %260 = vector.broadcast %258 : vector<1x512xf32> to vector<2x512xf32>
    %261 = arith.mulf %259, %260 : vector<2x512xf32>
    %262 = arith.addf %256, %261 : vector<2x512xf32>
    %c0_107 = arith.constant 0 : index
    %c16 = arith.constant 16 : index
    %c0_108 = arith.constant 0 : index
    %c0_109 = arith.constant 0 : index
    %263 = vector.load %arg1[%c0_107, %c16, %c0_108, %c0_109] : memref<1x27x2x512xf32, #tpu.memory_space<vmem>>, vector<1x1x2x512xf32>
    %264 = vector.shape_cast %263 : vector<1x1x2x512xf32> to vector<2x512xf32>
    %c16_110 = arith.constant 16 : index
    %c0_111 = arith.constant 0 : index
    %c0_112 = arith.constant 0 : index
    %265 = vector.load %arg3[%c16_110, %c0_111, %c0_112] : memref<27x2x2xf32, #tpu.memory_space<vmem>>, vector<1x2x2xf32>
    %266 = vector.shape_cast %265 : vector<1x2x2xf32> to vector<2x2xf32>
    %267 = vector.extract_strided_slice %266 {offsets = [0, 0], sizes = [2, 1], strides = [1, 1]} : vector<2x2xf32> to vector<2x1xf32>
    %268 = vector.extract_strided_slice %264 {offsets = [0, 0], sizes = [1, 512], strides = [1, 1]} : vector<2x512xf32> to vector<1x512xf32>
    %269 = vector.broadcast %267 : vector<2x1xf32> to vector<2x512xf32>
    %270 = vector.broadcast %268 : vector<1x512xf32> to vector<2x512xf32>
    %271 = arith.mulf %269, %270 : vector<2x512xf32>
    %272 = arith.addf %262, %271 : vector<2x512xf32>
    %273 = vector.extract_strided_slice %266 {offsets = [0, 1], sizes = [2, 1], strides = [1, 1]} : vector<2x2xf32> to vector<2x1xf32>
    %274 = vector.extract_strided_slice %264 {offsets = [1, 0], sizes = [1, 512], strides = [1, 1]} : vector<2x512xf32> to vector<1x512xf32>
    %275 = vector.broadcast %273 : vector<2x1xf32> to vector<2x512xf32>
    %276 = vector.broadcast %274 : vector<1x512xf32> to vector<2x512xf32>
    %277 = arith.mulf %275, %276 : vector<2x512xf32>
    %278 = arith.addf %272, %277 : vector<2x512xf32>
    %c0_113 = arith.constant 0 : index
    %c17 = arith.constant 17 : index
    %c0_114 = arith.constant 0 : index
    %c0_115 = arith.constant 0 : index
    %279 = vector.load %arg1[%c0_113, %c17, %c0_114, %c0_115] : memref<1x27x2x512xf32, #tpu.memory_space<vmem>>, vector<1x1x2x512xf32>
    %280 = vector.shape_cast %279 : vector<1x1x2x512xf32> to vector<2x512xf32>
    %c17_116 = arith.constant 17 : index
    %c0_117 = arith.constant 0 : index
    %c0_118 = arith.constant 0 : index
    %281 = vector.load %arg3[%c17_116, %c0_117, %c0_118] : memref<27x2x2xf32, #tpu.memory_space<vmem>>, vector<1x2x2xf32>
    %282 = vector.shape_cast %281 : vector<1x2x2xf32> to vector<2x2xf32>
    %283 = vector.extract_strided_slice %282 {offsets = [0, 0], sizes = [2, 1], strides = [1, 1]} : vector<2x2xf32> to vector<2x1xf32>
    %284 = vector.extract_strided_slice %280 {offsets = [0, 0], sizes = [1, 512], strides = [1, 1]} : vector<2x512xf32> to vector<1x512xf32>
    %285 = vector.broadcast %283 : vector<2x1xf32> to vector<2x512xf32>
    %286 = vector.broadcast %284 : vector<1x512xf32> to vector<2x512xf32>
    %287 = arith.mulf %285, %286 : vector<2x512xf32>
    %288 = arith.addf %278, %287 : vector<2x512xf32>
    %289 = vector.extract_strided_slice %282 {offsets = [0, 1], sizes = [2, 1], strides = [1, 1]} : vector<2x2xf32> to vector<2x1xf32>
    %290 = vector.extract_strided_slice %280 {offsets = [1, 0], sizes = [1, 512], strides = [1, 1]} : vector<2x512xf32> to vector<1x512xf32>
    %291 = vector.broadcast %289 : vector<2x1xf32> to vector<2x512xf32>
    %292 = vector.broadcast %290 : vector<1x512xf32> to vector<2x512xf32>
    %293 = arith.mulf %291, %292 : vector<2x512xf32>
    %294 = arith.addf %288, %293 : vector<2x512xf32>
    %c0_119 = arith.constant 0 : index
    %c18 = arith.constant 18 : index
    %c0_120 = arith.constant 0 : index
    %c0_121 = arith.constant 0 : index
    %295 = vector.load %arg1[%c0_119, %c18, %c0_120, %c0_121] : memref<1x27x2x512xf32, #tpu.memory_space<vmem>>, vector<1x1x2x512xf32>
    %296 = vector.shape_cast %295 : vector<1x1x2x512xf32> to vector<2x512xf32>
    %c18_122 = arith.constant 18 : index
    %c0_123 = arith.constant 0 : index
    %c0_124 = arith.constant 0 : index
    %297 = vector.load %arg3[%c18_122, %c0_123, %c0_124] : memref<27x2x2xf32, #tpu.memory_space<vmem>>, vector<1x2x2xf32>
    %298 = vector.shape_cast %297 : vector<1x2x2xf32> to vector<2x2xf32>
    %299 = vector.extract_strided_slice %298 {offsets = [0, 0], sizes = [2, 1], strides = [1, 1]} : vector<2x2xf32> to vector<2x1xf32>
    %300 = vector.extract_strided_slice %296 {offsets = [0, 0], sizes = [1, 512], strides = [1, 1]} : vector<2x512xf32> to vector<1x512xf32>
    %301 = vector.broadcast %299 : vector<2x1xf32> to vector<2x512xf32>
    %302 = vector.broadcast %300 : vector<1x512xf32> to vector<2x512xf32>
    %303 = arith.mulf %301, %302 : vector<2x512xf32>
    %304 = arith.addf %294, %303 : vector<2x512xf32>
    %305 = vector.extract_strided_slice %298 {offsets = [0, 1], sizes = [2, 1], strides = [1, 1]} : vector<2x2xf32> to vector<2x1xf32>
    %306 = vector.extract_strided_slice %296 {offsets = [1, 0], sizes = [1, 512], strides = [1, 1]} : vector<2x512xf32> to vector<1x512xf32>
    %307 = vector.broadcast %305 : vector<2x1xf32> to vector<2x512xf32>
    %308 = vector.broadcast %306 : vector<1x512xf32> to vector<2x512xf32>
    %309 = arith.mulf %307, %308 : vector<2x512xf32>
    %310 = arith.addf %304, %309 : vector<2x512xf32>
    %c0_125 = arith.constant 0 : index
    %c19 = arith.constant 19 : index
    %c0_126 = arith.constant 0 : index
    %c0_127 = arith.constant 0 : index
    %311 = vector.load %arg1[%c0_125, %c19, %c0_126, %c0_127] : memref<1x27x2x512xf32, #tpu.memory_space<vmem>>, vector<1x1x2x512xf32>
    %312 = vector.shape_cast %311 : vector<1x1x2x512xf32> to vector<2x512xf32>
    %c19_128 = arith.constant 19 : index
    %c0_129 = arith.constant 0 : index
    %c0_130 = arith.constant 0 : index
    %313 = vector.load %arg3[%c19_128, %c0_129, %c0_130] : memref<27x2x2xf32, #tpu.memory_space<vmem>>, vector<1x2x2xf32>
    %314 = vector.shape_cast %313 : vector<1x2x2xf32> to vector<2x2xf32>
    %315 = vector.extract_strided_slice %314 {offsets = [0, 0], sizes = [2, 1], strides = [1, 1]} : vector<2x2xf32> to vector<2x1xf32>
    %316 = vector.extract_strided_slice %312 {offsets = [0, 0], sizes = [1, 512], strides = [1, 1]} : vector<2x512xf32> to vector<1x512xf32>
    %317 = vector.broadcast %315 : vector<2x1xf32> to vector<2x512xf32>
    %318 = vector.broadcast %316 : vector<1x512xf32> to vector<2x512xf32>
    %319 = arith.mulf %317, %318 : vector<2x512xf32>
    %320 = arith.addf %310, %319 : vector<2x512xf32>
    %321 = vector.extract_strided_slice %314 {offsets = [0, 1], sizes = [2, 1], strides = [1, 1]} : vector<2x2xf32> to vector<2x1xf32>
    %322 = vector.extract_strided_slice %312 {offsets = [1, 0], sizes = [1, 512], strides = [1, 1]} : vector<2x512xf32> to vector<1x512xf32>
    %323 = vector.broadcast %321 : vector<2x1xf32> to vector<2x512xf32>
    %324 = vector.broadcast %322 : vector<1x512xf32> to vector<2x512xf32>
    %325 = arith.mulf %323, %324 : vector<2x512xf32>
    %326 = arith.addf %320, %325 : vector<2x512xf32>
    %c0_131 = arith.constant 0 : index
    %c20 = arith.constant 20 : index
    %c0_132 = arith.constant 0 : index
    %c0_133 = arith.constant 0 : index
    %327 = vector.load %arg1[%c0_131, %c20, %c0_132, %c0_133] : memref<1x27x2x512xf32, #tpu.memory_space<vmem>>, vector<1x1x2x512xf32>
    %328 = vector.shape_cast %327 : vector<1x1x2x512xf32> to vector<2x512xf32>
    %c20_134 = arith.constant 20 : index
    %c0_135 = arith.constant 0 : index
    %c0_136 = arith.constant 0 : index
    %329 = vector.load %arg3[%c20_134, %c0_135, %c0_136] : memref<27x2x2xf32, #tpu.memory_space<vmem>>, vector<1x2x2xf32>
    %330 = vector.shape_cast %329 : vector<1x2x2xf32> to vector<2x2xf32>
    %331 = vector.extract_strided_slice %330 {offsets = [0, 0], sizes = [2, 1], strides = [1, 1]} : vector<2x2xf32> to vector<2x1xf32>
    %332 = vector.extract_strided_slice %328 {offsets = [0, 0], sizes = [1, 512], strides = [1, 1]} : vector<2x512xf32> to vector<1x512xf32>
    %333 = vector.broadcast %331 : vector<2x1xf32> to vector<2x512xf32>
    %334 = vector.broadcast %332 : vector<1x512xf32> to vector<2x512xf32>
    %335 = arith.mulf %333, %334 : vector<2x512xf32>
    %336 = arith.addf %326, %335 : vector<2x512xf32>
    %337 = vector.extract_strided_slice %330 {offsets = [0, 1], sizes = [2, 1], strides = [1, 1]} : vector<2x2xf32> to vector<2x1xf32>
    %338 = vector.extract_strided_slice %328 {offsets = [1, 0], sizes = [1, 512], strides = [1, 1]} : vector<2x512xf32> to vector<1x512xf32>
    %339 = vector.broadcast %337 : vector<2x1xf32> to vector<2x512xf32>
    %340 = vector.broadcast %338 : vector<1x512xf32> to vector<2x512xf32>
    %341 = arith.mulf %339, %340 : vector<2x512xf32>
    %342 = arith.addf %336, %341 : vector<2x512xf32>
    %c0_137 = arith.constant 0 : index
    %c21 = arith.constant 21 : index
    %c0_138 = arith.constant 0 : index
    %c0_139 = arith.constant 0 : index
    %343 = vector.load %arg1[%c0_137, %c21, %c0_138, %c0_139] : memref<1x27x2x512xf32, #tpu.memory_space<vmem>>, vector<1x1x2x512xf32>
    %344 = vector.shape_cast %343 : vector<1x1x2x512xf32> to vector<2x512xf32>
    %c21_140 = arith.constant 21 : index
    %c0_141 = arith.constant 0 : index
    %c0_142 = arith.constant 0 : index
    %345 = vector.load %arg3[%c21_140, %c0_141, %c0_142] : memref<27x2x2xf32, #tpu.memory_space<vmem>>, vector<1x2x2xf32>
    %346 = vector.shape_cast %345 : vector<1x2x2xf32> to vector<2x2xf32>
    %347 = vector.extract_strided_slice %346 {offsets = [0, 0], sizes = [2, 1], strides = [1, 1]} : vector<2x2xf32> to vector<2x1xf32>
    %348 = vector.extract_strided_slice %344 {offsets = [0, 0], sizes = [1, 512], strides = [1, 1]} : vector<2x512xf32> to vector<1x512xf32>
    %349 = vector.broadcast %347 : vector<2x1xf32> to vector<2x512xf32>
    %350 = vector.broadcast %348 : vector<1x512xf32> to vector<2x512xf32>
    %351 = arith.mulf %349, %350 : vector<2x512xf32>
    %352 = arith.addf %342, %351 : vector<2x512xf32>
    %353 = vector.extract_strided_slice %346 {offsets = [0, 1], sizes = [2, 1], strides = [1, 1]} : vector<2x2xf32> to vector<2x1xf32>
    %354 = vector.extract_strided_slice %344 {offsets = [1, 0], sizes = [1, 512], strides = [1, 1]} : vector<2x512xf32> to vector<1x512xf32>
    %355 = vector.broadcast %353 : vector<2x1xf32> to vector<2x512xf32>
    %356 = vector.broadcast %354 : vector<1x512xf32> to vector<2x512xf32>
    %357 = arith.mulf %355, %356 : vector<2x512xf32>
    %358 = arith.addf %352, %357 : vector<2x512xf32>
    %c0_143 = arith.constant 0 : index
    %c22 = arith.constant 22 : index
    %c0_144 = arith.constant 0 : index
    %c0_145 = arith.constant 0 : index
    %359 = vector.load %arg1[%c0_143, %c22, %c0_144, %c0_145] : memref<1x27x2x512xf32, #tpu.memory_space<vmem>>, vector<1x1x2x512xf32>
    %360 = vector.shape_cast %359 : vector<1x1x2x512xf32> to vector<2x512xf32>
    %c22_146 = arith.constant 22 : index
    %c0_147 = arith.constant 0 : index
    %c0_148 = arith.constant 0 : index
    %361 = vector.load %arg3[%c22_146, %c0_147, %c0_148] : memref<27x2x2xf32, #tpu.memory_space<vmem>>, vector<1x2x2xf32>
    %362 = vector.shape_cast %361 : vector<1x2x2xf32> to vector<2x2xf32>
    %363 = vector.extract_strided_slice %362 {offsets = [0, 0], sizes = [2, 1], strides = [1, 1]} : vector<2x2xf32> to vector<2x1xf32>
    %364 = vector.extract_strided_slice %360 {offsets = [0, 0], sizes = [1, 512], strides = [1, 1]} : vector<2x512xf32> to vector<1x512xf32>
    %365 = vector.broadcast %363 : vector<2x1xf32> to vector<2x512xf32>
    %366 = vector.broadcast %364 : vector<1x512xf32> to vector<2x512xf32>
    %367 = arith.mulf %365, %366 : vector<2x512xf32>
    %368 = arith.addf %358, %367 : vector<2x512xf32>
    %369 = vector.extract_strided_slice %362 {offsets = [0, 1], sizes = [2, 1], strides = [1, 1]} : vector<2x2xf32> to vector<2x1xf32>
    %370 = vector.extract_strided_slice %360 {offsets = [1, 0], sizes = [1, 512], strides = [1, 1]} : vector<2x512xf32> to vector<1x512xf32>
    %371 = vector.broadcast %369 : vector<2x1xf32> to vector<2x512xf32>
    %372 = vector.broadcast %370 : vector<1x512xf32> to vector<2x512xf32>
    %373 = arith.mulf %371, %372 : vector<2x512xf32>
    %374 = arith.addf %368, %373 : vector<2x512xf32>
    %c0_149 = arith.constant 0 : index
    %c23 = arith.constant 23 : index
    %c0_150 = arith.constant 0 : index
    %c0_151 = arith.constant 0 : index
    %375 = vector.load %arg1[%c0_149, %c23, %c0_150, %c0_151] : memref<1x27x2x512xf32, #tpu.memory_space<vmem>>, vector<1x1x2x512xf32>
    %376 = vector.shape_cast %375 : vector<1x1x2x512xf32> to vector<2x512xf32>
    %c23_152 = arith.constant 23 : index
    %c0_153 = arith.constant 0 : index
    %c0_154 = arith.constant 0 : index
    %377 = vector.load %arg3[%c23_152, %c0_153, %c0_154] : memref<27x2x2xf32, #tpu.memory_space<vmem>>, vector<1x2x2xf32>
    %378 = vector.shape_cast %377 : vector<1x2x2xf32> to vector<2x2xf32>
    %379 = vector.extract_strided_slice %378 {offsets = [0, 0], sizes = [2, 1], strides = [1, 1]} : vector<2x2xf32> to vector<2x1xf32>
    %380 = vector.extract_strided_slice %376 {offsets = [0, 0], sizes = [1, 512], strides = [1, 1]} : vector<2x512xf32> to vector<1x512xf32>
    %381 = vector.broadcast %379 : vector<2x1xf32> to vector<2x512xf32>
    %382 = vector.broadcast %380 : vector<1x512xf32> to vector<2x512xf32>
    %383 = arith.mulf %381, %382 : vector<2x512xf32>
    %384 = arith.addf %374, %383 : vector<2x512xf32>
    %385 = vector.extract_strided_slice %378 {offsets = [0, 1], sizes = [2, 1], strides = [1, 1]} : vector<2x2xf32> to vector<2x1xf32>
    %386 = vector.extract_strided_slice %376 {offsets = [1, 0], sizes = [1, 512], strides = [1, 1]} : vector<2x512xf32> to vector<1x512xf32>
    %387 = vector.broadcast %385 : vector<2x1xf32> to vector<2x512xf32>
    %388 = vector.broadcast %386 : vector<1x512xf32> to vector<2x512xf32>
    %389 = arith.mulf %387, %388 : vector<2x512xf32>
    %390 = arith.addf %384, %389 : vector<2x512xf32>
    %c0_155 = arith.constant 0 : index
    %c24 = arith.constant 24 : index
    %c0_156 = arith.constant 0 : index
    %c0_157 = arith.constant 0 : index
    %391 = vector.load %arg1[%c0_155, %c24, %c0_156, %c0_157] : memref<1x27x2x512xf32, #tpu.memory_space<vmem>>, vector<1x1x2x512xf32>
    %392 = vector.shape_cast %391 : vector<1x1x2x512xf32> to vector<2x512xf32>
    %c24_158 = arith.constant 24 : index
    %c0_159 = arith.constant 0 : index
    %c0_160 = arith.constant 0 : index
    %393 = vector.load %arg3[%c24_158, %c0_159, %c0_160] : memref<27x2x2xf32, #tpu.memory_space<vmem>>, vector<1x2x2xf32>
    %394 = vector.shape_cast %393 : vector<1x2x2xf32> to vector<2x2xf32>
    %395 = vector.extract_strided_slice %394 {offsets = [0, 0], sizes = [2, 1], strides = [1, 1]} : vector<2x2xf32> to vector<2x1xf32>
    %396 = vector.extract_strided_slice %392 {offsets = [0, 0], sizes = [1, 512], strides = [1, 1]} : vector<2x512xf32> to vector<1x512xf32>
    %397 = vector.broadcast %395 : vector<2x1xf32> to vector<2x512xf32>
    %398 = vector.broadcast %396 : vector<1x512xf32> to vector<2x512xf32>
    %399 = arith.mulf %397, %398 : vector<2x512xf32>
    %400 = arith.addf %390, %399 : vector<2x512xf32>
    %401 = vector.extract_strided_slice %394 {offsets = [0, 1], sizes = [2, 1], strides = [1, 1]} : vector<2x2xf32> to vector<2x1xf32>
    %402 = vector.extract_strided_slice %392 {offsets = [1, 0], sizes = [1, 512], strides = [1, 1]} : vector<2x512xf32> to vector<1x512xf32>
    %403 = vector.broadcast %401 : vector<2x1xf32> to vector<2x512xf32>
    %404 = vector.broadcast %402 : vector<1x512xf32> to vector<2x512xf32>
    %405 = arith.mulf %403, %404 : vector<2x512xf32>
    %406 = arith.addf %400, %405 : vector<2x512xf32>
    %c0_161 = arith.constant 0 : index
    %c25 = arith.constant 25 : index
    %c0_162 = arith.constant 0 : index
    %c0_163 = arith.constant 0 : index
    %407 = vector.load %arg1[%c0_161, %c25, %c0_162, %c0_163] : memref<1x27x2x512xf32, #tpu.memory_space<vmem>>, vector<1x1x2x512xf32>
    %408 = vector.shape_cast %407 : vector<1x1x2x512xf32> to vector<2x512xf32>
    %c25_164 = arith.constant 25 : index
    %c0_165 = arith.constant 0 : index
    %c0_166 = arith.constant 0 : index
    %409 = vector.load %arg3[%c25_164, %c0_165, %c0_166] : memref<27x2x2xf32, #tpu.memory_space<vmem>>, vector<1x2x2xf32>
    %410 = vector.shape_cast %409 : vector<1x2x2xf32> to vector<2x2xf32>
    %411 = vector.extract_strided_slice %410 {offsets = [0, 0], sizes = [2, 1], strides = [1, 1]} : vector<2x2xf32> to vector<2x1xf32>
    %412 = vector.extract_strided_slice %408 {offsets = [0, 0], sizes = [1, 512], strides = [1, 1]} : vector<2x512xf32> to vector<1x512xf32>
    %413 = vector.broadcast %411 : vector<2x1xf32> to vector<2x512xf32>
    %414 = vector.broadcast %412 : vector<1x512xf32> to vector<2x512xf32>
    %415 = arith.mulf %413, %414 : vector<2x512xf32>
    %416 = arith.addf %406, %415 : vector<2x512xf32>
    %417 = vector.extract_strided_slice %410 {offsets = [0, 1], sizes = [2, 1], strides = [1, 1]} : vector<2x2xf32> to vector<2x1xf32>
    %418 = vector.extract_strided_slice %408 {offsets = [1, 0], sizes = [1, 512], strides = [1, 1]} : vector<2x512xf32> to vector<1x512xf32>
    %419 = vector.broadcast %417 : vector<2x1xf32> to vector<2x512xf32>
    %420 = vector.broadcast %418 : vector<1x512xf32> to vector<2x512xf32>
    %421 = arith.mulf %419, %420 : vector<2x512xf32>
    %422 = arith.addf %416, %421 : vector<2x512xf32>
    %c0_167 = arith.constant 0 : index
    %c26 = arith.constant 26 : index
    %c0_168 = arith.constant 0 : index
    %c0_169 = arith.constant 0 : index
    %423 = vector.load %arg1[%c0_167, %c26, %c0_168, %c0_169] : memref<1x27x2x512xf32, #tpu.memory_space<vmem>>, vector<1x1x2x512xf32>
    %424 = vector.shape_cast %423 : vector<1x1x2x512xf32> to vector<2x512xf32>
    %c26_170 = arith.constant 26 : index
    %c0_171 = arith.constant 0 : index
    %c0_172 = arith.constant 0 : index
    %425 = vector.load %arg3[%c26_170, %c0_171, %c0_172] : memref<27x2x2xf32, #tpu.memory_space<vmem>>, vector<1x2x2xf32>
    %426 = vector.shape_cast %425 : vector<1x2x2xf32> to vector<2x2xf32>
    %427 = vector.extract_strided_slice %426 {offsets = [0, 0], sizes = [2, 1], strides = [1, 1]} : vector<2x2xf32> to vector<2x1xf32>
    %428 = vector.extract_strided_slice %424 {offsets = [0, 0], sizes = [1, 512], strides = [1, 1]} : vector<2x512xf32> to vector<1x512xf32>
    %429 = vector.broadcast %427 : vector<2x1xf32> to vector<2x512xf32>
    %430 = vector.broadcast %428 : vector<1x512xf32> to vector<2x512xf32>
    %431 = arith.mulf %429, %430 : vector<2x512xf32>
    %432 = arith.addf %422, %431 : vector<2x512xf32>
    %433 = vector.extract_strided_slice %426 {offsets = [0, 1], sizes = [2, 1], strides = [1, 1]} : vector<2x2xf32> to vector<2x1xf32>
    %434 = vector.extract_strided_slice %424 {offsets = [1, 0], sizes = [1, 512], strides = [1, 1]} : vector<2x512xf32> to vector<1x512xf32>
    %435 = vector.broadcast %433 : vector<2x1xf32> to vector<2x512xf32>
    %436 = vector.broadcast %434 : vector<1x512xf32> to vector<2x512xf32>
    %437 = arith.mulf %435, %436 : vector<2x512xf32>
    %438 = arith.addf %432, %437 : vector<2x512xf32>
    %439 = vector.extract_strided_slice %1 {offsets = [0, 0], sizes = [2, 512], strides = [1, 1]} : vector<8x512xf32> to vector<2x512xf32>
    %440 = vector.extract_strided_slice %2 {offsets = [0, 0], sizes = [2, 4], strides = [1, 1]} : vector<8x4xf32> to vector<2x4xf32>
    %441 = vector.extract_strided_slice %3 {offsets = [0, 0], sizes = [2, 4], strides = [1, 1]} : vector<8x4xf32> to vector<2x4xf32>
    %442 = vector.extract_strided_slice %4 {offsets = [0, 0], sizes = [2, 4], strides = [1, 1]} : vector<8x4xf32> to vector<2x4xf32>
    %443 = vector.extract_strided_slice %5 {offsets = [0, 0], sizes = [2, 1], strides = [1, 1]} : vector<8x1xf32> to vector<2x1xf32>
    %cst_173 = arith.constant dense<0.000000e+00> : vector<2xf32>
    %444 = vector.multi_reduction <add>, %438, %cst_173 [1] : vector<2x512xf32> to vector<2xf32>
    %445 = vector.shape_cast %444 : vector<2xf32> to vector<2x1xf32>
    %cst_174 = arith.constant 5.120000e+02 : f32
    %446 = vector.broadcast %cst_174 : f32 to vector<2x1xf32>
    %447 = arith.divf %445, %446 : vector<2x1xf32>
    %448 = vector.broadcast %447 : vector<2x1xf32> to vector<2x512xf32>
    %449 = arith.subf %438, %448 : vector<2x512xf32>
    %450 = arith.mulf %449, %449 : vector<2x512xf32>
    %cst_175 = arith.constant dense<0.000000e+00> : vector<2xf32>
    %451 = vector.multi_reduction <add>, %450, %cst_175 [1] : vector<2x512xf32> to vector<2xf32>
    %452 = vector.shape_cast %451 : vector<2xf32> to vector<2x1xf32>
    %cst_176 = arith.constant 5.120000e+02 : f32
    %453 = vector.broadcast %cst_176 : f32 to vector<2x1xf32>
    %454 = arith.divf %452, %453 : vector<2x1xf32>
    %cst_177 = arith.constant 9.99999974E-6 : f32
    %455 = vector.broadcast %cst_177 : f32 to vector<2x1xf32>
    %456 = arith.addf %454, %455 : vector<2x1xf32>
    %457 = math.rsqrt %456 : vector<2x1xf32>
    %458 = vector.broadcast %457 : vector<2x1xf32> to vector<2x512xf32>
    %459 = arith.mulf %449, %458 : vector<2x512xf32>
    %cst_178 = arith.constant 0.000000e+00 : f32
    %460 = vector.broadcast %cst_178 : f32 to vector<2x512xf32>
    %461 = vector.extract_strided_slice %440 {offsets = [0, 0], sizes = [2, 1], strides = [1, 1]} : vector<2x4xf32> to vector<2x1xf32>
    %462 = vector.broadcast %461 : vector<2x1xf32> to vector<2x512xf32>
    %463 = arith.mulf %462, %459 : vector<2x512xf32>
    %464 = vector.extract_strided_slice %441 {offsets = [0, 0], sizes = [2, 1], strides = [1, 1]} : vector<2x4xf32> to vector<2x1xf32>
    %465 = vector.broadcast %464 : vector<2x1xf32> to vector<2x512xf32>
    %466 = arith.addf %463, %465 : vector<2x512xf32>
    %cst_179 = arith.constant 0.000000e+00 : f32
    %467 = vector.broadcast %cst_179 : f32 to vector<2x512xf32>
    %468 = arith.cmpf oge, %466, %467 : vector<2x512xf32>
    %cst_180 = arith.constant 0.00999999977 : f32
    %469 = vector.broadcast %cst_180 : f32 to vector<2x512xf32>
    %470 = arith.mulf %469, %466 : vector<2x512xf32>
    %471 = arith.select %468, %466, %470 : vector<2x512xi1>, vector<2x512xf32>
    %472 = vector.extract_strided_slice %442 {offsets = [0, 0], sizes = [2, 1], strides = [1, 1]} : vector<2x4xf32> to vector<2x1xf32>
    %473 = vector.broadcast %472 : vector<2x1xf32> to vector<2x512xf32>
    %474 = arith.mulf %473, %471 : vector<2x512xf32>
    %475 = arith.addf %460, %474 : vector<2x512xf32>
    %476 = vector.extract_strided_slice %440 {offsets = [0, 1], sizes = [2, 1], strides = [1, 1]} : vector<2x4xf32> to vector<2x1xf32>
    %477 = vector.broadcast %476 : vector<2x1xf32> to vector<2x512xf32>
    %478 = arith.mulf %477, %459 : vector<2x512xf32>
    %479 = vector.extract_strided_slice %441 {offsets = [0, 1], sizes = [2, 1], strides = [1, 1]} : vector<2x4xf32> to vector<2x1xf32>
    %480 = vector.broadcast %479 : vector<2x1xf32> to vector<2x512xf32>
    %481 = arith.addf %478, %480 : vector<2x512xf32>
    %cst_181 = arith.constant 0.000000e+00 : f32
    %482 = vector.broadcast %cst_181 : f32 to vector<2x512xf32>
    %483 = arith.cmpf oge, %481, %482 : vector<2x512xf32>
    %cst_182 = arith.constant 0.00999999977 : f32
    %484 = vector.broadcast %cst_182 : f32 to vector<2x512xf32>
    %485 = arith.mulf %484, %481 : vector<2x512xf32>
    %486 = arith.select %483, %481, %485 : vector<2x512xi1>, vector<2x512xf32>
    %487 = vector.extract_strided_slice %442 {offsets = [0, 1], sizes = [2, 1], strides = [1, 1]} : vector<2x4xf32> to vector<2x1xf32>
    %488 = vector.broadcast %487 : vector<2x1xf32> to vector<2x512xf32>
    %489 = arith.mulf %488, %486 : vector<2x512xf32>
    %490 = arith.addf %475, %489 : vector<2x512xf32>
    %491 = vector.extract_strided_slice %440 {offsets = [0, 2], sizes = [2, 1], strides = [1, 1]} : vector<2x4xf32> to vector<2x1xf32>
    %492 = vector.broadcast %491 : vector<2x1xf32> to vector<2x512xf32>
    %493 = arith.mulf %492, %459 : vector<2x512xf32>
    %494 = vector.extract_strided_slice %441 {offsets = [0, 2], sizes = [2, 1], strides = [1, 1]} : vector<2x4xf32> to vector<2x1xf32>
    %495 = vector.broadcast %494 : vector<2x1xf32> to vector<2x512xf32>
    %496 = arith.addf %493, %495 : vector<2x512xf32>
    %cst_183 = arith.constant 0.000000e+00 : f32
    %497 = vector.broadcast %cst_183 : f32 to vector<2x512xf32>
    %498 = arith.cmpf oge, %496, %497 : vector<2x512xf32>
    %cst_184 = arith.constant 0.00999999977 : f32
    %499 = vector.broadcast %cst_184 : f32 to vector<2x512xf32>
    %500 = arith.mulf %499, %496 : vector<2x512xf32>
    %501 = arith.select %498, %496, %500 : vector<2x512xi1>, vector<2x512xf32>
    %502 = vector.extract_strided_slice %442 {offsets = [0, 2], sizes = [2, 1], strides = [1, 1]} : vector<2x4xf32> to vector<2x1xf32>
    %503 = vector.broadcast %502 : vector<2x1xf32> to vector<2x512xf32>
    %504 = arith.mulf %503, %501 : vector<2x512xf32>
    %505 = arith.addf %490, %504 : vector<2x512xf32>
    %506 = vector.extract_strided_slice %440 {offsets = [0, 3], sizes = [2, 1], strides = [1, 1]} : vector<2x4xf32> to vector<2x1xf32>
    %507 = vector.broadcast %506 : vector<2x1xf32> to vector<2x512xf32>
    %508 = arith.mulf %507, %459 : vector<2x512xf32>
    %509 = vector.extract_strided_slice %441 {offsets = [0, 3], sizes = [2, 1], strides = [1, 1]} : vector<2x4xf32> to vector<2x1xf32>
    %510 = vector.broadcast %509 : vector<2x1xf32> to vector<2x512xf32>
    %511 = arith.addf %508, %510 : vector<2x512xf32>
    %cst_185 = arith.constant 0.000000e+00 : f32
    %512 = vector.broadcast %cst_185 : f32 to vector<2x512xf32>
    %513 = arith.cmpf oge, %511, %512 : vector<2x512xf32>
    %cst_186 = arith.constant 0.00999999977 : f32
    %514 = vector.broadcast %cst_186 : f32 to vector<2x512xf32>
    %515 = arith.mulf %514, %511 : vector<2x512xf32>
    %516 = arith.select %513, %511, %515 : vector<2x512xi1>, vector<2x512xf32>
    %517 = vector.extract_strided_slice %442 {offsets = [0, 3], sizes = [2, 1], strides = [1, 1]} : vector<2x4xf32> to vector<2x1xf32>
    %518 = vector.broadcast %517 : vector<2x1xf32> to vector<2x512xf32>
    %519 = arith.mulf %518, %516 : vector<2x512xf32>
    %520 = arith.addf %505, %519 : vector<2x512xf32>
    %521 = arith.addf %439, %520 : vector<2x512xf32>
    %522 = vector.broadcast %443 : vector<2x1xf32> to vector<2x512xf32>
    %523 = arith.addf %521, %522 : vector<2x512xf32>
    %c0_187 = arith.constant 0 : index
    %c0_188 = arith.constant 0 : index
    %c0_189 = arith.constant 0 : index
    %524 = vector.load %arg8[%c0_187, %c0_188, %c0_189] : memref<1x8x512xf32, #tpu.memory_space<vmem>>, vector<1x2x512xf32>
    %525 = vector.shape_cast %524 : vector<1x2x512xf32> to vector<2x512xf32>
    %526 = vector.shape_cast %523 : vector<2x512xf32> to vector<1x2x512xf32>
    tpu.vector_store %arg8[%c0_187, %c0_188, %c0_189], %526 {strides = array<i32>} : memref<1x8x512xf32, #tpu.memory_space<vmem>>, vector<1x2x512xf32>,
    %527 = vector.extract_strided_slice %1 {offsets = [2, 0], sizes = [6, 512], strides = [1, 1]} : vector<8x512xf32> to vector<6x512xf32>
    %528 = vector.extract_strided_slice %1 {offsets = [2, 0], sizes = [6, 512], strides = [1, 1]} : vector<8x512xf32> to vector<6x512xf32>
    %529 = vector.extract_strided_slice %2 {offsets = [2, 0], sizes = [6, 4], strides = [1, 1]} : vector<8x4xf32> to vector<6x4xf32>
    %530 = vector.extract_strided_slice %3 {offsets = [2, 0], sizes = [6, 4], strides = [1, 1]} : vector<8x4xf32> to vector<6x4xf32>
    %531 = vector.extract_strided_slice %4 {offsets = [2, 0], sizes = [6, 4], strides = [1, 1]} : vector<8x4xf32> to vector<6x4xf32>
    %532 = vector.extract_strided_slice %5 {offsets = [2, 0], sizes = [6, 1], strides = [1, 1]} : vector<8x1xf32> to vector<6x1xf32>
    %cst_190 = arith.constant dense<0.000000e+00> : vector<6xf32>
    %533 = vector.multi_reduction <add>, %527, %cst_190 [1] : vector<6x512xf32> to vector<6xf32>
    %534 = vector.shape_cast %533 : vector<6xf32> to vector<6x1xf32>
    %cst_191 = arith.constant 5.120000e+02 : f32
    %535 = vector.broadcast %cst_191 : f32 to vector<6x1xf32>
    %536 = arith.divf %534, %535 : vector<6x1xf32>
    %537 = vector.broadcast %536 : vector<6x1xf32> to vector<6x512xf32>
    %538 = arith.subf %527, %537 : vector<6x512xf32>
    %539 = arith.mulf %538, %538 : vector<6x512xf32>
    %cst_192 = arith.constant dense<0.000000e+00> : vector<6xf32>
    %540 = vector.multi_reduction <add>, %539, %cst_192 [1] : vector<6x512xf32> to vector<6xf32>
    %541 = vector.shape_cast %540 : vector<6xf32> to vector<6x1xf32>
    %cst_193 = arith.constant 5.120000e+02 : f32
    %542 = vector.broadcast %cst_193 : f32 to vector<6x1xf32>
    %543 = arith.divf %541, %542 : vector<6x1xf32>
    %cst_194 = arith.constant 9.99999974E-6 : f32
    %544 = vector.broadcast %cst_194 : f32 to vector<6x1xf32>
    %545 = arith.addf %543, %544 : vector<6x1xf32>
    %546 = math.rsqrt %545 : vector<6x1xf32>
    %547 = vector.broadcast %546 : vector<6x1xf32> to vector<6x512xf32>
    %548 = arith.mulf %538, %547 : vector<6x512xf32>
    %cst_195 = arith.constant 0.000000e+00 : f32
    %549 = vector.broadcast %cst_195 : f32 to vector<6x512xf32>
    %550 = vector.extract_strided_slice %529 {offsets = [0, 0], sizes = [6, 1], strides = [1, 1]} : vector<6x4xf32> to vector<6x1xf32>
    %551 = vector.broadcast %550 : vector<6x1xf32> to vector<6x512xf32>
    %552 = arith.mulf %551, %548 : vector<6x512xf32>
    %553 = vector.extract_strided_slice %530 {offsets = [0, 0], sizes = [6, 1], strides = [1, 1]} : vector<6x4xf32> to vector<6x1xf32>
    %554 = vector.broadcast %553 : vector<6x1xf32> to vector<6x512xf32>
    %555 = arith.addf %552, %554 : vector<6x512xf32>
    %cst_196 = arith.constant 0.000000e+00 : f32
    %556 = vector.broadcast %cst_196 : f32 to vector<6x512xf32>
    %557 = arith.cmpf oge, %555, %556 : vector<6x512xf32>
    %cst_197 = arith.constant 0.00999999977 : f32
    %558 = vector.broadcast %cst_197 : f32 to vector<6x512xf32>
    %559 = arith.mulf %558, %555 : vector<6x512xf32>
    %560 = arith.select %557, %555, %559 : vector<6x512xi1>, vector<6x512xf32>
    %561 = vector.extract_strided_slice %531 {offsets = [0, 0], sizes = [6, 1], strides = [1, 1]} : vector<6x4xf32> to vector<6x1xf32>
    %562 = vector.broadcast %561 : vector<6x1xf32> to vector<6x512xf32>
    %563 = arith.mulf %562, %560 : vector<6x512xf32>
    %564 = arith.addf %549, %563 : vector<6x512xf32>
    %565 = vector.extract_strided_slice %529 {offsets = [0, 1], sizes = [6, 1], strides = [1, 1]} : vector<6x4xf32> to vector<6x1xf32>
    %566 = vector.broadcast %565 : vector<6x1xf32> to vector<6x512xf32>
    %567 = arith.mulf %566, %548 : vector<6x512xf32>
    %568 = vector.extract_strided_slice %530 {offsets = [0, 1], sizes = [6, 1], strides = [1, 1]} : vector<6x4xf32> to vector<6x1xf32>
    %569 = vector.broadcast %568 : vector<6x1xf32> to vector<6x512xf32>
    %570 = arith.addf %567, %569 : vector<6x512xf32>
    %cst_198 = arith.constant 0.000000e+00 : f32
    %571 = vector.broadcast %cst_198 : f32 to vector<6x512xf32>
    %572 = arith.cmpf oge, %570, %571 : vector<6x512xf32>
    %cst_199 = arith.constant 0.00999999977 : f32
    %573 = vector.broadcast %cst_199 : f32 to vector<6x512xf32>
    %574 = arith.mulf %573, %570 : vector<6x512xf32>
    %575 = arith.select %572, %570, %574 : vector<6x512xi1>, vector<6x512xf32>
    %576 = vector.extract_strided_slice %531 {offsets = [0, 1], sizes = [6, 1], strides = [1, 1]} : vector<6x4xf32> to vector<6x1xf32>
    %577 = vector.broadcast %576 : vector<6x1xf32> to vector<6x512xf32>
    %578 = arith.mulf %577, %575 : vector<6x512xf32>
    %579 = arith.addf %564, %578 : vector<6x512xf32>
    %580 = vector.extract_strided_slice %529 {offsets = [0, 2], sizes = [6, 1], strides = [1, 1]} : vector<6x4xf32> to vector<6x1xf32>
    %581 = vector.broadcast %580 : vector<6x1xf32> to vector<6x512xf32>
    %582 = arith.mulf %581, %548 : vector<6x512xf32>
    %583 = vector.extract_strided_slice %530 {offsets = [0, 2], sizes = [6, 1], strides = [1, 1]} : vector<6x4xf32> to vector<6x1xf32>
    %584 = vector.broadcast %583 : vector<6x1xf32> to vector<6x512xf32>
    %585 = arith.addf %582, %584 : vector<6x512xf32>
    %cst_200 = arith.constant 0.000000e+00 : f32
    %586 = vector.broadcast %cst_200 : f32 to vector<6x512xf32>
    %587 = arith.cmpf oge, %585, %586 : vector<6x512xf32>
    %cst_201 = arith.constant 0.00999999977 : f32
    %588 = vector.broadcast %cst_201 : f32 to vector<6x512xf32>
    %589 = arith.mulf %588, %585 : vector<6x512xf32>
    %590 = arith.select %587, %585, %589 : vector<6x512xi1>, vector<6x512xf32>
    %591 = vector.extract_strided_slice %531 {offsets = [0, 2], sizes = [6, 1], strides = [1, 1]} : vector<6x4xf32> to vector<6x1xf32>
    %592 = vector.broadcast %591 : vector<6x1xf32> to vector<6x512xf32>
    %593 = arith.mulf %592, %590 : vector<6x512xf32>
    %594 = arith.addf %579, %593 : vector<6x512xf32>
    %595 = vector.extract_strided_slice %529 {offsets = [0, 3], sizes = [6, 1], strides = [1, 1]} : vector<6x4xf32> to vector<6x1xf32>
    %596 = vector.broadcast %595 : vector<6x1xf32> to vector<6x512xf32>
    %597 = arith.mulf %596, %548 : vector<6x512xf32>
    %598 = vector.extract_strided_slice %530 {offsets = [0, 3], sizes = [6, 1], strides = [1, 1]} : vector<6x4xf32> to vector<6x1xf32>
    %599 = vector.broadcast %598 : vector<6x1xf32> to vector<6x512xf32>
    %600 = arith.addf %597, %599 : vector<6x512xf32>
    %cst_202 = arith.constant 0.000000e+00 : f32
    %601 = vector.broadcast %cst_202 : f32 to vector<6x512xf32>
    %602 = arith.cmpf oge, %600, %601 : vector<6x512xf32>
    %cst_203 = arith.constant 0.00999999977 : f32
    %603 = vector.broadcast %cst_203 : f32 to vector<6x512xf32>
    %604 = arith.mulf %603, %600 : vector<6x512xf32>
    %605 = arith.select %602, %600, %604 : vector<6x512xi1>, vector<6x512xf32>
    %606 = vector.extract_strided_slice %531 {offsets = [0, 3], sizes = [6, 1], strides = [1, 1]} : vector<6x4xf32> to vector<6x1xf32>
    %607 = vector.broadcast %606 : vector<6x1xf32> to vector<6x512xf32>
    %608 = arith.mulf %607, %605 : vector<6x512xf32>
    %609 = arith.addf %594, %608 : vector<6x512xf32>
    %610 = arith.addf %528, %609 : vector<6x512xf32>
    %611 = vector.broadcast %532 : vector<6x1xf32> to vector<6x512xf32>
    %612 = arith.addf %610, %611 : vector<6x512xf32>
    %c0_204 = arith.constant 0 : index
    %c2_205 = arith.constant 2 : index
    %c0_206 = arith.constant 0 : index
    %613 = vector.load %arg8[%c0_204, %c2_205, %c0_206] : memref<1x8x512xf32, #tpu.memory_space<vmem>>, vector<1x6x512xf32>
    %614 = vector.shape_cast %613 : vector<1x6x512xf32> to vector<6x512xf32>
    %615 = vector.shape_cast %612 : vector<6x512xf32> to vector<1x6x512xf32>
    tpu.vector_store %arg8[%c0_204, %c2_205, %c0_206], %615 {strides = array<i32>} : memref<1x8x512xf32, #tpu.memory_space<vmem>>, vector<1x6x512xf32>,
    return
  }
  func.func @transform_0(%arg0: i32) -> (i32, i32, i32, i32) {
    %c0_i32 = arith.constant 0 : i32
    %c0_i32_0 = arith.constant 0 : i32
    %c0_i32_1 = arith.constant 0 : i32
    %c0_i32_2 = arith.constant 0 : i32
    return %arg0, %c0_i32, %c0_i32_0, %c0_i32_1 : i32, i32, i32, i32
  }
  func.func @transform_1(%arg0: i32) -> (i32, i32, i32) {
    %c0_i32 = arith.constant 0 : i32
    %c0_i32_0 = arith.constant 0 : i32
    %c0_i32_1 = arith.constant 0 : i32
    return %arg0, %c0_i32, %c0_i32_0 : i32, i32, i32
  }
  func.func @transform_2(%arg0: i32) -> (i32, i32, i32) {
    %c0_i32 = arith.constant 0 : i32
    %c0_i32_0 = arith.constant 0 : i32
    %c0_i32_1 = arith.constant 0 : i32
    %c0_i32_2 = arith.constant 0 : i32
    return %c0_i32, %c0_i32_0, %c0_i32_1 : i32, i32, i32
  }
  func.func @transform_3(%arg0: i32) -> (i32, i32) {
    %c0_i32 = arith.constant 0 : i32
    %c0_i32_0 = arith.constant 0 : i32
    %c0_i32_1 = arith.constant 0 : i32
    return %c0_i32, %c0_i32_0 : i32, i32
  }
  func.func @transform_4(%arg0: i32) -> (i32, i32) {
    %c0_i32 = arith.constant 0 : i32
    %c0_i32_0 = arith.constant 0 : i32
    %c0_i32_1 = arith.constant 0 : i32
    return %c0_i32, %c0_i32_0 : i32, i32
  }
  func.func @transform_5(%arg0: i32) -> (i32, i32) {
    %c0_i32 = arith.constant 0 : i32
    %c0_i32_0 = arith.constant 0 : i32
    %c0_i32_1 = arith.constant 0 : i32
    return %c0_i32, %c0_i32_0 : i32, i32
  }
  func.func @transform_6(%arg0: i32) -> (i32, i32) {
    %c0_i32 = arith.constant 0 : i32
    %c0_i32_0 = arith.constant 0 : i32
    %c0_i32_1 = arith.constant 0 : i32
    return %c0_i32, %c0_i32_0 : i32, i32
  }
  func.func @transform_7(%arg0: i32) -> (i32, i32, i32) {
    %c0_i32 = arith.constant 0 : i32
    %c0_i32_0 = arith.constant 0 : i32
    %c0_i32_1 = arith.constant 0 : i32
    return %arg0, %c0_i32, %c0_i32_0 : i32, i32, i32
  }
}

</mosaic_0001>

<llo_original>
// kernel: tpu_custom_call.1
$region0: #{tpu_custom_call.1}
  #allocation0 [shape = 'u32[]', space=smem, size = 0x4, offset = 0x4, fixed_abs, tag = 'smem constant byte address 0x4 - core index']
  #allocation1 [shape = 'u32[144,128]{1,0:T(1,128)}', space=vmem, size = 0x12000, scoped, tag = 'internal scratch']
  %s0 = inlined_call_operand.hbm [shape: f32[2,27,2,512], index: 0, kind: input, shape index: {}]
  %s1 = inlined_call_operand.vmem [shape: f32[2,8,512], index: 1, kind: input, shape index: {}]
  %s2 = inlined_call_operand.vmem [shape: f32[27,2,2], index: 2, kind: input, shape index: {}]
  %s3 = inlined_call_operand.vmem [shape: f32[8,4], index: 3, kind: input, shape index: {}]
  %s4 = inlined_call_operand.vmem [shape: f32[8,4], index: 4, kind: input, shape index: {}]
  %s5 = inlined_call_operand.vmem [shape: f32[8,4], index: 5, kind: input, shape index: {}]
  %s6 = inlined_call_operand.vmem [shape: f32[8,1], index: 6, kind: input, shape index: {}]
  %s7 = inlined_call_operand.hbm [shape: f32[2,8,512], index: 7, kind: output, shape index: {}]
  %s8 = sld [smem:[#allocation0]]
  $region65: #{tpu_custom_call.1} parent=0
    _
  %s10 = ssub.s32 1, %s8
  %s11 = scalar_select 0, %s10, %s8
  $region1: #{tpu_custom_call.1} parent=0
    #allocation2 [shape = 'u8[221184]{0}', space=vmem, size = 0x36000, scoped, tag = 'input window, operand 0']
    #allocation3 [shape = 's32[2]{0}', space=sflag, size = 0x8, scoped, tag = 'scoped memory for tpu_custom_call.1']
    #allocation4 [shape = 's32[2]{0}', space=sflag, size = 0x8, scoped, tag = 'scoped memory for tpu_custom_call.1']
    #allocation5 [shape = 'u8[32768]{0}', space=vmem, size = 0x8000, scoped, tag = 'output window, operand 0']
    %12 = vsyncpa [#allocation3], 0
    %s13 = scalar_lea.sflag [#allocation3], 1
    %14 = vsyncpa %s13, 0
    %15 = vsyncpa [#allocation4], 0
    %s16 = scalar_lea.sflag [#allocation4], 1
    %17 = vsyncpa %s16, 0
    loop: start=0, step=1, limit=4
    $region2: #{tpu_custom_call.1} parent=1 // loop_pre_header
      _
    $region3: #{tpu_custom_call.1} parent=1 // loop_header
      %s19 = sphi 0, %s23
      %p20 = scmp.ge.s32.totalorder %s19, 4
      %s29 = sphi 0, %s31
      %s32 = sphi 0, %s29
      %s33 = sphi 0, %s32
      %s49 = sphi 0, %s33
      %s55 = sphi 0, %s57
      %s58 = sphi 0, %s55
      %s59 = sphi 0, %s58
      %s75 = sphi 0, %s59
      %s79 = sphi 0, %s79
      %s81 = sphi 0, %s79
      %s82 = sphi 0, %s81
      %s96 = sphi 0, %s82
      %s100 = sphi 0, %s100
      %s102 = sphi 0, %s100
      %s103 = sphi 0, %s102
      %s117 = sphi 0, %s103
      %s121 = sphi 0, %s121
      %s123 = sphi 0, %s121
      %s124 = sphi 0, %s123
      %s138 = sphi 0, %s124
      %s142 = sphi 0, %s142
      %s144 = sphi 0, %s142
      %s145 = sphi 0, %s144
      %s159 = sphi 0, %s145
      %s163 = sphi 0, %s163
      %s165 = sphi 0, %s163
      %s166 = sphi 0, %s165
      %s180 = sphi 0, %s166
      %s186 = sphi 0, %s188
      %s189 = sphi 0, %s186
      %s190 = sphi 0, %s189
      %s206 = sphi 0, %s190
    $region4: #{tpu_custom_call.1} parent=1 // loop_header_branch
      %22 = sbr.rel (%p20) target = $region8
    $region5: #{tpu_custom_call.1} parent=1 // loop_body
      %s24 = ssub.s32 %s19, 1
      %s25 = ssub.s32 %s19, 2
      %s26 = sadd.s32 %s19, 1
      %s27 = ssub.s32 %s19, %s26
      %p28 = scmp.eq.s32.totalorder %s27, 0
      %s30 = sadd.s32 %s29, 1
      %s31 = scalar_select %p28, %s29, %s30
      %p34 = pneg %p28
      %p35 = scmp.eq.s32.totalorder %s19, 1
      %p36 = por %p34, %p35
      %p37 = scmp.ne.s32.totalorder %s29, %s32
      %p38 = scmp.eq.s32.totalorder %s19, 0
      %p39 = por %p37, %p38
      %p40 = scmp.ne.s32.totalorder %s29, %s32
      %p41 = scmp.eq.s32.totalorder %s24, 1
      %p42 = por %p40, %p41
      %p43 = scmp.ne.s32.totalorder %s32, %s33
      %p44 = scmp.eq.s32.totalorder %s24, 0
      %p45 = por %p43, %p44
      %p46 = scmp.ne.s32.totalorder %s32, %s33
      %p47 = scmp.eq.s32.totalorder %s25, 1
      %p48 = por %p46, %p47
      %p50 = scmp.ne.s32.totalorder %s33, %s49
      %p51 = scmp.eq.s32.totalorder %s25, 0
      %p52 = por %p50, %p51
      %s53 = ssub.s32 %s19, %s26
      %p54 = scmp.eq.s32.totalorder %s53, 0
      %s56 = sadd.s32 %s55, 1
      %s57 = scalar_select %p54, %s55, %s56
      %p60 = pneg %p54
      %p61 = scmp.eq.s32.totalorder %s19, 1
      %p62 = por %p60, %p61
      %p63 = scmp.ne.s32.totalorder %s55, %s58
      %p64 = scmp.eq.s32.totalorder %s19, 0
      %p65 = por %p63, %p64
      %p66 = scmp.ne.s32.totalorder %s55, %s58
      %p67 = scmp.eq.s32.totalorder %s24, 1
      %p68 = por %p66, %p67
      %p69 = scmp.ne.s32.totalorder %s58, %s59
      %p70 = scmp.eq.s32.totalorder %s24, 0
      %p71 = por %p69, %p70
      %p72 = scmp.ne.s32.totalorder %s58, %s59
      %p73 = scmp.eq.s32.totalorder %s25, 1
      %p74 = por %p72, %p73
      %p76 = scmp.ne.s32.totalorder %s59, %s75
      %p77 = scmp.eq.s32.totalorder %s25, 0
      %p78 = por %p76, %p77
      %s80 = sadd.s32 %s79, 1
      %p83 = scmp.eq.s32.totalorder %s19, 1
      %p84 = scmp.ne.s32.totalorder %s79, %s81
      %p85 = scmp.eq.s32.totalorder %s19, 0
      %p86 = por %p84, %p85
      %p87 = scmp.ne.s32.totalorder %s79, %s81
      %p88 = scmp.eq.s32.totalorder %s24, 1
      %p89 = por %p87, %p88
      %p90 = scmp.ne.s32.totalorder %s81, %s82
      %p91 = scmp.eq.s32.totalorder %s24, 0
      %p92 = por %p90, %p91
      %p93 = scmp.ne.s32.totalorder %s81, %s82
      %p94 = scmp.eq.s32.totalorder %s25, 1
      %p95 = por %p93, %p94
      %p97 = scmp.ne.s32.totalorder %s82, %s96
      %p98 = scmp.eq.s32.totalorder %s25, 0
      %p99 = por %p97, %p98
      %s101 = sadd.s32 %s100, 1
      %p104 = scmp.eq.s32.totalorder %s19, 1
      %p105 = scmp.ne.s32.totalorder %s100, %s102
      %p106 = scmp.eq.s32.totalorder %s19, 0
      %p107 = por %p105, %p106
      %p108 = scmp.ne.s32.totalorder %s100, %s102
      %p109 = scmp.eq.s32.totalorder %s24, 1
      %p110 = por %p108, %p109
      %p111 = scmp.ne.s32.totalorder %s102, %s103
      %p112 = scmp.eq.s32.totalorder %s24, 0
      %p113 = por %p111, %p112
      %p114 = scmp.ne.s32.totalorder %s102, %s103
      %p115 = scmp.eq.s32.totalorder %s25, 1
      %p116 = por %p114, %p115
      %p118 = scmp.ne.s32.totalorder %s103, %s117
      %p119 = scmp.eq.s32.totalorder %s25, 0
      %p120 = por %p118, %p119
      %s122 = sadd.s32 %s121, 1
      %p125 = scmp.eq.s32.totalorder %s19, 1
      %p126 = scmp.ne.s32.totalorder %s121, %s123
      %p127 = scmp.eq.s32.totalorder %s19, 0
      %p128 = por %p126, %p127
      %p129 = scmp.ne.s32.totalorder %s121, %s123
      %p130 = scmp.eq.s32.totalorder %s24, 1
      %p131 = por %p129, %p130
      %p132 = scmp.ne.s32.totalorder %s123, %s124
      %p133 = scmp.eq.s32.totalorder %s24, 0
      %p134 = por %p132, %p133
      %p135 = scmp.ne.s32.totalorder %s123, %s124
      %p136 = scmp.eq.s32.totalorder %s25, 1
      %p137 = por %p135, %p136
      %p139 = scmp.ne.s32.totalorder %s124, %s138
      %p140 = scmp.eq.s32.totalorder %s25, 0
      %p141 = por %p139, %p140
      %s143 = sadd.s32 %s142, 1
      %p146 = scmp.eq.s32.totalorder %s19, 1
      %p147 = scmp.ne.s32.totalorder %s142, %s144
      %p148 = scmp.eq.s32.totalorder %s19, 0
      %p149 = por %p147, %p148
      %p150 = scmp.ne.s32.totalorder %s142, %s144
      %p151 = scmp.eq.s32.totalorder %s24, 1
      %p152 = por %p150, %p151
      %p153 = scmp.ne.s32.totalorder %s144, %s145
      %p154 = scmp.eq.s32.totalorder %s24, 0
      %p155 = por %p153, %p154
      %p156 = scmp.ne.s32.totalorder %s144, %s145
      %p157 = scmp.eq.s32.totalorder %s25, 1
      %p158 = por %p156, %p157
      %p160 = scmp.ne.s32.totalorder %s145, %s159
      %p161 = scmp.eq.s32.totalorder %s25, 0
      %p162 = por %p160, %p161
      %s164 = sadd.s32 %s163, 1
      %p167 = scmp.eq.s32.totalorder %s19, 1
      %p168 = scmp.ne.s32.totalorder %s163, %s165
      %p169 = scmp.eq.s32.totalorder %s19, 0
      %p170 = por %p168, %p169
      %p171 = scmp.ne.s32.totalorder %s163, %s165
      %p172 = scmp.eq.s32.totalorder %s24, 1
      %p173 = por %p171, %p172
      %p174 = scmp.ne.s32.totalorder %s165, %s166
      %p175 = scmp.eq.s32.totalorder %s24, 0
      %p176 = por %p174, %p175
      %p177 = scmp.ne.s32.totalorder %s165, %s166
      %p178 = scmp.eq.s32.totalorder %s25, 1
      %p179 = por %p177, %p178
      %p181 = scmp.ne.s32.totalorder %s166, %s180
      %p182 = scmp.eq.s32.totalorder %s25, 0
      %p183 = por %p181, %p182
      %s184 = ssub.s32 %s19, %s26
      %p185 = scmp.eq.s32.totalorder %s184, 0
      %s187 = sadd.s32 %s186, 1
      %s188 = scalar_select %p185, %s186, %s187
      %p191 = pneg %p185
      %p192 = scmp.eq.s32.totalorder %s19, 1
      %p193 = por %p191, %p192
      %p194 = scmp.ne.s32.totalorder %s186, %s189
      %p195 = scmp.eq.s32.totalorder %s19, 0
      %p196 = por %p194, %p195
      %p197 = scmp.ne.s32.totalorder %s186, %s189
      %p198 = scmp.eq.s32.totalorder %s24, 1
      %p199 = por %p197, %p198
      %p200 = scmp.ne.s32.totalorder %s189, %s190
      %p201 = scmp.eq.s32.totalorder %s24, 0
      %p202 = por %p200, %p201
      %p203 = scmp.ne.s32.totalorder %s189, %s190
      %p204 = scmp.eq.s32.totalorder %s25, 1
      %p205 = por %p203, %p204
      %p207 = scmp.ne.s32.totalorder %s190, %s206
      %p208 = scmp.eq.s32.totalorder %s25, 0
      %p209 = por %p207, %p208
      %p210 = scmp.le.s32.totalorder 1, %s19
      %p211 = scmp.lt.s32.totalorder %s19, 3
      %p212 = pnand %p210, %p211
      %p213 = pneg %p212
      // Predicated region
      $region9: #{tpu_custom_call.1} parent=5 // pred_check
        _
      $region10: #{tpu_custom_call.1} parent=5 // pred_check_branch
        %215 = sbr.rel (%p212) target = $region12
      $region11: #{tpu_custom_call.1} parent=5 // pred_region
        %s216 = ssub.s32 %s19, 1
        // Predicated region
        $region13: #{tpu_custom_call.1} parent=11 // pred_check
          %p217 = pneg %p92
        $region14: #{tpu_custom_call.1} parent=11 // pred_check_branch
          %219 = sbr.rel (%p217) target = $region16
        $region15: #{tpu_custom_call.1} parent=11 // pred_region
          _
        $region16: #{tpu_custom_call.1} parent=11 // pred_fallthru
          _
        // Predicated region
        $region17: #{tpu_custom_call.1} parent=11 // pred_check
          %p220 = pneg %p113
        $region18: #{tpu_custom_call.1} parent=11 // pred_check_branch
          %222 = sbr.rel (%p220) target = $region20
        $region19: #{tpu_custom_call.1} parent=11 // pred_region
          _
        $region20: #{tpu_custom_call.1} parent=11 // pred_fallthru
          _
        // Predicated region
        $region21: #{tpu_custom_call.1} parent=11 // pred_check
          %p223 = pneg %p134
        $region22: #{tpu_custom_call.1} parent=11 // pred_check_branch
          %225 = sbr.rel (%p223) target = $region24
        $region23: #{tpu_custom_call.1} parent=11 // pred_region
          _
        $region24: #{tpu_custom_call.1} parent=11 // pred_fallthru
          _
        // Predicated region
        $region25: #{tpu_custom_call.1} parent=11 // pred_check
          %p226 = pneg %p155
        $region26: #{tpu_custom_call.1} parent=11 // pred_check_branch
          %228 = sbr.rel (%p226) target = $region28
        $region27: #{tpu_custom_call.1} parent=11 // pred_region
          _
        $region28: #{tpu_custom_call.1} parent=11 // pred_fallthru
          _
        // Predicated region
        $region29: #{tpu_custom_call.1} parent=11 // pred_check
          %p229 = pneg %p176
        $region30: #{tpu_custom_call.1} parent=11 // pred_check_branch
          %231 = sbr.rel (%p229) target = $region32
        $region31: #{tpu_custom_call.1} parent=11 // pred_region
          _
        $region32: #{tpu_custom_call.1} parent=11 // pred_fallthru
          _
      $region12: #{tpu_custom_call.1} parent=5 // pred_fallthru
        _
      %p232 = scmp.lt.s32.totalorder %s19, 2
      // Predicated region
      $region33: #{tpu_custom_call.1} parent=5 // pred_check
        %p233 = pneg %p232
      $region34: #{tpu_custom_call.1} parent=5 // pred_check_branch
        %235 = sbr.rel (%p233) target = $region36
      $region35: #{tpu_custom_call.1} parent=5 // pred_region
        // Predicated region
        $region37: #{tpu_custom_call.1} parent=35 // pred_check
          %p236 = pneg %p39
        $region38: #{tpu_custom_call.1} parent=35 // pred_check_branch
          %238 = sbr.rel (%p236) target = $region40
        $region39: #{tpu_custom_call.1} parent=35 // pred_region
          %s239 = sand.u32 %s29, 1
          %s240 = scalar_lea.sflag [#allocation3], %s239
          %s241 = sand.u32 %s29, 1
          %s242 = smul.addr %s241, 216
          %s243 = scalar_lea.vmem [#allocation2], %s242
          %s245 = ssub.s32 3456, 3456
          %246 = vsyncadd %s240, %s245
          %s247 = smul.addr %s19, 108
          %s248 = smul.addr %s247, 32
          %s249 = scalar_lea.hbm %s0, %s248
          %s250 = sshll.u32 %s243, 4
          %s251 = int_to_ptr.vmem [resolvable:$true] %s250
          %256 = dma.hbm_to_vmem [thread:$0]  %s249, 3456, %s251, %s240, 128, 128, 8
        $region40: #{tpu_custom_call.1} parent=35 // pred_fallthru
          _
        // Predicated region
        $region41: #{tpu_custom_call.1} parent=35 // pred_check
          %p257 = pneg %p65
        $region42: #{tpu_custom_call.1} parent=35 // pred_check_branch
          %259 = sbr.rel (%p257) target = $region44
        $region43: #{tpu_custom_call.1} parent=35 // pred_region
          %p260 = scmp.lt.s32.totalorder %s19, 1
          %s261 = scalar_select %p260, %s19, 1
          %s262 = smul.addr %s261, 4
          %s263 = smul.addr %s262, 8
          %s264 = scalar_lea.vmem %s1, %s263
        $region44: #{tpu_custom_call.1} parent=35 // pred_fallthru
          _
      $region36: #{tpu_custom_call.1} parent=5 // pred_fallthru
        _
      %p265 = scmp.le.s32.totalorder 1, %s19
      %p266 = scmp.lt.s32.totalorder %s19, 3
      %p267 = pnand %p265, %p266
      %p268 = pneg %p267
      // Predicated region
      $region45: #{tpu_custom_call.1} parent=5 // pred_check
        _
      $region46: #{tpu_custom_call.1} parent=5 // pred_check_branch
        %270 = sbr.rel (%p267) target = $region48
      $region47: #{tpu_custom_call.1} parent=5 // pred_region
        %s271 = ssub.s32 %s19, 1
        %s272 = sand.u32 %s32, 1
        %s273 = scalar_lea.sflag [#allocation3], %s272
        %s274 = sand.u32 %s32, 1
        %s275 = smul.addr %s274, 216
        %s276 = scalar_lea.vmem [#allocation2], %s275
        // Predicated region
        $region49: #{tpu_custom_call.1} parent=47 // pred_check
          %p277 = pneg %p45
        $region50: #{tpu_custom_call.1} parent=47 // pred_check_branch
          %279 = sbr.rel (%p277) target = $region52
        $region51: #{tpu_custom_call.1} parent=47 // pred_region
          %280 = dma.done %s273, 3456
        $region52: #{tpu_custom_call.1} parent=47 // pred_fallthru
          _
        %s281 = sand.u32 %s32, 1
        %s282 = scalar_lea.sflag [#allocation3], %s281
        %s283 = sand.u32 %s32, 1
        %s284 = smul.addr %s283, 216
        %s285 = scalar_lea.vmem [#allocation2], %s284
        %p286 = pneg %p45
        %p287 = pneg %p42
        %p288 = scmp.lt.s32.totalorder %s24, 1
        %s289 = scalar_select %p288, %s24, 1
        %s290 = smul.addr %s289, 4
        %s291 = smul.addr %s290, 8
        %s292 = scalar_lea.vmem %s1, %s291
        %p293 = pneg %p71
        %p294 = pneg %p68
        %p295 = pneg %p92
        %p296 = pneg %p89
        %p297 = pneg %p113
        %p298 = pneg %p110
        %p299 = pneg %p134
        %p300 = pneg %p131
        %p301 = pneg %p155
        %p302 = pneg %p152
        %p303 = pneg %p176
        %p304 = pneg %p173
        %p305 = pneg %p202
        %p306 = pneg %p199
        %s307 = sand.u32 %s189, 1
        %s308 = scalar_lea.sflag [#allocation4], %s307
        %s309 = sand.u32 %s189, 1
        %s310 = smul.addr %s309, 32
        %s311 = scalar_lea.vmem [#allocation5], %s310
        %p312 = scmp.lt.s32.totalorder %s24, 1
        %s313 = scalar_select %p312, %s24, 1
        %s314 = smul.addr %s313, 4
        %s315 = smul.addr %s314, 8
        %s316 = scalar_lea.vmem %s1, %s315
        %v317 = vld [vmem:[%s316] sm:$0xff]
        %v318 = vld [vmem:[%s316 + $0x8] sm:$0xff]
        %v319 = vld [vmem:[%s316 + $0x10] sm:$0xff]
        %v320 = vld [vmem:[%s316 + $0x18] sm:$0xff]
        %v321 = vld [vmem:[%s3] sm:$0xff]
        %v322 = vld [vmem:[%s4] sm:$0xff]
        %v323 = vld [vmem:[%s5] sm:$0xff]
        %v324 = vld [vmem:[%s6] sm:$0xff]
        %v325 = vld [vmem:[%s276] sm:$0xff]
        %v326 = vld [vmem:[%s2] sm:$0x3]
        %328 = vset.pattern.permute.xlu0 0
        %329 = vperm.xlu0 %328, %v326
        %v330 = vpop.permute.xlu0 %329
        %v333 = vlaneseq
        %v334 = vshrl.u32 %v333, 7
        %v335 = vsub.s32 0, %v334
        %v336 = vrot.slane %v325, %v335
        %v337 = vlaneseq
        %v338 = vshrl.u32 %v337, 7
        %v339 = vsub.s32 2, %v338
        %v340 = vrot.slane %v325, %v339
        %v341 = vlaneseq
        %v342 = vshrl.u32 %v341, 7
        %v343 = vsub.s32 4, %v342
        %v344 = vrot.slane %v325, %v343
        %v345 = vlaneseq
        %v346 = vshrl.u32 %v345, 7
        %v347 = vsub.s32 6, %v346
        %v348 = vrot.slane %v325, %v347
        %v353 = vlaneseq
        %v354 = vshrl.u32 %v353, 7
        %v355 = vsub.s32 0, %v354
        %v356 = vrot.slane %v336, %v355
        %v357 = vlaneseq
        %v358 = vshrl.u32 %v357, 7
        %v359 = vsub.s32 0, %v358
        %v360 = vrot.slane %v340, %v359
        %v361 = vlaneseq
        %v362 = vshrl.u32 %v361, 7
        %v363 = vsub.s32 0, %v362
        %v364 = vrot.slane %v344, %v363
        %v365 = vlaneseq
        %v366 = vshrl.u32 %v365, 7
        %v367 = vsub.s32 0, %v366
        %v368 = vrot.slane %v348, %v367
        %v369 = vmul.f32 %v330, %v356
        %v370 = vmul.f32 %v330, %v360
        %v371 = vmul.f32 %v330, %v364
        %v372 = vmul.f32 %v330, %v368
        %v373 = vadd.f32 %v369, 0.0
        %v374 = vadd.f32 %v370, 0.0
        %v375 = vadd.f32 %v371, 0.0
        %v376 = vadd.f32 %v372, 0.0
        %377 = vset.pattern.permute.xlu0 1
        %378 = vperm.xlu0 %377, %v326
        %v379 = vpop.permute.xlu0 %378
        %v381 = vlaneseq
        %v382 = vshrl.u32 %v381, 7
        %v383 = vsub.s32 1, %v382
        %v384 = vrot.slane %v325, %v383
        %v385 = vlaneseq
        %v386 = vshrl.u32 %v385, 7
        %v387 = vsub.s32 3, %v386
        %v388 = vrot.slane %v325, %v387
        %v389 = vlaneseq
        %v390 = vshrl.u32 %v389, 7
        %v391 = vsub.s32 5, %v390
        %v392 = vrot.slane %v325, %v391
        %v393 = vlaneseq
        %v394 = vshrl.u32 %v393, 7
        %v395 = vsub.s32 7, %v394
        %v396 = vrot.slane %v325, %v395
        %v401 = vlaneseq
        %v402 = vshrl.u32 %v401, 7
        %v403 = vsub.s32 1, %v402
        %v404 = vrot.slane %v384, %v403
        %v405 = vlaneseq
        %v406 = vshrl.u32 %v405, 7
        %v407 = vsub.s32 1, %v406
        %v408 = vrot.slane %v388, %v407
        %v409 = vlaneseq
        %v410 = vshrl.u32 %v409, 7
        %v411 = vsub.s32 1, %v410
        %v412 = vrot.slane %v392, %v411
        %v413 = vlaneseq
        %v414 = vshrl.u32 %v413, 7
        %v415 = vsub.s32 1, %v414
        %v416 = vrot.slane %v396, %v415
        %v417 = vmul.f32 %v379, %v404
        %v418 = vmul.f32 %v379, %v408
        %v419 = vmul.f32 %v379, %v412
        %v420 = vmul.f32 %v379, %v416
        %v421 = vadd.f32 %v373, %v417
        %v422 = vadd.f32 %v374, %v418
        %v423 = vadd.f32 %v375, %v419
        %v424 = vadd.f32 %v376, %v420
        %s425 = scalar_lea.vmem %s276, 8 [#allocation2]
        %v426 = vld [vmem:[%s425] sm:$0xff]
        %s427 = scalar_lea.vmem %s2, 2
        %v428 = vld [vmem:[%s427] sm:$0x3]
        %430 = vset.pattern.permute.xlu0 0
        %431 = vperm.xlu0 %430, %v428
        %v432 = vpop.permute.xlu0 %431
        %v435 = vlaneseq
        %v436 = vshrl.u32 %v435, 7
        %v437 = vsub.s32 0, %v436
        %v438 = vrot.slane %v426, %v437
        %v439 = vlaneseq
        %v440 = vshrl.u32 %v439, 7
        %v441 = vsub.s32 2, %v440
        %v442 = vrot.slane %v426, %v441
        %v443 = vlaneseq
        %v444 = vshrl.u32 %v443, 7
        %v445 = vsub.s32 4, %v444
        %v446 = vrot.slane %v426, %v445
        %v447 = vlaneseq
        %v448 = vshrl.u32 %v447, 7
        %v449 = vsub.s32 6, %v448
        %v450 = vrot.slane %v426, %v449
        %v455 = vlaneseq
        %v456 = vshrl.u32 %v455, 7
        %v457 = vsub.s32 0, %v456
        %v458 = vrot.slane %v438, %v457
        %v459 = vlaneseq
        %v460 = vshrl.u32 %v459, 7
        %v461 = vsub.s32 0, %v460
        %v462 = vrot.slane %v442, %v461
        %v463 = vlaneseq
        %v464 = vshrl.u32 %v463, 7
        %v465 = vsub.s32 0, %v464
        %v466 = vrot.slane %v446, %v465
        %v467 = vlaneseq
        %v468 = vshrl.u32 %v467, 7
        %v469 = vsub.s32 0, %v468
        %v470 = vrot.slane %v450, %v469
        %v471 = vmul.f32 %v432, %v458
        %v472 = vmul.f32 %v432, %v462
        %v473 = vmul.f32 %v432, %v466
        %v474 = vmul.f32 %v432, %v470
        %v475 = vadd.f32 %v421, %v471
        %v476 = vadd.f32 %v422, %v472
        %v477 = vadd.f32 %v423, %v473
        %v478 = vadd.f32 %v424, %v474
        %479 = vset.pattern.permute.xlu0 1
        %480 = vperm.xlu0 %479, %v428
        %v481 = vpop.permute.xlu0 %480
        %v483 = vlaneseq
        %v484 = vshrl.u32 %v483, 7
        %v485 = vsub.s32 1, %v484
        %v486 = vrot.slane %v426, %v485
        %v487 = vlaneseq
        %v488 = vshrl.u32 %v487, 7
        %v489 = vsub.s32 3, %v488
        %v490 = vrot.slane %v426, %v489
        %v491 = vlaneseq
        %v492 = vshrl.u32 %v491, 7
        %v493 = vsub.s32 5, %v492
        %v494 = vrot.slane %v426, %v493
        %v495 = vlaneseq
        %v496 = vshrl.u32 %v495, 7
        %v497 = vsub.s32 7, %v496
        %v498 = vrot.slane %v426, %v497
        %v503 = vlaneseq
        %v504 = vshrl.u32 %v503, 7
        %v505 = vsub.s32 1, %v504
        %v506 = vrot.slane %v486, %v505
        %v507 = vlaneseq
        %v508 = vshrl.u32 %v507, 7
        %v509 = vsub.s32 1, %v508
        %v510 = vrot.slane %v490, %v509
        %v511 = vlaneseq
        %v512 = vshrl.u32 %v511, 7
        %v513 = vsub.s32 1, %v512
        %v514 = vrot.slane %v494, %v513
        %v515 = vlaneseq
        %v516 = vshrl.u32 %v515, 7
        %v517 = vsub.s32 1, %v516
        %v518 = vrot.slane %v498, %v517
        %v519 = vmul.f32 %v481, %v506
        %v520 = vmul.f32 %v481, %v510
        %v521 = vmul.f32 %v481, %v514
        %v522 = vmul.f32 %v481, %v518
        %v523 = vadd.f32 %v475, %v519
        %v524 = vadd.f32 %v476, %v520
        %v525 = vadd.f32 %v477, %v521
        %v526 = vadd.f32 %v478, %v522
        %s527 = scalar_lea.vmem %s276, 16 [#allocation2]
        %v528 = vld [vmem:[%s527] sm:$0xff]
        %s529 = scalar_lea.vmem %s2, 4
        %v530 = vld [vmem:[%s529] sm:$0x3]
        %532 = vset.pattern.permute.xlu0 0
        %533 = vperm.xlu0 %532, %v530
        %v534 = vpop.permute.xlu0 %533
        %v537 = vlaneseq
        %v538 = vshrl.u32 %v537, 7
        %v539 = vsub.s32 0, %v538
        %v540 = vrot.slane %v528, %v539
        %v541 = vlaneseq
        %v542 = vshrl.u32 %v541, 7
        %v543 = vsub.s32 2, %v542
        %v544 = vrot.slane %v528, %v543
        %v545 = vlaneseq
        %v546 = vshrl.u32 %v545, 7
        %v547 = vsub.s32 4, %v546
        %v548 = vrot.slane %v528, %v547
        %v549 = vlaneseq
        %v550 = vshrl.u32 %v549, 7
        %v551 = vsub.s32 6, %v550
        %v552 = vrot.slane %v528, %v551
        %v557 = vlaneseq
        %v558 = vshrl.u32 %v557, 7
        %v559 = vsub.s32 0, %v558
        %v560 = vrot.slane %v540, %v559
        %v561 = vlaneseq
        %v562 = vshrl.u32 %v561, 7
        %v563 = vsub.s32 0, %v562
        %v564 = vrot.slane %v544, %v563
        %v565 = vlaneseq
        %v566 = vshrl.u32 %v565, 7
        %v567 = vsub.s32 0, %v566
        %v568 = vrot.slane %v548, %v567
        %v569 = vlaneseq
        %v570 = vshrl.u32 %v569, 7
        %v571 = vsub.s32 0, %v570
        %v572 = vrot.slane %v552, %v571
        %v573 = vmul.f32 %v534, %v560
        %v574 = vmul.f32 %v534, %v564
        %v575 = vmul.f32 %v534, %v568
        %v576 = vmul.f32 %v534, %v572
        %v577 = vadd.f32 %v523, %v573
        %v578 = vadd.f32 %v524, %v574
        %v579 = vadd.f32 %v525, %v575
        %v580 = vadd.f32 %v526, %v576
        %581 = vset.pattern.permute.xlu0 1
        %582 = vperm.xlu0 %581, %v530
        %v583 = vpop.permute.xlu0 %582
        %v585 = vlaneseq
        %v586 = vshrl.u32 %v585, 7
        %v587 = vsub.s32 1, %v586
        %v588 = vrot.slane %v528, %v587
        %v589 = vlaneseq
        %v590 = vshrl.u32 %v589, 7
        %v591 = vsub.s32 3, %v590
        %v592 = vrot.slane %v528, %v591
        %v593 = vlaneseq
        %v594 = vshrl.u32 %v593, 7
        %v595 = vsub.s32 5, %v594
        %v596 = vrot.slane %v528, %v595
        %v597 = vlaneseq
        %v598 = vshrl.u32 %v597, 7
        %v599 = vsub.s32 7, %v598
        %v600 = vrot.slane %v528, %v599
        %v605 = vlaneseq
        %v606 = vshrl.u32 %v605, 7
        %v607 = vsub.s32 1, %v606
        %v608 = vrot.slane %v588, %v607
        %v609 = vlaneseq
        %v610 = vshrl.u32 %v609, 7
        %v611 = vsub.s32 1, %v610
        %v612 = vrot.slane %v592, %v611
        %v613 = vlaneseq
        %v614 = vshrl.u32 %v613, 7
        %v615 = vsub.s32 1, %v614
        %v616 = vrot.slane %v596, %v615
        %v617 = vlaneseq
        %v618 = vshrl.u32 %v617, 7
        %v619 = vsub.s32 1, %v618
        %v620 = vrot.slane %v600, %v619
        %v621 = vmul.f32 %v583, %v608
        %v622 = vmul.f32 %v583, %v612
        %v623 = vmul.f32 %v583, %v616
        %v624 = vmul.f32 %v583, %v620
        %v625 = vadd.f32 %v577, %v621
        %v626 = vadd.f32 %v578, %v622
        %v627 = vadd.f32 %v579, %v623
        %v628 = vadd.f32 %v580, %v624
        %s629 = scalar_lea.vmem %s276, 24 [#allocation2]
        %v630 = vld [vmem:[%s629] sm:$0xff]
        %s631 = scalar_lea.vmem %s2, 6
        %v632 = vld [vmem:[%s631] sm:$0x3]
        %634 = vset.pattern.permute.xlu0 0
        %635 = vperm.xlu0 %634, %v632
        %v636 = vpop.permute.xlu0 %635
        %v639 = vlaneseq
        %v640 = vshrl.u32 %v639, 7
        %v641 = vsub.s32 0, %v640
        %v642 = vrot.slane %v630, %v641
        %v643 = vlaneseq
        %v644 = vshrl.u32 %v643, 7
        %v645 = vsub.s32 2, %v644
        %v646 = vrot.slane %v630, %v645
        %v647 = vlaneseq
        %v648 = vshrl.u32 %v647, 7
        %v649 = vsub.s32 4, %v648
        %v650 = vrot.slane %v630, %v649
        %v651 = vlaneseq
        %v652 = vshrl.u32 %v651, 7
        %v653 = vsub.s32 6, %v652
        %v654 = vrot.slane %v630, %v653
        %v659 = vlaneseq
        %v660 = vshrl.u32 %v659, 7
        %v661 = vsub.s32 0, %v660
        %v662 = vrot.slane %v642, %v661
        %v663 = vlaneseq
        %v664 = vshrl.u32 %v663, 7
        %v665 = vsub.s32 0, %v664
        %v666 = vrot.slane %v646, %v665
        %v667 = vlaneseq
        %v668 = vshrl.u32 %v667, 7
        %v669 = vsub.s32 0, %v668
        %v670 = vrot.slane %v650, %v669
        %v671 = vlaneseq
        %v672 = vshrl.u32 %v671, 7
        %v673 = vsub.s32 0, %v672
        %v674 = vrot.slane %v654, %v673
        %v675 = vmul.f32 %v636, %v662
        %v676 = vmul.f32 %v636, %v666
        %v677 = vmul.f32 %v636, %v670
        %v678 = vmul.f32 %v636, %v674
        %v679 = vadd.f32 %v625, %v675
        %v680 = vadd.f32 %v626, %v676
        %v681 = vadd.f32 %v627, %v677
        %v682 = vadd.f32 %v628, %v678
        %683 = vset.pattern.permute.xlu0 1
        %684 = vperm.xlu0 %683, %v632
        %v685 = vpop.permute.xlu0 %684
        %v687 = vlaneseq
        %v688 = vshrl.u32 %v687, 7
        %v689 = vsub.s32 1, %v688
        %v690 = vrot.slane %v630, %v689
        %v691 = vlaneseq
        %v692 = vshrl.u32 %v691, 7
        %v693 = vsub.s32 3, %v692
        %v694 = vrot.slane %v630, %v693
        %v695 = vlaneseq
        %v696 = vshrl.u32 %v695, 7
        %v697 = vsub.s32 5, %v696
        %v698 = vrot.slane %v630, %v697
        %v699 = vlaneseq
        %v700 = vshrl.u32 %v699, 7
        %v701 = vsub.s32 7, %v700
        %v702 = vrot.slane %v630, %v701
        %v707 = vlaneseq
        %v708 = vshrl.u32 %v707, 7
        %v709 = vsub.s32 1, %v708
        %v710 = vrot.slane %v690, %v709
        %v711 = vlaneseq
        %v712 = vshrl.u32 %v711, 7
        %v713 = vsub.s32 1, %v712
        %v714 = vrot.slane %v694, %v713
        %v715 = vlaneseq
        %v716 = vshrl.u32 %v715, 7
        %v717 = vsub.s32 1, %v716
        %v718 = vrot.slane %v698, %v717
        %v719 = vlaneseq
        %v720 = vshrl.u32 %v719, 7
        %v721 = vsub.s32 1, %v720
        %v722 = vrot.slane %v702, %v721
        %v723 = vmul.f32 %v685, %v710
        %v724 = vmul.f32 %v685, %v714
        %v725 = vmul.f32 %v685, %v718
        %v726 = vmul.f32 %v685, %v722
        %v727 = vadd.f32 %v679, %v723
        %v728 = vadd.f32 %v680, %v724
        %v729 = vadd.f32 %v681, %v725
        %v730 = vadd.f32 %v682, %v726
        %s731 = scalar_lea.vmem %s276, 32 [#allocation2]
        %v732 = vld [vmem:[%s731] sm:$0xff]
        %s733 = scalar_lea.vmem %s2, 8
        %v734 = vld [vmem:[%s733] sm:$0x3]
        %736 = vset.pattern.permute.xlu0 0
        %737 = vperm.xlu0 %736, %v734
        %v738 = vpop.permute.xlu0 %737
        %v741 = vlaneseq
        %v742 = vshrl.u32 %v741, 7
        %v743 = vsub.s32 0, %v742
        %v744 = vrot.slane %v732, %v743
        %v745 = vlaneseq
        %v746 = vshrl.u32 %v745, 7
        %v747 = vsub.s32 2, %v746
        %v748 = vrot.slane %v732, %v747
        %v749 = vlaneseq
        %v750 = vshrl.u32 %v749, 7
        %v751 = vsub.s32 4, %v750
        %v752 = vrot.slane %v732, %v751
        %v753 = vlaneseq
        %v754 = vshrl.u32 %v753, 7
        %v755 = vsub.s32 6, %v754
        %v756 = vrot.slane %v732, %v755
        %v761 = vlaneseq
        %v762 = vshrl.u32 %v761, 7
        %v763 = vsub.s32 0, %v762
        %v764 = vrot.slane %v744, %v763
        %v765 = vlaneseq
        %v766 = vshrl.u32 %v765, 7
        %v767 = vsub.s32 0, %v766
        %v768 = vrot.slane %v748, %v767
        %v769 = vlaneseq
        %v770 = vshrl.u32 %v769, 7
        %v771 = vsub.s32 0, %v770
        %v772 = vrot.slane %v752, %v771
        %v773 = vlaneseq
        %v774 = vshrl.u32 %v773, 7
        %v775 = vsub.s32 0, %v774
        %v776 = vrot.slane %v756, %v775
        %v777 = vmul.f32 %v738, %v764
        %v778 = vmul.f32 %v738, %v768
        %v779 = vmul.f32 %v738, %v772
        %v780 = vmul.f32 %v738, %v776
        %v781 = vadd.f32 %v727, %v777
        %v782 = vadd.f32 %v728, %v778
        %v783 = vadd.f32 %v729, %v779
        %v784 = vadd.f32 %v730, %v780
        %785 = vset.pattern.permute.xlu0 1
        %786 = vperm.xlu0 %785, %v734
        %v787 = vpop.permute.xlu0 %786
        %v789 = vlaneseq
        %v790 = vshrl.u32 %v789, 7
        %v791 = vsub.s32 1, %v790
        %v792 = vrot.slane %v732, %v791
        %v793 = vlaneseq
        %v794 = vshrl.u32 %v793, 7
        %v795 = vsub.s32 3, %v794
        %v796 = vrot.slane %v732, %v795
        %v797 = vlaneseq
        %v798 = vshrl.u32 %v797, 7
        %v799 = vsub.s32 5, %v798
        %v800 = vrot.slane %v732, %v799
        %v801 = vlaneseq
        %v802 = vshrl.u32 %v801, 7
        %v803 = vsub.s32 7, %v802
        %v804 = vrot.slane %v732, %v803
        %v809 = vlaneseq
        %v810 = vshrl.u32 %v809, 7
        %v811 = vsub.s32 1, %v810
        %v812 = vrot.slane %v792, %v811
        %v813 = vlaneseq
        %v814 = vshrl.u32 %v813, 7
        %v815 = vsub.s32 1, %v814
        %v816 = vrot.slane %v796, %v815
        %v817 = vlaneseq
        %v818 = vshrl.u32 %v817, 7
        %v819 = vsub.s32 1, %v818
        %v820 = vrot.slane %v800, %v819
        %v821 = vlaneseq
        %v822 = vshrl.u32 %v821, 7
        %v823 = vsub.s32 1, %v822
        %v824 = vrot.slane %v804, %v823
        %v825 = vmul.f32 %v787, %v812
        %v826 = vmul.f32 %v787, %v816
        %v827 = vmul.f32 %v787, %v820
        %v828 = vmul.f32 %v787, %v824
        %v829 = vadd.f32 %v781, %v825
        %v830 = vadd.f32 %v782, %v826
        %v831 = vadd.f32 %v783, %v827
        %v832 = vadd.f32 %v784, %v828
        %s833 = scalar_lea.vmem %s276, 40 [#allocation2]
        %v834 = vld [vmem:[%s833] sm:$0xff]
        %s835 = scalar_lea.vmem %s2, 10
        %v836 = vld [vmem:[%s835] sm:$0x3]
        %838 = vset.pattern.permute.xlu0 0
        %839 = vperm.xlu0 %838, %v836
        %v840 = vpop.permute.xlu0 %839
        %v843 = vlaneseq
        %v844 = vshrl.u32 %v843, 7
        %v845 = vsub.s32 0, %v844
        %v846 = vrot.slane %v834, %v845
        %v847 = vlaneseq
        %v848 = vshrl.u32 %v847, 7
        %v849 = vsub.s32 2, %v848
        %v850 = vrot.slane %v834, %v849
        %v851 = vlaneseq
        %v852 = vshrl.u32 %v851, 7
        %v853 = vsub.s32 4, %v852
        %v854 = vrot.slane %v834, %v853
        %v855 = vlaneseq
        %v856 = vshrl.u32 %v855, 7
        %v857 = vsub.s32 6, %v856
        %v858 = vrot.slane %v834, %v857
        %v863 = vlaneseq
        %v864 = vshrl.u32 %v863, 7
        %v865 = vsub.s32 0, %v864
        %v866 = vrot.slane %v846, %v865
        %v867 = vlaneseq
        %v868 = vshrl.u32 %v867, 7
        %v869 = vsub.s32 0, %v868
        %v870 = vrot.slane %v850, %v869
        %v871 = vlaneseq
        %v872 = vshrl.u32 %v871, 7
        %v873 = vsub.s32 0, %v872
        %v874 = vrot.slane %v854, %v873
        %v875 = vlaneseq
        %v876 = vshrl.u32 %v875, 7
        %v877 = vsub.s32 0, %v876
        %v878 = vrot.slane %v858, %v877
        %v879 = vmul.f32 %v840, %v866
        %v880 = vmul.f32 %v840, %v870
        %v881 = vmul.f32 %v840, %v874
        %v882 = vmul.f32 %v840, %v878
        %v883 = vadd.f32 %v829, %v879
        %v884 = vadd.f32 %v830, %v880
        %v885 = vadd.f32 %v831, %v881
        %v886 = vadd.f32 %v832, %v882
        %887 = vset.pattern.permute.xlu0 1
        %888 = vperm.xlu0 %887, %v836
        %v889 = vpop.permute.xlu0 %888
        %v891 = vlaneseq
        %v892 = vshrl.u32 %v891, 7
        %v893 = vsub.s32 1, %v892
        %v894 = vrot.slane %v834, %v893
        %v895 = vlaneseq
        %v896 = vshrl.u32 %v895, 7
        %v897 = vsub.s32 3, %v896
        %v898 = vrot.slane %v834, %v897
        %v899 = vlaneseq
        %v900 = vshrl.u32 %v899, 7
        %v901 = vsub.s32 5, %v900
        %v902 = vrot.slane %v834, %v901
        %v903 = vlaneseq
        %v904 = vshrl.u32 %v903, 7
        %v905 = vsub.s32 7, %v904
        %v906 = vrot.slane %v834, %v905
        %v911 = vlaneseq
        %v912 = vshrl.u32 %v911, 7
        %v913 = vsub.s32 1, %v912
        %v914 = vrot.slane %v894, %v913
        %v915 = vlaneseq
        %v916 = vshrl.u32 %v915, 7
        %v917 = vsub.s32 1, %v916
        %v918 = vrot.slane %v898, %v917
        %v919 = vlaneseq
        %v920 = vshrl.u32 %v919, 7
        %v921 = vsub.s32 1, %v920
        %v922 = vrot.slane %v902, %v921
        %v923 = vlaneseq
        %v924 = vshrl.u32 %v923, 7
        %v925 = vsub.s32 1, %v924
        %v926 = vrot.slane %v906, %v925
        %v927 = vmul.f32 %v889, %v914
        %v928 = vmul.f32 %v889, %v918
        %v929 = vmul.f32 %v889, %v922
        %v930 = vmul.f32 %v889, %v926
        %v931 = vadd.f32 %v883, %v927
        %v932 = vadd.f32 %v884, %v928
        %v933 = vadd.f32 %v885, %v929
        %v934 = vadd.f32 %v886, %v930
        %s935 = scalar_lea.vmem %s276, 48 [#allocation2]
        %v936 = vld [vmem:[%s935] sm:$0xff]
        %s937 = scalar_lea.vmem %s2, 12
        %v938 = vld [vmem:[%s937] sm:$0x3]
        %940 = vset.pattern.permute.xlu0 0
        %941 = vperm.xlu0 %940, %v938
        %v942 = vpop.permute.xlu0 %941
        %v945 = vlaneseq
        %v946 = vshrl.u32 %v945, 7
        %v947 = vsub.s32 0, %v946
        %v948 = vrot.slane %v936, %v947
        %v949 = vlaneseq
        %v950 = vshrl.u32 %v949, 7
        %v951 = vsub.s32 2, %v950
        %v952 = vrot.slane %v936, %v951
        %v953 = vlaneseq
        %v954 = vshrl.u32 %v953, 7
        %v955 = vsub.s32 4, %v954
        %v956 = vrot.slane %v936, %v955
        %v957 = vlaneseq
        %v958 = vshrl.u32 %v957, 7
        %v959 = vsub.s32 6, %v958
        %v960 = vrot.slane %v936, %v959
        %v965 = vlaneseq
        %v966 = vshrl.u32 %v965, 7
        %v967 = vsub.s32 0, %v966
        %v968 = vrot.slane %v948, %v967
        %v969 = vlaneseq
        %v970 = vshrl.u32 %v969, 7
        %v971 = vsub.s32 0, %v970
        %v972 = vrot.slane %v952, %v971
        %v973 = vlaneseq
        %v974 = vshrl.u32 %v973, 7
        %v975 = vsub.s32 0, %v974
        %v976 = vrot.slane %v956, %v975
        %v977 = vlaneseq
        %v978 = vshrl.u32 %v977, 7
        %v979 = vsub.s32 0, %v978
        %v980 = vrot.slane %v960, %v979
        %v981 = vmul.f32 %v942, %v968
        %v982 = vmul.f32 %v942, %v972
        %v983 = vmul.f32 %v942, %v976
        %v984 = vmul.f32 %v942, %v980
        %v985 = vadd.f32 %v931, %v981
        %v986 = vadd.f32 %v932, %v982
        %v987 = vadd.f32 %v933, %v983
        %v988 = vadd.f32 %v934, %v984
        %989 = vset.pattern.permute.xlu0 1
        %990 = vperm.xlu0 %989, %v938
        %v991 = vpop.permute.xlu0 %990
        %v993 = vlaneseq
        %v994 = vshrl.u32 %v993, 7
        %v995 = vsub.s32 1, %v994
        %v996 = vrot.slane %v936, %v995
        %v997 = vlaneseq
        %v998 = vshrl.u32 %v997, 7
        %v999 = vsub.s32 3, %v998
        %v1000 = vrot.slane %v936, %v999
        %v1001 = vlaneseq
        %v1002 = vshrl.u32 %v1001, 7
        %v1003 = vsub.s32 5, %v1002
        %v1004 = vrot.slane %v936, %v1003
        %v1005 = vlaneseq
        %v1006 = vshrl.u32 %v1005, 7
        %v1007 = vsub.s32 7, %v1006
        %v1008 = vrot.slane %v936, %v1007
        %v1013 = vlaneseq
        %v1014 = vshrl.u32 %v1013, 7
        %v1015 = vsub.s32 1, %v1014
        %v1016 = vrot.slane %v996, %v1015
        %v1017 = vlaneseq
        %v1018 = vshrl.u32 %v1017, 7
        %v1019 = vsub.s32 1, %v1018
        %v1020 = vrot.slane %v1000, %v1019
        %v1021 = vlaneseq
        %v1022 = vshrl.u32 %v1021, 7
        %v1023 = vsub.s32 1, %v1022
        %v1024 = vrot.slane %v1004, %v1023
        %v1025 = vlaneseq
        %v1026 = vshrl.u32 %v1025, 7
        %v1027 = vsub.s32 1, %v1026
        %v1028 = vrot.slane %v1008, %v1027
        %v1029 = vmul.f32 %v991, %v1016
        %v1030 = vmul.f32 %v991, %v1020
        %v1031 = vmul.f32 %v991, %v1024
        %v1032 = vmul.f32 %v991, %v1028
        %v1033 = vadd.f32 %v985, %v1029
        %v1034 = vadd.f32 %v986, %v1030
        %v1035 = vadd.f32 %v987, %v1031
        %v1036 = vadd.f32 %v988, %v1032
        %s1037 = scalar_lea.vmem %s276, 56 [#allocation2]
        %v1038 = vld [vmem:[%s1037] sm:$0xff]
        %s1039 = scalar_lea.vmem %s2, 14
        %v1040 = vld [vmem:[%s1039] sm:$0x3]
        %1042 = vset.pattern.permute.xlu0 0
        %1043 = vperm.xlu0 %1042, %v1040
        %v1044 = vpop.permute.xlu0 %1043
        %v1047 = vlaneseq
        %v1048 = vshrl.u32 %v1047, 7
        %v1049 = vsub.s32 0, %v1048
        %v1050 = vrot.slane %v1038, %v1049
        %v1051 = vlaneseq
        %v1052 = vshrl.u32 %v1051, 7
        %v1053 = vsub.s32 2, %v1052
        %v1054 = vrot.slane %v1038, %v1053
        %v1055 = vlaneseq
        %v1056 = vshrl.u32 %v1055, 7
        %v1057 = vsub.s32 4, %v1056
        %v1058 = vrot.slane %v1038, %v1057
        %v1059 = vlaneseq
        %v1060 = vshrl.u32 %v1059, 7
        %v1061 = vsub.s32 6, %v1060
        %v1062 = vrot.slane %v1038, %v1061
        %v1067 = vlaneseq
        %v1068 = vshrl.u32 %v1067, 7
        %v1069 = vsub.s32 0, %v1068
        %v1070 = vrot.slane %v1050, %v1069
        %v1071 = vlaneseq
        %v1072 = vshrl.u32 %v1071, 7
        %v1073 = vsub.s32 0, %v1072
        %v1074 = vrot.slane %v1054, %v1073
        %v1075 = vlaneseq
        %v1076 = vshrl.u32 %v1075, 7
        %v1077 = vsub.s32 0, %v1076
        %v1078 = vrot.slane %v1058, %v1077
        %v1079 = vlaneseq
        %v1080 = vshrl.u32 %v1079, 7
        %v1081 = vsub.s32 0, %v1080
        %v1082 = vrot.slane %v1062, %v1081
        %v1083 = vmul.f32 %v1044, %v1070
        %v1084 = vmul.f32 %v1044, %v1074
        %v1085 = vmul.f32 %v1044, %v1078
        %v1086 = vmul.f32 %v1044, %v1082
        %v1087 = vadd.f32 %v1033, %v1083
        %v1088 = vadd.f32 %v1034, %v1084
        %v1089 = vadd.f32 %v1035, %v1085
        %v1090 = vadd.f32 %v1036, %v1086
        %1091 = vset.pattern.permute.xlu0 1
        %1092 = vperm.xlu0 %1091, %v1040
        %v1093 = vpop.permute.xlu0 %1092
        %v1095 = vlaneseq
        %v1096 = vshrl.u32 %v1095, 7
        %v1097 = vsub.s32 1, %v1096
        %v1098 = vrot.slane %v1038, %v1097
        %v1099 = vlaneseq
        %v1100 = vshrl.u32 %v1099, 7
        %v1101 = vsub.s32 3, %v1100
        %v1102 = vrot.slane %v1038, %v1101
        %v1103 = vlaneseq
        %v1104 = vshrl.u32 %v1103, 7
        %v1105 = vsub.s32 5, %v1104
        %v1106 = vrot.slane %v1038, %v1105
        %v1107 = vlaneseq
        %v1108 = vshrl.u32 %v1107, 7
        %v1109 = vsub.s32 7, %v1108
        %v1110 = vrot.slane %v1038, %v1109
        %v1115 = vlaneseq
        %v1116 = vshrl.u32 %v1115, 7
        %v1117 = vsub.s32 1, %v1116
        %v1118 = vrot.slane %v1098, %v1117
        %v1119 = vlaneseq
        %v1120 = vshrl.u32 %v1119, 7
        %v1121 = vsub.s32 1, %v1120
        %v1122 = vrot.slane %v1102, %v1121
        %v1123 = vlaneseq
        %v1124 = vshrl.u32 %v1123, 7
        %v1125 = vsub.s32 1, %v1124
        %v1126 = vrot.slane %v1106, %v1125
        %v1127 = vlaneseq
        %v1128 = vshrl.u32 %v1127, 7
        %v1129 = vsub.s32 1, %v1128
        %v1130 = vrot.slane %v1110, %v1129
        %v1131 = vmul.f32 %v1093, %v1118
        %v1132 = vmul.f32 %v1093, %v1122
        %v1133 = vmul.f32 %v1093, %v1126
        %v1134 = vmul.f32 %v1093, %v1130
        %v1135 = vadd.f32 %v1087, %v1131
        %v1136 = vadd.f32 %v1088, %v1132
        %v1137 = vadd.f32 %v1089, %v1133
        %v1138 = vadd.f32 %v1090, %v1134
        %s1139 = scalar_lea.vmem %s276, 64 [#allocation2]
        %v1140 = vld [vmem:[%s1139] sm:$0xff]
        %s1141 = scalar_lea.vmem %s2, 16
        %v1142 = vld [vmem:[%s1141] sm:$0x3]
        %1144 = vset.pattern.permute.xlu0 0
        %1145 = vperm.xlu0 %1144, %v1142
        %v1146 = vpop.permute.xlu0 %1145
        %v1149 = vlaneseq
        %v1150 = vshrl.u32 %v1149, 7
        %v1151 = vsub.s32 0, %v1150
        %v1152 = vrot.slane %v1140, %v1151
        %v1153 = vlaneseq
        %v1154 = vshrl.u32 %v1153, 7
        %v1155 = vsub.s32 2, %v1154
        %v1156 = vrot.slane %v1140, %v1155
        %v1157 = vlaneseq
        %v1158 = vshrl.u32 %v1157, 7
        %v1159 = vsub.s32 4, %v1158
        %v1160 = vrot.slane %v1140, %v1159
        %v1161 = vlaneseq
        %v1162 = vshrl.u32 %v1161, 7
        %v1163 = vsub.s32 6, %v1162
        %v1164 = vrot.slane %v1140, %v1163
        %v1169 = vlaneseq
        %v1170 = vshrl.u32 %v1169, 7
        %v1171 = vsub.s32 0, %v1170
        %v1172 = vrot.slane %v1152, %v1171
        %v1173 = vlaneseq
        %v1174 = vshrl.u32 %v1173, 7
        %v1175 = vsub.s32 0, %v1174
        %v1176 = vrot.slane %v1156, %v1175
        %v1177 = vlaneseq
        %v1178 = vshrl.u32 %v1177, 7
        %v1179 = vsub.s32 0, %v1178
        %v1180 = vrot.slane %v1160, %v1179
        %v1181 = vlaneseq
        %v1182 = vshrl.u32 %v1181, 7
        %v1183 = vsub.s32 0, %v1182
        %v1184 = vrot.slane %v1164, %v1183
        %v1185 = vmul.f32 %v1146, %v1172
        %v1186 = vmul.f32 %v1146, %v1176
        %v1187 = vmul.f32 %v1146, %v1180
        %v1188 = vmul.f32 %v1146, %v1184
        %v1189 = vadd.f32 %v1135, %v1185
        %v1190 = vadd.f32 %v1136, %v1186
        %v1191 = vadd.f32 %v1137, %v1187
        %v1192 = vadd.f32 %v1138, %v1188
        %1193 = vset.pattern.permute.xlu0 1
        %1194 = vperm.xlu0 %1193, %v1142
        %v1195 = vpop.permute.xlu0 %1194
        %v1197 = vlaneseq
        %v1198 = vshrl.u32 %v1197, 7
        %v1199 = vsub.s32 1, %v1198
        %v1200 = vrot.slane %v1140, %v1199
        %v1201 = vlaneseq
        %v1202 = vshrl.u32 %v1201, 7
        %v1203 = vsub.s32 3, %v1202
        %v1204 = vrot.slane %v1140, %v1203
        %v1205 = vlaneseq
        %v1206 = vshrl.u32 %v1205, 7
        %v1207 = vsub.s32 5, %v1206
        %v1208 = vrot.slane %v1140, %v1207
        %v1209 = vlaneseq
        %v1210 = vshrl.u32 %v1209, 7
        %v1211 = vsub.s32 7, %v1210
        %v1212 = vrot.slane %v1140, %v1211
        %v1217 = vlaneseq
        %v1218 = vshrl.u32 %v1217, 7
        %v1219 = vsub.s32 1, %v1218
        %v1220 = vrot.slane %v1200, %v1219
        %v1221 = vlaneseq
        %v1222 = vshrl.u32 %v1221, 7
        %v1223 = vsub.s32 1, %v1222
        %v1224 = vrot.slane %v1204, %v1223
        %v1225 = vlaneseq
        %v1226 = vshrl.u32 %v1225, 7
        %v1227 = vsub.s32 1, %v1226
        %v1228 = vrot.slane %v1208, %v1227
        %v1229 = vlaneseq
        %v1230 = vshrl.u32 %v1229, 7
        %v1231 = vsub.s32 1, %v1230
        %v1232 = vrot.slane %v1212, %v1231
        %v1233 = vmul.f32 %v1195, %v1220
        %v1234 = vmul.f32 %v1195, %v1224
        %v1235 = vmul.f32 %v1195, %v1228
        %v1236 = vmul.f32 %v1195, %v1232
        %v1237 = vadd.f32 %v1189, %v1233
        %v1238 = vadd.f32 %v1190, %v1234
        %v1239 = vadd.f32 %v1191, %v1235
        %v1240 = vadd.f32 %v1192, %v1236
        %s1241 = scalar_lea.vmem %s276, 72 [#allocation2]
        %v1242 = vld [vmem:[%s1241] sm:$0xff]
        %s1243 = scalar_lea.vmem %s2, 18
        %v1244 = vld [vmem:[%s1243] sm:$0x3]
        %1246 = vset.pattern.permute.xlu0 0
        %1247 = vperm.xlu0 %1246, %v1244
        %v1248 = vpop.permute.xlu0 %1247
        %v1251 = vlaneseq
        %v1252 = vshrl.u32 %v1251, 7
        %v1253 = vsub.s32 0, %v1252
        %v1254 = vrot.slane %v1242, %v1253
        %v1255 = vlaneseq
        %v1256 = vshrl.u32 %v1255, 7
        %v1257 = vsub.s32 2, %v1256
        %v1258 = vrot.slane %v1242, %v1257
        %v1259 = vlaneseq
        %v1260 = vshrl.u32 %v1259, 7
        %v1261 = vsub.s32 4, %v1260
        %v1262 = vrot.slane %v1242, %v1261
        %v1263 = vlaneseq
        %v1264 = vshrl.u32 %v1263, 7
        %v1265 = vsub.s32 6, %v1264
        %v1266 = vrot.slane %v1242, %v1265
        %v1271 = vlaneseq
        %v1272 = vshrl.u32 %v1271, 7
        %v1273 = vsub.s32 0, %v1272
        %v1274 = vrot.slane %v1254, %v1273
        %v1275 = vlaneseq
        %v1276 = vshrl.u32 %v1275, 7
        %v1277 = vsub.s32 0, %v1276
        %v1278 = vrot.slane %v1258, %v1277
        %v1279 = vlaneseq
        %v1280 = vshrl.u32 %v1279, 7
        %v1281 = vsub.s32 0, %v1280
        %v1282 = vrot.slane %v1262, %v1281
        %v1283 = vlaneseq
        %v1284 = vshrl.u32 %v1283, 7
        %v1285 = vsub.s32 0, %v1284
        %v1286 = vrot.slane %v1266, %v1285
        %v1287 = vmul.f32 %v1248, %v1274
        %v1288 = vmul.f32 %v1248, %v1278
        %v1289 = vmul.f32 %v1248, %v1282
        %v1290 = vmul.f32 %v1248, %v1286
        %v1291 = vadd.f32 %v1237, %v1287
        %v1292 = vadd.f32 %v1238, %v1288
        %v1293 = vadd.f32 %v1239, %v1289
        %v1294 = vadd.f32 %v1240, %v1290
        %1295 = vset.pattern.permute.xlu0 1
        %1296 = vperm.xlu0 %1295, %v1244
        %v1297 = vpop.permute.xlu0 %1296
        %v1299 = vlaneseq
        %v1300 = vshrl.u32 %v1299, 7
        %v1301 = vsub.s32 1, %v1300
        %v1302 = vrot.slane %v1242, %v1301
        %v1303 = vlaneseq
        %v1304 = vshrl.u32 %v1303, 7
        %v1305 = vsub.s32 3, %v1304
        %v1306 = vrot.slane %v1242, %v1305
        %v1307 = vlaneseq
        %v1308 = vshrl.u32 %v1307, 7
        %v1309 = vsub.s32 5, %v1308
        %v1310 = vrot.slane %v1242, %v1309
        %v1311 = vlaneseq
        %v1312 = vshrl.u32 %v1311, 7
        %v1313 = vsub.s32 7, %v1312
        %v1314 = vrot.slane %v1242, %v1313
        %v1319 = vlaneseq
        %v1320 = vshrl.u32 %v1319, 7
        %v1321 = vsub.s32 1, %v1320
        %v1322 = vrot.slane %v1302, %v1321
        %v1323 = vlaneseq
        %v1324 = vshrl.u32 %v1323, 7
        %v1325 = vsub.s32 1, %v1324
        %v1326 = vrot.slane %v1306, %v1325
        %v1327 = vlaneseq
        %v1328 = vshrl.u32 %v1327, 7
        %v1329 = vsub.s32 1, %v1328
        %v1330 = vrot.slane %v1310, %v1329
        %v1331 = vlaneseq
        %v1332 = vshrl.u32 %v1331, 7
        %v1333 = vsub.s32 1, %v1332
        %v1334 = vrot.slane %v1314, %v1333
        %v1335 = vmul.f32 %v1297, %v1322
        %v1336 = vmul.f32 %v1297, %v1326
        %v1337 = vmul.f32 %v1297, %v1330
        %v1338 = vmul.f32 %v1297, %v1334
        %v1339 = vadd.f32 %v1291, %v1335
        %v1340 = vadd.f32 %v1292, %v1336
        %v1341 = vadd.f32 %v1293, %v1337
        %v1342 = vadd.f32 %v1294, %v1338
        %s1343 = scalar_lea.vmem %s276, 80 [#allocation2]
        %v1344 = vld [vmem:[%s1343] sm:$0xff]
        %s1345 = scalar_lea.vmem %s2, 20
        %v1346 = vld [vmem:[%s1345] sm:$0x3]
        %1348 = vset.pattern.permute.xlu0 0
        %1349 = vperm.xlu0 %1348, %v1346
        %v1350 = vpop.permute.xlu0 %1349
        %v1353 = vlaneseq
        %v1354 = vshrl.u32 %v1353, 7
        %v1355 = vsub.s32 0, %v1354
        %v1356 = vrot.slane %v1344, %v1355
        %v1357 = vlaneseq
        %v1358 = vshrl.u32 %v1357, 7
        %v1359 = vsub.s32 2, %v1358
        %v1360 = vrot.slane %v1344, %v1359
        %v1361 = vlaneseq
        %v1362 = vshrl.u32 %v1361, 7
        %v1363 = vsub.s32 4, %v1362
        %v1364 = vrot.slane %v1344, %v1363
        %v1365 = vlaneseq
        %v1366 = vshrl.u32 %v1365, 7
        %v1367 = vsub.s32 6, %v1366
        %v1368 = vrot.slane %v1344, %v1367
        %v1373 = vlaneseq
        %v1374 = vshrl.u32 %v1373, 7
        %v1375 = vsub.s32 0, %v1374
        %v1376 = vrot.slane %v1356, %v1375
        %v1377 = vlaneseq
        %v1378 = vshrl.u32 %v1377, 7
        %v1379 = vsub.s32 0, %v1378
        %v1380 = vrot.slane %v1360, %v1379
        %v1381 = vlaneseq
        %v1382 = vshrl.u32 %v1381, 7
        %v1383 = vsub.s32 0, %v1382
        %v1384 = vrot.slane %v1364, %v1383
        %v1385 = vlaneseq
        %v1386 = vshrl.u32 %v1385, 7
        %v1387 = vsub.s32 0, %v1386
        %v1388 = vrot.slane %v1368, %v1387
        %v1389 = vmul.f32 %v1350, %v1376
        %v1390 = vmul.f32 %v1350, %v1380
        %v1391 = vmul.f32 %v1350, %v1384
        %v1392 = vmul.f32 %v1350, %v1388
        %v1393 = vadd.f32 %v1339, %v1389
        %v1394 = vadd.f32 %v1340, %v1390
        %v1395 = vadd.f32 %v1341, %v1391
        %v1396 = vadd.f32 %v1342, %v1392
        %1397 = vset.pattern.permute.xlu0 1
        %1398 = vperm.xlu0 %1397, %v1346
        %v1399 = vpop.permute.xlu0 %1398
        %v1401 = vlaneseq
        %v1402 = vshrl.u32 %v1401, 7
        %v1403 = vsub.s32 1, %v1402
        %v1404 = vrot.slane %v1344, %v1403
        %v1405 = vlaneseq
        %v1406 = vshrl.u32 %v1405, 7
        %v1407 = vsub.s32 3, %v1406
        %v1408 = vrot.slane %v1344, %v1407
        %v1409 = vlaneseq
        %v1410 = vshrl.u32 %v1409, 7
        %v1411 = vsub.s32 5, %v1410
        %v1412 = vrot.slane %v1344, %v1411
        %v1413 = vlaneseq
        %v1414 = vshrl.u32 %v1413, 7
        %v1415 = vsub.s32 7, %v1414
        %v1416 = vrot.slane %v1344, %v1415
        %v1421 = vlaneseq
        %v1422 = vshrl.u32 %v1421, 7
        %v1423 = vsub.s32 1, %v1422
        %v1424 = vrot.slane %v1404, %v1423
        %v1425 = vlaneseq
        %v1426 = vshrl.u32 %v1425, 7
        %v1427 = vsub.s32 1, %v1426
        %v1428 = vrot.slane %v1408, %v1427
        %v1429 = vlaneseq
        %v1430 = vshrl.u32 %v1429, 7
        %v1431 = vsub.s32 1, %v1430
        %v1432 = vrot.slane %v1412, %v1431
        %v1433 = vlaneseq
        %v1434 = vshrl.u32 %v1433, 7
        %v1435 = vsub.s32 1, %v1434
        %v1436 = vrot.slane %v1416, %v1435
        %v1437 = vmul.f32 %v1399, %v1424
        %v1438 = vmul.f32 %v1399, %v1428
        %v1439 = vmul.f32 %v1399, %v1432
        %v1440 = vmul.f32 %v1399, %v1436
        %v1441 = vadd.f32 %v1393, %v1437
        %v1442 = vadd.f32 %v1394, %v1438
        %v1443 = vadd.f32 %v1395, %v1439
        %v1444 = vadd.f32 %v1396, %v1440
        %s1445 = scalar_lea.vmem %s276, 88 [#allocation2]
        %v1446 = vld [vmem:[%s1445] sm:$0xff]
        %s1447 = scalar_lea.vmem %s2, 22
        %v1448 = vld [vmem:[%s1447] sm:$0x3]
        %1450 = vset.pattern.permute.xlu0 0
        %1451 = vperm.xlu0 %1450, %v1448
        %v1452 = vpop.permute.xlu0 %1451
        %v1455 = vlaneseq
        %v1456 = vshrl.u32 %v1455, 7
        %v1457 = vsub.s32 0, %v1456
        %v1458 = vrot.slane %v1446, %v1457
        %v1459 = vlaneseq
        %v1460 = vshrl.u32 %v1459, 7
        %v1461 = vsub.s32 2, %v1460
        %v1462 = vrot.slane %v1446, %v1461
        %v1463 = vlaneseq
        %v1464 = vshrl.u32 %v1463, 7
        %v1465 = vsub.s32 4, %v1464
        %v1466 = vrot.slane %v1446, %v1465
        %v1467 = vlaneseq
        %v1468 = vshrl.u32 %v1467, 7
        %v1469 = vsub.s32 6, %v1468
        %v1470 = vrot.slane %v1446, %v1469
        %v1475 = vlaneseq
        %v1476 = vshrl.u32 %v1475, 7
        %v1477 = vsub.s32 0, %v1476
        %v1478 = vrot.slane %v1458, %v1477
        %v1479 = vlaneseq
        %v1480 = vshrl.u32 %v1479, 7
        %v1481 = vsub.s32 0, %v1480
        %v1482 = vrot.slane %v1462, %v1481
        %v1483 = vlaneseq
        %v1484 = vshrl.u32 %v1483, 7
        %v1485 = vsub.s32 0, %v1484
        %v1486 = vrot.slane %v1466, %v1485
        %v1487 = vlaneseq
        %v1488 = vshrl.u32 %v1487, 7
        %v1489 = vsub.s32 0, %v1488
        %v1490 = vrot.slane %v1470, %v1489
        %v1491 = vmul.f32 %v1452, %v1478
        %v1492 = vmul.f32 %v1452, %v1482
        %v1493 = vmul.f32 %v1452, %v1486
        %v1494 = vmul.f32 %v1452, %v1490
        %v1495 = vadd.f32 %v1441, %v1491
        %v1496 = vadd.f32 %v1442, %v1492
        %v1497 = vadd.f32 %v1443, %v1493
        %v1498 = vadd.f32 %v1444, %v1494
        %1499 = vset.pattern.permute.xlu0 1
        %1500 = vperm.xlu0 %1499, %v1448
        %v1501 = vpop.permute.xlu0 %1500
        %v1503 = vlaneseq
        %v1504 = vshrl.u32 %v1503, 7
        %v1505 = vsub.s32 1, %v1504
        %v1506 = vrot.slane %v1446, %v1505
        %v1507 = vlaneseq
        %v1508 = vshrl.u32 %v1507, 7
        %v1509 = vsub.s32 3, %v1508
        %v1510 = vrot.slane %v1446, %v1509
        %v1511 = vlaneseq
        %v1512 = vshrl.u32 %v1511, 7
        %v1513 = vsub.s32 5, %v1512
        %v1514 = vrot.slane %v1446, %v1513
        %v1515 = vlaneseq
        %v1516 = vshrl.u32 %v1515, 7
        %v1517 = vsub.s32 7, %v1516
        %v1518 = vrot.slane %v1446, %v1517
        %v1523 = vlaneseq
        %v1524 = vshrl.u32 %v1523, 7
        %v1525 = vsub.s32 1, %v1524
        %v1526 = vrot.slane %v1506, %v1525
        %v1527 = vlaneseq
        %v1528 = vshrl.u32 %v1527, 7
        %v1529 = vsub.s32 1, %v1528
        %v1530 = vrot.slane %v1510, %v1529
        %v1531 = vlaneseq
        %v1532 = vshrl.u32 %v1531, 7
        %v1533 = vsub.s32 1, %v1532
        %v1534 = vrot.slane %v1514, %v1533
        %v1535 = vlaneseq
        %v1536 = vshrl.u32 %v1535, 7
        %v1537 = vsub.s32 1, %v1536
        %v1538 = vrot.slane %v1518, %v1537
        %v1539 = vmul.f32 %v1501, %v1526
        %v1540 = vmul.f32 %v1501, %v1530
        %v1541 = vmul.f32 %v1501, %v1534
        %v1542 = vmul.f32 %v1501, %v1538
        %v1543 = vadd.f32 %v1495, %v1539
        %v1544 = vadd.f32 %v1496, %v1540
        %v1545 = vadd.f32 %v1497, %v1541
        %v1546 = vadd.f32 %v1498, %v1542
        %s1547 = scalar_lea.vmem %s276, 96 [#allocation2]
        %v1548 = vld [vmem:[%s1547] sm:$0xff]
        %s1549 = scalar_lea.vmem %s2, 24
        %v1550 = vld [vmem:[%s1549] sm:$0x3]
        %1552 = vset.pattern.permute.xlu0 0
        %1553 = vperm.xlu0 %1552, %v1550
        %v1554 = vpop.permute.xlu0 %1553
        %v1557 = vlaneseq
        %v1558 = vshrl.u32 %v1557, 7
        %v1559 = vsub.s32 0, %v1558
        %v1560 = vrot.slane %v1548, %v1559
        %v1561 = vlaneseq
        %v1562 = vshrl.u32 %v1561, 7
        %v1563 = vsub.s32 2, %v1562
        %v1564 = vrot.slane %v1548, %v1563
        %v1565 = vlaneseq
        %v1566 = vshrl.u32 %v1565, 7
        %v1567 = vsub.s32 4, %v1566
        %v1568 = vrot.slane %v1548, %v1567
        %v1569 = vlaneseq
        %v1570 = vshrl.u32 %v1569, 7
        %v1571 = vsub.s32 6, %v1570
        %v1572 = vrot.slane %v1548, %v1571
        %v1577 = vlaneseq
        %v1578 = vshrl.u32 %v1577, 7
        %v1579 = vsub.s32 0, %v1578
        %v1580 = vrot.slane %v1560, %v1579
        %v1581 = vlaneseq
        %v1582 = vshrl.u32 %v1581, 7
        %v1583 = vsub.s32 0, %v1582
        %v1584 = vrot.slane %v1564, %v1583
        %v1585 = vlaneseq
        %v1586 = vshrl.u32 %v1585, 7
        %v1587 = vsub.s32 0, %v1586
        %v1588 = vrot.slane %v1568, %v1587
        %v1589 = vlaneseq
        %v1590 = vshrl.u32 %v1589, 7
        %v1591 = vsub.s32 0, %v1590
        %v1592 = vrot.slane %v1572, %v1591
        %v1593 = vmul.f32 %v1554, %v1580
        %v1594 = vmul.f32 %v1554, %v1584
        %v1595 = vmul.f32 %v1554, %v1588
        %v1596 = vmul.f32 %v1554, %v1592
        %v1597 = vadd.f32 %v1543, %v1593
        %v1598 = vadd.f32 %v1544, %v1594
        %v1599 = vadd.f32 %v1545, %v1595
        %v1600 = vadd.f32 %v1546, %v1596
        %1601 = vset.pattern.permute.xlu0 1
        %1602 = vperm.xlu0 %1601, %v1550
        %v1603 = vpop.permute.xlu0 %1602
        %v1605 = vlaneseq
        %v1606 = vshrl.u32 %v1605, 7
        %v1607 = vsub.s32 1, %v1606
        %v1608 = vrot.slane %v1548, %v1607
        %v1609 = vlaneseq
        %v1610 = vshrl.u32 %v1609, 7
        %v1611 = vsub.s32 3, %v1610
        %v1612 = vrot.slane %v1548, %v1611
        %v1613 = vlaneseq
        %v1614 = vshrl.u32 %v1613, 7
        %v1615 = vsub.s32 5, %v1614
        %v1616 = vrot.slane %v1548, %v1615
        %v1617 = vlaneseq
        %v1618 = vshrl.u32 %v1617, 7
        %v1619 = vsub.s32 7, %v1618
        %v1620 = vrot.slane %v1548, %v1619
        %v1625 = vlaneseq
        %v1626 = vshrl.u32 %v1625, 7
        %v1627 = vsub.s32 1, %v1626
        %v1628 = vrot.slane %v1608, %v1627
        %v1629 = vlaneseq
        %v1630 = vshrl.u32 %v1629, 7
        %v1631 = vsub.s32 1, %v1630
        %v1632 = vrot.slane %v1612, %v1631
        %v1633 = vlaneseq
        %v1634 = vshrl.u32 %v1633, 7
        %v1635 = vsub.s32 1, %v1634
        %v1636 = vrot.slane %v1616, %v1635
        %v1637 = vlaneseq
        %v1638 = vshrl.u32 %v1637, 7
        %v1639 = vsub.s32 1, %v1638
        %v1640 = vrot.slane %v1620, %v1639
        %v1641 = vmul.f32 %v1603, %v1628
        %v1642 = vmul.f32 %v1603, %v1632
        %v1643 = vmul.f32 %v1603, %v1636
        %v1644 = vmul.f32 %v1603, %v1640
        %v1645 = vadd.f32 %v1597, %v1641
        %v1646 = vadd.f32 %v1598, %v1642
        %v1647 = vadd.f32 %v1599, %v1643
        %v1648 = vadd.f32 %v1600, %v1644
        %s1649 = scalar_lea.vmem %s276, 104 [#allocation2]
        %v1650 = vld [vmem:[%s1649] sm:$0xff]
        %s1651 = scalar_lea.vmem %s2, 26
        %v1652 = vld [vmem:[%s1651] sm:$0x3]
        %1654 = vset.pattern.permute.xlu0 0
        %1655 = vperm.xlu0 %1654, %v1652
        %v1656 = vpop.permute.xlu0 %1655
        %v1659 = vlaneseq
        %v1660 = vshrl.u32 %v1659, 7
        %v1661 = vsub.s32 0, %v1660
        %v1662 = vrot.slane %v1650, %v1661
        %v1663 = vlaneseq
        %v1664 = vshrl.u32 %v1663, 7
        %v1665 = vsub.s32 2, %v1664
        %v1666 = vrot.slane %v1650, %v1665
        %v1667 = vlaneseq
        %v1668 = vshrl.u32 %v1667, 7
        %v1669 = vsub.s32 4, %v1668
        %v1670 = vrot.slane %v1650, %v1669
        %v1671 = vlaneseq
        %v1672 = vshrl.u32 %v1671, 7
        %v1673 = vsub.s32 6, %v1672
        %v1674 = vrot.slane %v1650, %v1673
        %v1679 = vlaneseq
        %v1680 = vshrl.u32 %v1679, 7
        %v1681 = vsub.s32 0, %v1680
        %v1682 = vrot.slane %v1662, %v1681
        %v1683 = vlaneseq
        %v1684 = vshrl.u32 %v1683, 7
        %v1685 = vsub.s32 0, %v1684
        %v1686 = vrot.slane %v1666, %v1685
        %v1687 = vlaneseq
        %v1688 = vshrl.u32 %v1687, 7
        %v1689 = vsub.s32 0, %v1688
        %v1690 = vrot.slane %v1670, %v1689
        %v1691 = vlaneseq
        %v1692 = vshrl.u32 %v1691, 7
        %v1693 = vsub.s32 0, %v1692
        %v1694 = vrot.slane %v1674, %v1693
        %v1695 = vmul.f32 %v1656, %v1682
        %v1696 = vmul.f32 %v1656, %v1686
        %v1697 = vmul.f32 %v1656, %v1690
        %v1698 = vmul.f32 %v1656, %v1694
        %v1699 = vadd.f32 %v1645, %v1695
        %v1700 = vadd.f32 %v1646, %v1696
        %v1701 = vadd.f32 %v1647, %v1697
        %v1702 = vadd.f32 %v1648, %v1698
        %1703 = vset.pattern.permute.xlu0 1
        %1704 = vperm.xlu0 %1703, %v1652
        %v1705 = vpop.permute.xlu0 %1704
        %v1707 = vlaneseq
        %v1708 = vshrl.u32 %v1707, 7
        %v1709 = vsub.s32 1, %v1708
        %v1710 = vrot.slane %v1650, %v1709
        %v1711 = vlaneseq
        %v1712 = vshrl.u32 %v1711, 7
        %v1713 = vsub.s32 3, %v1712
        %v1714 = vrot.slane %v1650, %v1713
        %v1715 = vlaneseq
        %v1716 = vshrl.u32 %v1715, 7
        %v1717 = vsub.s32 5, %v1716
        %v1718 = vrot.slane %v1650, %v1717
        %v1719 = vlaneseq
        %v1720 = vshrl.u32 %v1719, 7
        %v1721 = vsub.s32 7, %v1720
        %v1722 = vrot.slane %v1650, %v1721
        %v1727 = vlaneseq
        %v1728 = vshrl.u32 %v1727, 7
        %v1729 = vsub.s32 1, %v1728
        %v1730 = vrot.slane %v1710, %v1729
        %v1731 = vlaneseq
        %v1732 = vshrl.u32 %v1731, 7
        %v1733 = vsub.s32 1, %v1732
        %v1734 = vrot.slane %v1714, %v1733
        %v1735 = vlaneseq
        %v1736 = vshrl.u32 %v1735, 7
        %v1737 = vsub.s32 1, %v1736
        %v1738 = vrot.slane %v1718, %v1737
        %v1739 = vlaneseq
        %v1740 = vshrl.u32 %v1739, 7
        %v1741 = vsub.s32 1, %v1740
        %v1742 = vrot.slane %v1722, %v1741
        %v1743 = vmul.f32 %v1705, %v1730
        %v1744 = vmul.f32 %v1705, %v1734
        %v1745 = vmul.f32 %v1705, %v1738
        %v1746 = vmul.f32 %v1705, %v1742
        %v1747 = vadd.f32 %v1699, %v1743
        %v1748 = vadd.f32 %v1700, %v1744
        %v1749 = vadd.f32 %v1701, %v1745
        %v1750 = vadd.f32 %v1702, %v1746
        %s1751 = scalar_lea.vmem %s276, 112 [#allocation2]
        %v1752 = vld [vmem:[%s1751] sm:$0xff]
        %s1753 = scalar_lea.vmem %s2, 28
        %v1754 = vld [vmem:[%s1753] sm:$0x3]
        %1756 = vset.pattern.permute.xlu0 0
        %1757 = vperm.xlu0 %1756, %v1754
        %v1758 = vpop.permute.xlu0 %1757
        %v1761 = vlaneseq
        %v1762 = vshrl.u32 %v1761, 7
        %v1763 = vsub.s32 0, %v1762
        %v1764 = vrot.slane %v1752, %v1763
        %v1765 = vlaneseq
        %v1766 = vshrl.u32 %v1765, 7
        %v1767 = vsub.s32 2, %v1766
        %v1768 = vrot.slane %v1752, %v1767
        %v1769 = vlaneseq
        %v1770 = vshrl.u32 %v1769, 7
        %v1771 = vsub.s32 4, %v1770
        %v1772 = vrot.slane %v1752, %v1771
        %v1773 = vlaneseq
        %v1774 = vshrl.u32 %v1773, 7
        %v1775 = vsub.s32 6, %v1774
        %v1776 = vrot.slane %v1752, %v1775
        %v1781 = vlaneseq
        %v1782 = vshrl.u32 %v1781, 7
        %v1783 = vsub.s32 0, %v1782
        %v1784 = vrot.slane %v1764, %v1783
        %v1785 = vlaneseq
        %v1786 = vshrl.u32 %v1785, 7
        %v1787 = vsub.s32 0, %v1786
        %v1788 = vrot.slane %v1768, %v1787
        %v1789 = vlaneseq
        %v1790 = vshrl.u32 %v1789, 7
        %v1791 = vsub.s32 0, %v1790
        %v1792 = vrot.slane %v1772, %v1791
        %v1793 = vlaneseq
        %v1794 = vshrl.u32 %v1793, 7
        %v1795 = vsub.s32 0, %v1794
        %v1796 = vrot.slane %v1776, %v1795
        %v1797 = vmul.f32 %v1758, %v1784
        %v1798 = vmul.f32 %v1758, %v1788
        %v1799 = vmul.f32 %v1758, %v1792
        %v1800 = vmul.f32 %v1758, %v1796
        %v1801 = vadd.f32 %v1747, %v1797
        %v1802 = vadd.f32 %v1748, %v1798
        %v1803 = vadd.f32 %v1749, %v1799
        %v1804 = vadd.f32 %v1750, %v1800
        %1805 = vset.pattern.permute.xlu0 1
        %1806 = vperm.xlu0 %1805, %v1754
        %v1807 = vpop.permute.xlu0 %1806
        %v1809 = vlaneseq
        %v1810 = vshrl.u32 %v1809, 7
        %v1811 = vsub.s32 1, %v1810
        %v1812 = vrot.slane %v1752, %v1811
        %v1813 = vlaneseq
        %v1814 = vshrl.u32 %v1813, 7
        %v1815 = vsub.s32 3, %v1814
        %v1816 = vrot.slane %v1752, %v1815
        %v1817 = vlaneseq
        %v1818 = vshrl.u32 %v1817, 7
        %v1819 = vsub.s32 5, %v1818
        %v1820 = vrot.slane %v1752, %v1819
        %v1821 = vlaneseq
        %v1822 = vshrl.u32 %v1821, 7
        %v1823 = vsub.s32 7, %v1822
        %v1824 = vrot.slane %v1752, %v1823
        %v1829 = vlaneseq
        %v1830 = vshrl.u32 %v1829, 7
        %v1831 = vsub.s32 1, %v1830
        %v1832 = vrot.slane %v1812, %v1831
        %v1833 = vlaneseq
        %v1834 = vshrl.u32 %v1833, 7
        %v1835 = vsub.s32 1, %v1834
        %v1836 = vrot.slane %v1816, %v1835
        %v1837 = vlaneseq
        %v1838 = vshrl.u32 %v1837, 7
        %v1839 = vsub.s32 1, %v1838
        %v1840 = vrot.slane %v1820, %v1839
        %v1841 = vlaneseq
        %v1842 = vshrl.u32 %v1841, 7
        %v1843 = vsub.s32 1, %v1842
        %v1844 = vrot.slane %v1824, %v1843
        %v1845 = vmul.f32 %v1807, %v1832
        %v1846 = vmul.f32 %v1807, %v1836
        %v1847 = vmul.f32 %v1807, %v1840
        %v1848 = vmul.f32 %v1807, %v1844
        %v1849 = vadd.f32 %v1801, %v1845
        %v1850 = vadd.f32 %v1802, %v1846
        %v1851 = vadd.f32 %v1803, %v1847
        %v1852 = vadd.f32 %v1804, %v1848
        %s1853 = scalar_lea.vmem %s276, 120 [#allocation2]
        %v1854 = vld [vmem:[%s1853] sm:$0xff]
        %s1855 = scalar_lea.vmem %s2, 30
        %v1856 = vld [vmem:[%s1855] sm:$0x3]
        %1858 = vset.pattern.permute.xlu0 0
        %1859 = vperm.xlu0 %1858, %v1856
        %v1860 = vpop.permute.xlu0 %1859
        %v1863 = vlaneseq
        %v1864 = vshrl.u32 %v1863, 7
        %v1865 = vsub.s32 0, %v1864
        %v1866 = vrot.slane %v1854, %v1865
        %v1867 = vlaneseq
        %v1868 = vshrl.u32 %v1867, 7
        %v1869 = vsub.s32 2, %v1868
        %v1870 = vrot.slane %v1854, %v1869
        %v1871 = vlaneseq
        %v1872 = vshrl.u32 %v1871, 7
        %v1873 = vsub.s32 4, %v1872
        %v1874 = vrot.slane %v1854, %v1873
        %v1875 = vlaneseq
        %v1876 = vshrl.u32 %v1875, 7
        %v1877 = vsub.s32 6, %v1876
        %v1878 = vrot.slane %v1854, %v1877
        %v1883 = vlaneseq
        %v1884 = vshrl.u32 %v1883, 7
        %v1885 = vsub.s32 0, %v1884
        %v1886 = vrot.slane %v1866, %v1885
        %v1887 = vlaneseq
        %v1888 = vshrl.u32 %v1887, 7
        %v1889 = vsub.s32 0, %v1888
        %v1890 = vrot.slane %v1870, %v1889
        %v1891 = vlaneseq
        %v1892 = vshrl.u32 %v1891, 7
        %v1893 = vsub.s32 0, %v1892
        %v1894 = vrot.slane %v1874, %v1893
        %v1895 = vlaneseq
        %v1896 = vshrl.u32 %v1895, 7
        %v1897 = vsub.s32 0, %v1896
        %v1898 = vrot.slane %v1878, %v1897
        %v1899 = vmul.f32 %v1860, %v1886
        %v1900 = vmul.f32 %v1860, %v1890
        %v1901 = vmul.f32 %v1860, %v1894
        %v1902 = vmul.f32 %v1860, %v1898
        %v1903 = vadd.f32 %v1849, %v1899
        %v1904 = vadd.f32 %v1850, %v1900
        %v1905 = vadd.f32 %v1851, %v1901
        %v1906 = vadd.f32 %v1852, %v1902
        %1907 = vset.pattern.permute.xlu0 1
        %1908 = vperm.xlu0 %1907, %v1856
        %v1909 = vpop.permute.xlu0 %1908
        %v1911 = vlaneseq
        %v1912 = vshrl.u32 %v1911, 7
        %v1913 = vsub.s32 1, %v1912
        %v1914 = vrot.slane %v1854, %v1913
        %v1915 = vlaneseq
        %v1916 = vshrl.u32 %v1915, 7
        %v1917 = vsub.s32 3, %v1916
        %v1918 = vrot.slane %v1854, %v1917
        %v1919 = vlaneseq
        %v1920 = vshrl.u32 %v1919, 7
        %v1921 = vsub.s32 5, %v1920
        %v1922 = vrot.slane %v1854, %v1921
        %v1923 = vlaneseq
        %v1924 = vshrl.u32 %v1923, 7
        %v1925 = vsub.s32 7, %v1924
        %v1926 = vrot.slane %v1854, %v1925
        %v1931 = vlaneseq
        %v1932 = vshrl.u32 %v1931, 7
        %v1933 = vsub.s32 1, %v1932
        %v1934 = vrot.slane %v1914, %v1933
        %v1935 = vlaneseq
        %v1936 = vshrl.u32 %v1935, 7
        %v1937 = vsub.s32 1, %v1936
        %v1938 = vrot.slane %v1918, %v1937
        %v1939 = vlaneseq
        %v1940 = vshrl.u32 %v1939, 7
        %v1941 = vsub.s32 1, %v1940
        %v1942 = vrot.slane %v1922, %v1941
        %v1943 = vlaneseq
        %v1944 = vshrl.u32 %v1943, 7
        %v1945 = vsub.s32 1, %v1944
        %v1946 = vrot.slane %v1926, %v1945
        %v1947 = vmul.f32 %v1909, %v1934
        %v1948 = vmul.f32 %v1909, %v1938
        %v1949 = vmul.f32 %v1909, %v1942
        %v1950 = vmul.f32 %v1909, %v1946
        %v1951 = vadd.f32 %v1903, %v1947
        %v1952 = vadd.f32 %v1904, %v1948
        %v1953 = vadd.f32 %v1905, %v1949
        %v1954 = vadd.f32 %v1906, %v1950
        %s1955 = scalar_lea.vmem %s276, 128 [#allocation2]
        %v1956 = vld [vmem:[%s1955] sm:$0xff]
        %s1957 = scalar_lea.vmem %s2, 32
        %v1958 = vld [vmem:[%s1957] sm:$0x3]
        %1960 = vset.pattern.permute.xlu0 0
        %1961 = vperm.xlu0 %1960, %v1958
        %v1962 = vpop.permute.xlu0 %1961
        %v1965 = vlaneseq
        %v1966 = vshrl.u32 %v1965, 7
        %v1967 = vsub.s32 0, %v1966
        %v1968 = vrot.slane %v1956, %v1967
        %v1969 = vlaneseq
        %v1970 = vshrl.u32 %v1969, 7
        %v1971 = vsub.s32 2, %v1970
        %v1972 = vrot.slane %v1956, %v1971
        %v1973 = vlaneseq
        %v1974 = vshrl.u32 %v1973, 7
        %v1975 = vsub.s32 4, %v1974
        %v1976 = vrot.slane %v1956, %v1975
        %v1977 = vlaneseq
        %v1978 = vshrl.u32 %v1977, 7
        %v1979 = vsub.s32 6, %v1978
        %v1980 = vrot.slane %v1956, %v1979
        %v1985 = vlaneseq
        %v1986 = vshrl.u32 %v1985, 7
        %v1987 = vsub.s32 0, %v1986
        %v1988 = vrot.slane %v1968, %v1987
        %v1989 = vlaneseq
        %v1990 = vshrl.u32 %v1989, 7
        %v1991 = vsub.s32 0, %v1990
        %v1992 = vrot.slane %v1972, %v1991
        %v1993 = vlaneseq
        %v1994 = vshrl.u32 %v1993, 7
        %v1995 = vsub.s32 0, %v1994
        %v1996 = vrot.slane %v1976, %v1995
        %v1997 = vlaneseq
        %v1998 = vshrl.u32 %v1997, 7
        %v1999 = vsub.s32 0, %v1998
        %v2000 = vrot.slane %v1980, %v1999
        %v2001 = vmul.f32 %v1962, %v1988
        %v2002 = vmul.f32 %v1962, %v1992
        %v2003 = vmul.f32 %v1962, %v1996
        %v2004 = vmul.f32 %v1962, %v2000
        %v2005 = vadd.f32 %v1951, %v2001
        %v2006 = vadd.f32 %v1952, %v2002
        %v2007 = vadd.f32 %v1953, %v2003
        %v2008 = vadd.f32 %v1954, %v2004
        %2009 = vset.pattern.permute.xlu0 1
        %2010 = vperm.xlu0 %2009, %v1958
        %v2011 = vpop.permute.xlu0 %2010
        %v2013 = vlaneseq
        %v2014 = vshrl.u32 %v2013, 7
        %v2015 = vsub.s32 1, %v2014
        %v2016 = vrot.slane %v1956, %v2015
        %v2017 = vlaneseq
        %v2018 = vshrl.u32 %v2017, 7
        %v2019 = vsub.s32 3, %v2018
        %v2020 = vrot.slane %v1956, %v2019
        %v2021 = vlaneseq
        %v2022 = vshrl.u32 %v2021, 7
        %v2023 = vsub.s32 5, %v2022
        %v2024 = vrot.slane %v1956, %v2023
        %v2025 = vlaneseq
        %v2026 = vshrl.u32 %v2025, 7
        %v2027 = vsub.s32 7, %v2026
        %v2028 = vrot.slane %v1956, %v2027
        %v2033 = vlaneseq
        %v2034 = vshrl.u32 %v2033, 7
        %v2035 = vsub.s32 1, %v2034
        %v2036 = vrot.slane %v2016, %v2035
        %v2037 = vlaneseq
        %v2038 = vshrl.u32 %v2037, 7
        %v2039 = vsub.s32 1, %v2038
        %v2040 = vrot.slane %v2020, %v2039
        %v2041 = vlaneseq
        %v2042 = vshrl.u32 %v2041, 7
        %v2043 = vsub.s32 1, %v2042
        %v2044 = vrot.slane %v2024, %v2043
        %v2045 = vlaneseq
        %v2046 = vshrl.u32 %v2045, 7
        %v2047 = vsub.s32 1, %v2046
        %v2048 = vrot.slane %v2028, %v2047
        %v2049 = vmul.f32 %v2011, %v2036
        %v2050 = vmul.f32 %v2011, %v2040
        %v2051 = vmul.f32 %v2011, %v2044
        %v2052 = vmul.f32 %v2011, %v2048
        %v2053 = vadd.f32 %v2005, %v2049
        %v2054 = vadd.f32 %v2006, %v2050
        %v2055 = vadd.f32 %v2007, %v2051
        %v2056 = vadd.f32 %v2008, %v2052
        %s2057 = scalar_lea.vmem %s276, 136 [#allocation2]
        %v2058 = vld [vmem:[%s2057] sm:$0xff]
        %s2059 = scalar_lea.vmem %s2, 34
        %v2060 = vld [vmem:[%s2059] sm:$0x3]
        %2062 = vset.pattern.permute.xlu0 0
        %2063 = vperm.xlu0 %2062, %v2060
        %v2064 = vpop.permute.xlu0 %2063
        %v2067 = vlaneseq
        %v2068 = vshrl.u32 %v2067, 7
        %v2069 = vsub.s32 0, %v2068
        %v2070 = vrot.slane %v2058, %v2069
        %v2071 = vlaneseq
        %v2072 = vshrl.u32 %v2071, 7
        %v2073 = vsub.s32 2, %v2072
        %v2074 = vrot.slane %v2058, %v2073
        %v2075 = vlaneseq
        %v2076 = vshrl.u32 %v2075, 7
        %v2077 = vsub.s32 4, %v2076
        %v2078 = vrot.slane %v2058, %v2077
        %v2079 = vlaneseq
        %v2080 = vshrl.u32 %v2079, 7
        %v2081 = vsub.s32 6, %v2080
        %v2082 = vrot.slane %v2058, %v2081
        %v2087 = vlaneseq
        %v2088 = vshrl.u32 %v2087, 7
        %v2089 = vsub.s32 0, %v2088
        %v2090 = vrot.slane %v2070, %v2089
        %v2091 = vlaneseq
        %v2092 = vshrl.u32 %v2091, 7
        %v2093 = vsub.s32 0, %v2092
        %v2094 = vrot.slane %v2074, %v2093
        %v2095 = vlaneseq
        %v2096 = vshrl.u32 %v2095, 7
        %v2097 = vsub.s32 0, %v2096
        %v2098 = vrot.slane %v2078, %v2097
        %v2099 = vlaneseq
        %v2100 = vshrl.u32 %v2099, 7
        %v2101 = vsub.s32 0, %v2100
        %v2102 = vrot.slane %v2082, %v2101
        %v2103 = vmul.f32 %v2064, %v2090
        %v2104 = vmul.f32 %v2064, %v2094
        %v2105 = vmul.f32 %v2064, %v2098
        %v2106 = vmul.f32 %v2064, %v2102
        %v2107 = vadd.f32 %v2053, %v2103
        %v2108 = vadd.f32 %v2054, %v2104
        %v2109 = vadd.f32 %v2055, %v2105
        %v2110 = vadd.f32 %v2056, %v2106
        %2111 = vset.pattern.permute.xlu0 1
        %2112 = vperm.xlu0 %2111, %v2060
        %v2113 = vpop.permute.xlu0 %2112
        %v2115 = vlaneseq
        %v2116 = vshrl.u32 %v2115, 7
        %v2117 = vsub.s32 1, %v2116
        %v2118 = vrot.slane %v2058, %v2117
        %v2119 = vlaneseq
        %v2120 = vshrl.u32 %v2119, 7
        %v2121 = vsub.s32 3, %v2120
        %v2122 = vrot.slane %v2058, %v2121
        %v2123 = vlaneseq
        %v2124 = vshrl.u32 %v2123, 7
        %v2125 = vsub.s32 5, %v2124
        %v2126 = vrot.slane %v2058, %v2125
        %v2127 = vlaneseq
        %v2128 = vshrl.u32 %v2127, 7
        %v2129 = vsub.s32 7, %v2128
        %v2130 = vrot.slane %v2058, %v2129
        %v2135 = vlaneseq
        %v2136 = vshrl.u32 %v2135, 7
        %v2137 = vsub.s32 1, %v2136
        %v2138 = vrot.slane %v2118, %v2137
        %v2139 = vlaneseq
        %v2140 = vshrl.u32 %v2139, 7
        %v2141 = vsub.s32 1, %v2140
        %v2142 = vrot.slane %v2122, %v2141
        %v2143 = vlaneseq
        %v2144 = vshrl.u32 %v2143, 7
        %v2145 = vsub.s32 1, %v2144
        %v2146 = vrot.slane %v2126, %v2145
        %v2147 = vlaneseq
        %v2148 = vshrl.u32 %v2147, 7
        %v2149 = vsub.s32 1, %v2148
        %v2150 = vrot.slane %v2130, %v2149
        %v2151 = vmul.f32 %v2113, %v2138
        %v2152 = vmul.f32 %v2113, %v2142
        %v2153 = vmul.f32 %v2113, %v2146
        %v2154 = vmul.f32 %v2113, %v2150
        %v2155 = vadd.f32 %v2107, %v2151
        %v2156 = vadd.f32 %v2108, %v2152
        %v2157 = vadd.f32 %v2109, %v2153
        %v2158 = vadd.f32 %v2110, %v2154
        %s2159 = scalar_lea.vmem %s276, 144 [#allocation2]
        %v2160 = vld [vmem:[%s2159] sm:$0xff]
        %s2161 = scalar_lea.vmem %s2, 36
        %v2162 = vld [vmem:[%s2161] sm:$0x3]
        %2164 = vset.pattern.permute.xlu0 0
        %2165 = vperm.xlu0 %2164, %v2162
        %v2166 = vpop.permute.xlu0 %2165
        %v2169 = vlaneseq
        %v2170 = vshrl.u32 %v2169, 7
        %v2171 = vsub.s32 0, %v2170
        %v2172 = vrot.slane %v2160, %v2171
        %v2173 = vlaneseq
        %v2174 = vshrl.u32 %v2173, 7
        %v2175 = vsub.s32 2, %v2174
        %v2176 = vrot.slane %v2160, %v2175
        %v2177 = vlaneseq
        %v2178 = vshrl.u32 %v2177, 7
        %v2179 = vsub.s32 4, %v2178
        %v2180 = vrot.slane %v2160, %v2179
        %v2181 = vlaneseq
        %v2182 = vshrl.u32 %v2181, 7
        %v2183 = vsub.s32 6, %v2182
        %v2184 = vrot.slane %v2160, %v2183
        %v2189 = vlaneseq
        %v2190 = vshrl.u32 %v2189, 7
        %v2191 = vsub.s32 0, %v2190
        %v2192 = vrot.slane %v2172, %v2191
        %v2193 = vlaneseq
        %v2194 = vshrl.u32 %v2193, 7
        %v2195 = vsub.s32 0, %v2194
        %v2196 = vrot.slane %v2176, %v2195
        %v2197 = vlaneseq
        %v2198 = vshrl.u32 %v2197, 7
        %v2199 = vsub.s32 0, %v2198
        %v2200 = vrot.slane %v2180, %v2199
        %v2201 = vlaneseq
        %v2202 = vshrl.u32 %v2201, 7
        %v2203 = vsub.s32 0, %v2202
        %v2204 = vrot.slane %v2184, %v2203
        %v2205 = vmul.f32 %v2166, %v2192
        %v2206 = vmul.f32 %v2166, %v2196
        %v2207 = vmul.f32 %v2166, %v2200
        %v2208 = vmul.f32 %v2166, %v2204
        %v2209 = vadd.f32 %v2155, %v2205
        %v2210 = vadd.f32 %v2156, %v2206
        %v2211 = vadd.f32 %v2157, %v2207
        %v2212 = vadd.f32 %v2158, %v2208
        %2213 = vset.pattern.permute.xlu0 1
        %2214 = vperm.xlu0 %2213, %v2162
        %v2215 = vpop.permute.xlu0 %2214
        %v2217 = vlaneseq
        %v2218 = vshrl.u32 %v2217, 7
        %v2219 = vsub.s32 1, %v2218
        %v2220 = vrot.slane %v2160, %v2219
        %v2221 = vlaneseq
        %v2222 = vshrl.u32 %v2221, 7
        %v2223 = vsub.s32 3, %v2222
        %v2224 = vrot.slane %v2160, %v2223
        %v2225 = vlaneseq
        %v2226 = vshrl.u32 %v2225, 7
        %v2227 = vsub.s32 5, %v2226
        %v2228 = vrot.slane %v2160, %v2227
        %v2229 = vlaneseq
        %v2230 = vshrl.u32 %v2229, 7
        %v2231 = vsub.s32 7, %v2230
        %v2232 = vrot.slane %v2160, %v2231
        %v2237 = vlaneseq
        %v2238 = vshrl.u32 %v2237, 7
        %v2239 = vsub.s32 1, %v2238
        %v2240 = vrot.slane %v2220, %v2239
        %v2241 = vlaneseq
        %v2242 = vshrl.u32 %v2241, 7
        %v2243 = vsub.s32 1, %v2242
        %v2244 = vrot.slane %v2224, %v2243
        %v2245 = vlaneseq
        %v2246 = vshrl.u32 %v2245, 7
        %v2247 = vsub.s32 1, %v2246
        %v2248 = vrot.slane %v2228, %v2247
        %v2249 = vlaneseq
        %v2250 = vshrl.u32 %v2249, 7
        %v2251 = vsub.s32 1, %v2250
        %v2252 = vrot.slane %v2232, %v2251
        %v2253 = vmul.f32 %v2215, %v2240
        %v2254 = vmul.f32 %v2215, %v2244
        %v2255 = vmul.f32 %v2215, %v2248
        %v2256 = vmul.f32 %v2215, %v2252
        %v2257 = vadd.f32 %v2209, %v2253
        %v2258 = vadd.f32 %v2210, %v2254
        %v2259 = vadd.f32 %v2211, %v2255
        %v2260 = vadd.f32 %v2212, %v2256
        %s2261 = scalar_lea.vmem %s276, 152 [#allocation2]
        %v2262 = vld [vmem:[%s2261] sm:$0xff]
        %s2263 = scalar_lea.vmem %s2, 38
        %v2264 = vld [vmem:[%s2263] sm:$0x3]
        %2266 = vset.pattern.permute.xlu0 0
        %2267 = vperm.xlu0 %2266, %v2264
        %v2268 = vpop.permute.xlu0 %2267
        %v2271 = vlaneseq
        %v2272 = vshrl.u32 %v2271, 7
        %v2273 = vsub.s32 0, %v2272
        %v2274 = vrot.slane %v2262, %v2273
        %v2275 = vlaneseq
        %v2276 = vshrl.u32 %v2275, 7
        %v2277 = vsub.s32 2, %v2276
        %v2278 = vrot.slane %v2262, %v2277
        %v2279 = vlaneseq
        %v2280 = vshrl.u32 %v2279, 7
        %v2281 = vsub.s32 4, %v2280
        %v2282 = vrot.slane %v2262, %v2281
        %v2283 = vlaneseq
        %v2284 = vshrl.u32 %v2283, 7
        %v2285 = vsub.s32 6, %v2284
        %v2286 = vrot.slane %v2262, %v2285
        %v2291 = vlaneseq
        %v2292 = vshrl.u32 %v2291, 7
        %v2293 = vsub.s32 0, %v2292
        %v2294 = vrot.slane %v2274, %v2293
        %v2295 = vlaneseq
        %v2296 = vshrl.u32 %v2295, 7
        %v2297 = vsub.s32 0, %v2296
        %v2298 = vrot.slane %v2278, %v2297
        %v2299 = vlaneseq
        %v2300 = vshrl.u32 %v2299, 7
        %v2301 = vsub.s32 0, %v2300
        %v2302 = vrot.slane %v2282, %v2301
        %v2303 = vlaneseq
        %v2304 = vshrl.u32 %v2303, 7
        %v2305 = vsub.s32 0, %v2304
        %v2306 = vrot.slane %v2286, %v2305
        %v2307 = vmul.f32 %v2268, %v2294
        %v2308 = vmul.f32 %v2268, %v2298
        %v2309 = vmul.f32 %v2268, %v2302
        %v2310 = vmul.f32 %v2268, %v2306
        %v2311 = vadd.f32 %v2257, %v2307
        %v2312 = vadd.f32 %v2258, %v2308
        %v2313 = vadd.f32 %v2259, %v2309
        %v2314 = vadd.f32 %v2260, %v2310
        %2315 = vset.pattern.permute.xlu0 1
        %2316 = vperm.xlu0 %2315, %v2264
        %v2317 = vpop.permute.xlu0 %2316
        %v2319 = vlaneseq
        %v2320 = vshrl.u32 %v2319, 7
        %v2321 = vsub.s32 1, %v2320
        %v2322 = vrot.slane %v2262, %v2321
        %v2323 = vlaneseq
        %v2324 = vshrl.u32 %v2323, 7
        %v2325 = vsub.s32 3, %v2324
        %v2326 = vrot.slane %v2262, %v2325
        %v2327 = vlaneseq
        %v2328 = vshrl.u32 %v2327, 7
        %v2329 = vsub.s32 5, %v2328
        %v2330 = vrot.slane %v2262, %v2329
        %v2331 = vlaneseq
        %v2332 = vshrl.u32 %v2331, 7
        %v2333 = vsub.s32 7, %v2332
        %v2334 = vrot.slane %v2262, %v2333
        %v2339 = vlaneseq
        %v2340 = vshrl.u32 %v2339, 7
        %v2341 = vsub.s32 1, %v2340
        %v2342 = vrot.slane %v2322, %v2341
        %v2343 = vlaneseq
        %v2344 = vshrl.u32 %v2343, 7
        %v2345 = vsub.s32 1, %v2344
        %v2346 = vrot.slane %v2326, %v2345
        %v2347 = vlaneseq
        %v2348 = vshrl.u32 %v2347, 7
        %v2349 = vsub.s32 1, %v2348
        %v2350 = vrot.slane %v2330, %v2349
        %v2351 = vlaneseq
        %v2352 = vshrl.u32 %v2351, 7
        %v2353 = vsub.s32 1, %v2352
        %v2354 = vrot.slane %v2334, %v2353
        %v2355 = vmul.f32 %v2317, %v2342
        %v2356 = vmul.f32 %v2317, %v2346
        %v2357 = vmul.f32 %v2317, %v2350
        %v2358 = vmul.f32 %v2317, %v2354
        %v2359 = vadd.f32 %v2311, %v2355
        %v2360 = vadd.f32 %v2312, %v2356
        %v2361 = vadd.f32 %v2313, %v2357
        %v2362 = vadd.f32 %v2314, %v2358
        %s2363 = scalar_lea.vmem %s276, 160 [#allocation2]
        %v2364 = vld [vmem:[%s2363] sm:$0xff]
        %s2365 = scalar_lea.vmem %s2, 40
        %v2366 = vld [vmem:[%s2365] sm:$0x3]
        %2368 = vset.pattern.permute.xlu0 0
        %2369 = vperm.xlu0 %2368, %v2366
        %v2370 = vpop.permute.xlu0 %2369
        %v2373 = vlaneseq
        %v2374 = vshrl.u32 %v2373, 7
        %v2375 = vsub.s32 0, %v2374
        %v2376 = vrot.slane %v2364, %v2375
        %v2377 = vlaneseq
        %v2378 = vshrl.u32 %v2377, 7
        %v2379 = vsub.s32 2, %v2378
        %v2380 = vrot.slane %v2364, %v2379
        %v2381 = vlaneseq
        %v2382 = vshrl.u32 %v2381, 7
        %v2383 = vsub.s32 4, %v2382
        %v2384 = vrot.slane %v2364, %v2383
        %v2385 = vlaneseq
        %v2386 = vshrl.u32 %v2385, 7
        %v2387 = vsub.s32 6, %v2386
        %v2388 = vrot.slane %v2364, %v2387
        %v2393 = vlaneseq
        %v2394 = vshrl.u32 %v2393, 7
        %v2395 = vsub.s32 0, %v2394
        %v2396 = vrot.slane %v2376, %v2395
        %v2397 = vlaneseq
        %v2398 = vshrl.u32 %v2397, 7
        %v2399 = vsub.s32 0, %v2398
        %v2400 = vrot.slane %v2380, %v2399
        %v2401 = vlaneseq
        %v2402 = vshrl.u32 %v2401, 7
        %v2403 = vsub.s32 0, %v2402
        %v2404 = vrot.slane %v2384, %v2403
        %v2405 = vlaneseq
        %v2406 = vshrl.u32 %v2405, 7
        %v2407 = vsub.s32 0, %v2406
        %v2408 = vrot.slane %v2388, %v2407
        %v2409 = vmul.f32 %v2370, %v2396
        %v2410 = vmul.f32 %v2370, %v2400
        %v2411 = vmul.f32 %v2370, %v2404
        %v2412 = vmul.f32 %v2370, %v2408
        %v2413 = vadd.f32 %v2359, %v2409
        %v2414 = vadd.f32 %v2360, %v2410
        %v2415 = vadd.f32 %v2361, %v2411
        %v2416 = vadd.f32 %v2362, %v2412
        %2417 = vset.pattern.permute.xlu0 1
        %2418 = vperm.xlu0 %2417, %v2366
        %v2419 = vpop.permute.xlu0 %2418
        %v2421 = vlaneseq
        %v2422 = vshrl.u32 %v2421, 7
        %v2423 = vsub.s32 1, %v2422
        %v2424 = vrot.slane %v2364, %v2423
        %v2425 = vlaneseq
        %v2426 = vshrl.u32 %v2425, 7
        %v2427 = vsub.s32 3, %v2426
        %v2428 = vrot.slane %v2364, %v2427
        %v2429 = vlaneseq
        %v2430 = vshrl.u32 %v2429, 7
        %v2431 = vsub.s32 5, %v2430
        %v2432 = vrot.slane %v2364, %v2431
        %v2433 = vlaneseq
        %v2434 = vshrl.u32 %v2433, 7
        %v2435 = vsub.s32 7, %v2434
        %v2436 = vrot.slane %v2364, %v2435
        %v2441 = vlaneseq
        %v2442 = vshrl.u32 %v2441, 7
        %v2443 = vsub.s32 1, %v2442
        %v2444 = vrot.slane %v2424, %v2443
        %v2445 = vlaneseq
        %v2446 = vshrl.u32 %v2445, 7
        %v2447 = vsub.s32 1, %v2446
        %v2448 = vrot.slane %v2428, %v2447
        %v2449 = vlaneseq
        %v2450 = vshrl.u32 %v2449, 7
        %v2451 = vsub.s32 1, %v2450
        %v2452 = vrot.slane %v2432, %v2451
        %v2453 = vlaneseq
        %v2454 = vshrl.u32 %v2453, 7
        %v2455 = vsub.s32 1, %v2454
        %v2456 = vrot.slane %v2436, %v2455
        %v2457 = vmul.f32 %v2419, %v2444
        %v2458 = vmul.f32 %v2419, %v2448
        %v2459 = vmul.f32 %v2419, %v2452
        %v2460 = vmul.f32 %v2419, %v2456
        %v2461 = vadd.f32 %v2413, %v2457
        %v2462 = vadd.f32 %v2414, %v2458
        %v2463 = vadd.f32 %v2415, %v2459
        %v2464 = vadd.f32 %v2416, %v2460
        %s2465 = scalar_lea.vmem %s276, 168 [#allocation2]
        %v2466 = vld [vmem:[%s2465] sm:$0xff]
        %s2467 = scalar_lea.vmem %s2, 42
        %v2468 = vld [vmem:[%s2467] sm:$0x3]
        %2470 = vset.pattern.permute.xlu0 0
        %2471 = vperm.xlu0 %2470, %v2468
        %v2472 = vpop.permute.xlu0 %2471
        %v2475 = vlaneseq
        %v2476 = vshrl.u32 %v2475, 7
        %v2477 = vsub.s32 0, %v2476
        %v2478 = vrot.slane %v2466, %v2477
        %v2479 = vlaneseq
        %v2480 = vshrl.u32 %v2479, 7
        %v2481 = vsub.s32 2, %v2480
        %v2482 = vrot.slane %v2466, %v2481
        %v2483 = vlaneseq
        %v2484 = vshrl.u32 %v2483, 7
        %v2485 = vsub.s32 4, %v2484
        %v2486 = vrot.slane %v2466, %v2485
        %v2487 = vlaneseq
        %v2488 = vshrl.u32 %v2487, 7
        %v2489 = vsub.s32 6, %v2488
        %v2490 = vrot.slane %v2466, %v2489
        %v2495 = vlaneseq
        %v2496 = vshrl.u32 %v2495, 7
        %v2497 = vsub.s32 0, %v2496
        %v2498 = vrot.slane %v2478, %v2497
        %v2499 = vlaneseq
        %v2500 = vshrl.u32 %v2499, 7
        %v2501 = vsub.s32 0, %v2500
        %v2502 = vrot.slane %v2482, %v2501
        %v2503 = vlaneseq
        %v2504 = vshrl.u32 %v2503, 7
        %v2505 = vsub.s32 0, %v2504
        %v2506 = vrot.slane %v2486, %v2505
        %v2507 = vlaneseq
        %v2508 = vshrl.u32 %v2507, 7
        %v2509 = vsub.s32 0, %v2508
        %v2510 = vrot.slane %v2490, %v2509
        %v2511 = vmul.f32 %v2472, %v2498
        %v2512 = vmul.f32 %v2472, %v2502
        %v2513 = vmul.f32 %v2472, %v2506
        %v2514 = vmul.f32 %v2472, %v2510
        %v2515 = vadd.f32 %v2461, %v2511
        %v2516 = vadd.f32 %v2462, %v2512
        %v2517 = vadd.f32 %v2463, %v2513
        %v2518 = vadd.f32 %v2464, %v2514
        %2519 = vset.pattern.permute.xlu0 1
        %2520 = vperm.xlu0 %2519, %v2468
        %v2521 = vpop.permute.xlu0 %2520
        %v2523 = vlaneseq
        %v2524 = vshrl.u32 %v2523, 7
        %v2525 = vsub.s32 1, %v2524
        %v2526 = vrot.slane %v2466, %v2525
        %v2527 = vlaneseq
        %v2528 = vshrl.u32 %v2527, 7
        %v2529 = vsub.s32 3, %v2528
        %v2530 = vrot.slane %v2466, %v2529
        %v2531 = vlaneseq
        %v2532 = vshrl.u32 %v2531, 7
        %v2533 = vsub.s32 5, %v2532
        %v2534 = vrot.slane %v2466, %v2533
        %v2535 = vlaneseq
        %v2536 = vshrl.u32 %v2535, 7
        %v2537 = vsub.s32 7, %v2536
        %v2538 = vrot.slane %v2466, %v2537
        %v2543 = vlaneseq
        %v2544 = vshrl.u32 %v2543, 7
        %v2545 = vsub.s32 1, %v2544
        %v2546 = vrot.slane %v2526, %v2545
        %v2547 = vlaneseq
        %v2548 = vshrl.u32 %v2547, 7
        %v2549 = vsub.s32 1, %v2548
        %v2550 = vrot.slane %v2530, %v2549
        %v2551 = vlaneseq
        %v2552 = vshrl.u32 %v2551, 7
        %v2553 = vsub.s32 1, %v2552
        %v2554 = vrot.slane %v2534, %v2553
        %v2555 = vlaneseq
        %v2556 = vshrl.u32 %v2555, 7
        %v2557 = vsub.s32 1, %v2556
        %v2558 = vrot.slane %v2538, %v2557
        %v2559 = vmul.f32 %v2521, %v2546
        %v2560 = vmul.f32 %v2521, %v2550
        %v2561 = vmul.f32 %v2521, %v2554
        %v2562 = vmul.f32 %v2521, %v2558
        %v2563 = vadd.f32 %v2515, %v2559
        %v2564 = vadd.f32 %v2516, %v2560
        %v2565 = vadd.f32 %v2517, %v2561
        %v2566 = vadd.f32 %v2518, %v2562
        %s2567 = scalar_lea.vmem %s276, 176 [#allocation2]
        %v2568 = vld [vmem:[%s2567] sm:$0xff]
        %s2569 = scalar_lea.vmem %s2, 44
        %v2570 = vld [vmem:[%s2569] sm:$0x3]
        %2572 = vset.pattern.permute.xlu0 0
        %2573 = vperm.xlu0 %2572, %v2570
        %v2574 = vpop.permute.xlu0 %2573
        %v2577 = vlaneseq
        %v2578 = vshrl.u32 %v2577, 7
        %v2579 = vsub.s32 0, %v2578
        %v2580 = vrot.slane %v2568, %v2579
        %v2581 = vlaneseq
        %v2582 = vshrl.u32 %v2581, 7
        %v2583 = vsub.s32 2, %v2582
        %v2584 = vrot.slane %v2568, %v2583
        %v2585 = vlaneseq
        %v2586 = vshrl.u32 %v2585, 7
        %v2587 = vsub.s32 4, %v2586
        %v2588 = vrot.slane %v2568, %v2587
        %v2589 = vlaneseq
        %v2590 = vshrl.u32 %v2589, 7
        %v2591 = vsub.s32 6, %v2590
        %v2592 = vrot.slane %v2568, %v2591
        %v2597 = vlaneseq
        %v2598 = vshrl.u32 %v2597, 7
        %v2599 = vsub.s32 0, %v2598
        %v2600 = vrot.slane %v2580, %v2599
        %v2601 = vlaneseq
        %v2602 = vshrl.u32 %v2601, 7
        %v2603 = vsub.s32 0, %v2602
        %v2604 = vrot.slane %v2584, %v2603
        %v2605 = vlaneseq
        %v2606 = vshrl.u32 %v2605, 7
        %v2607 = vsub.s32 0, %v2606
        %v2608 = vrot.slane %v2588, %v2607
        %v2609 = vlaneseq
        %v2610 = vshrl.u32 %v2609, 7
        %v2611 = vsub.s32 0, %v2610
        %v2612 = vrot.slane %v2592, %v2611
        %v2613 = vmul.f32 %v2574, %v2600
        %v2614 = vmul.f32 %v2574, %v2604
        %v2615 = vmul.f32 %v2574, %v2608
        %v2616 = vmul.f32 %v2574, %v2612
        %v2617 = vadd.f32 %v2563, %v2613
        %v2618 = vadd.f32 %v2564, %v2614
        %v2619 = vadd.f32 %v2565, %v2615
        %v2620 = vadd.f32 %v2566, %v2616
        %2621 = vset.pattern.permute.xlu0 1
        %2622 = vperm.xlu0 %2621, %v2570
        %v2623 = vpop.permute.xlu0 %2622
        %v2625 = vlaneseq
        %v2626 = vshrl.u32 %v2625, 7
        %v2627 = vsub.s32 1, %v2626
        %v2628 = vrot.slane %v2568, %v2627
        %v2629 = vlaneseq
        %v2630 = vshrl.u32 %v2629, 7
        %v2631 = vsub.s32 3, %v2630
        %v2632 = vrot.slane %v2568, %v2631
        %v2633 = vlaneseq
        %v2634 = vshrl.u32 %v2633, 7
        %v2635 = vsub.s32 5, %v2634
        %v2636 = vrot.slane %v2568, %v2635
        %v2637 = vlaneseq
        %v2638 = vshrl.u32 %v2637, 7
        %v2639 = vsub.s32 7, %v2638
        %v2640 = vrot.slane %v2568, %v2639
        %v2645 = vlaneseq
        %v2646 = vshrl.u32 %v2645, 7
        %v2647 = vsub.s32 1, %v2646
        %v2648 = vrot.slane %v2628, %v2647
        %v2649 = vlaneseq
        %v2650 = vshrl.u32 %v2649, 7
        %v2651 = vsub.s32 1, %v2650
        %v2652 = vrot.slane %v2632, %v2651
        %v2653 = vlaneseq
        %v2654 = vshrl.u32 %v2653, 7
        %v2655 = vsub.s32 1, %v2654
        %v2656 = vrot.slane %v2636, %v2655
        %v2657 = vlaneseq
        %v2658 = vshrl.u32 %v2657, 7
        %v2659 = vsub.s32 1, %v2658
        %v2660 = vrot.slane %v2640, %v2659
        %v2661 = vmul.f32 %v2623, %v2648
        %v2662 = vmul.f32 %v2623, %v2652
        %v2663 = vmul.f32 %v2623, %v2656
        %v2664 = vmul.f32 %v2623, %v2660
        %v2665 = vadd.f32 %v2617, %v2661
        %v2666 = vadd.f32 %v2618, %v2662
        %v2667 = vadd.f32 %v2619, %v2663
        %v2668 = vadd.f32 %v2620, %v2664
        %s2669 = scalar_lea.vmem %s276, 184 [#allocation2]
        %v2670 = vld [vmem:[%s2669] sm:$0xff]
        %s2671 = scalar_lea.vmem %s2, 46
        %v2672 = vld [vmem:[%s2671] sm:$0x3]
        %2674 = vset.pattern.permute.xlu0 0
        %2675 = vperm.xlu0 %2674, %v2672
        %v2676 = vpop.permute.xlu0 %2675
        %v2679 = vlaneseq
        %v2680 = vshrl.u32 %v2679, 7
        %v2681 = vsub.s32 0, %v2680
        %v2682 = vrot.slane %v2670, %v2681
        %v2683 = vlaneseq
        %v2684 = vshrl.u32 %v2683, 7
        %v2685 = vsub.s32 2, %v2684
        %v2686 = vrot.slane %v2670, %v2685
        %v2687 = vlaneseq
        %v2688 = vshrl.u32 %v2687, 7
        %v2689 = vsub.s32 4, %v2688
        %v2690 = vrot.slane %v2670, %v2689
        %v2691 = vlaneseq
        %v2692 = vshrl.u32 %v2691, 7
        %v2693 = vsub.s32 6, %v2692
        %v2694 = vrot.slane %v2670, %v2693
        %v2699 = vlaneseq
        %v2700 = vshrl.u32 %v2699, 7
        %v2701 = vsub.s32 0, %v2700
        %v2702 = vrot.slane %v2682, %v2701
        %v2703 = vlaneseq
        %v2704 = vshrl.u32 %v2703, 7
        %v2705 = vsub.s32 0, %v2704
        %v2706 = vrot.slane %v2686, %v2705
        %v2707 = vlaneseq
        %v2708 = vshrl.u32 %v2707, 7
        %v2709 = vsub.s32 0, %v2708
        %v2710 = vrot.slane %v2690, %v2709
        %v2711 = vlaneseq
        %v2712 = vshrl.u32 %v2711, 7
        %v2713 = vsub.s32 0, %v2712
        %v2714 = vrot.slane %v2694, %v2713
        %v2715 = vmul.f32 %v2676, %v2702
        %v2716 = vmul.f32 %v2676, %v2706
        %v2717 = vmul.f32 %v2676, %v2710
        %v2718 = vmul.f32 %v2676, %v2714
        %v2719 = vadd.f32 %v2665, %v2715
        %v2720 = vadd.f32 %v2666, %v2716
        %v2721 = vadd.f32 %v2667, %v2717
        %v2722 = vadd.f32 %v2668, %v2718
        %2723 = vset.pattern.permute.xlu0 1
        %2724 = vperm.xlu0 %2723, %v2672
        %v2725 = vpop.permute.xlu0 %2724
        %v2727 = vlaneseq
        %v2728 = vshrl.u32 %v2727, 7
        %v2729 = vsub.s32 1, %v2728
        %v2730 = vrot.slane %v2670, %v2729
        %v2731 = vlaneseq
        %v2732 = vshrl.u32 %v2731, 7
        %v2733 = vsub.s32 3, %v2732
        %v2734 = vrot.slane %v2670, %v2733
        %v2735 = vlaneseq
        %v2736 = vshrl.u32 %v2735, 7
        %v2737 = vsub.s32 5, %v2736
        %v2738 = vrot.slane %v2670, %v2737
        %v2739 = vlaneseq
        %v2740 = vshrl.u32 %v2739, 7
        %v2741 = vsub.s32 7, %v2740
        %v2742 = vrot.slane %v2670, %v2741
        %v2747 = vlaneseq
        %v2748 = vshrl.u32 %v2747, 7
        %v2749 = vsub.s32 1, %v2748
        %v2750 = vrot.slane %v2730, %v2749
        %v2751 = vlaneseq
        %v2752 = vshrl.u32 %v2751, 7
        %v2753 = vsub.s32 1, %v2752
        %v2754 = vrot.slane %v2734, %v2753
        %v2755 = vlaneseq
        %v2756 = vshrl.u32 %v2755, 7
        %v2757 = vsub.s32 1, %v2756
        %v2758 = vrot.slane %v2738, %v2757
        %v2759 = vlaneseq
        %v2760 = vshrl.u32 %v2759, 7
        %v2761 = vsub.s32 1, %v2760
        %v2762 = vrot.slane %v2742, %v2761
        %v2763 = vmul.f32 %v2725, %v2750
        %v2764 = vmul.f32 %v2725, %v2754
        %v2765 = vmul.f32 %v2725, %v2758
        %v2766 = vmul.f32 %v2725, %v2762
        %v2767 = vadd.f32 %v2719, %v2763
        %v2768 = vadd.f32 %v2720, %v2764
        %v2769 = vadd.f32 %v2721, %v2765
        %v2770 = vadd.f32 %v2722, %v2766
        %s2771 = scalar_lea.vmem %s276, 192 [#allocation2]
        %v2772 = vld [vmem:[%s2771] sm:$0xff]
        %s2773 = scalar_lea.vmem %s2, 48
        %v2774 = vld [vmem:[%s2773] sm:$0x3]
        %2776 = vset.pattern.permute.xlu0 0
        %2777 = vperm.xlu0 %2776, %v2774
        %v2778 = vpop.permute.xlu0 %2777
        %v2781 = vlaneseq
        %v2782 = vshrl.u32 %v2781, 7
        %v2783 = vsub.s32 0, %v2782
        %v2784 = vrot.slane %v2772, %v2783
        %v2785 = vlaneseq
        %v2786 = vshrl.u32 %v2785, 7
        %v2787 = vsub.s32 2, %v2786
        %v2788 = vrot.slane %v2772, %v2787
        %v2789 = vlaneseq
        %v2790 = vshrl.u32 %v2789, 7
        %v2791 = vsub.s32 4, %v2790
        %v2792 = vrot.slane %v2772, %v2791
        %v2793 = vlaneseq
        %v2794 = vshrl.u32 %v2793, 7
        %v2795 = vsub.s32 6, %v2794
        %v2796 = vrot.slane %v2772, %v2795
        %v2801 = vlaneseq
        %v2802 = vshrl.u32 %v2801, 7
        %v2803 = vsub.s32 0, %v2802
        %v2804 = vrot.slane %v2784, %v2803
        %v2805 = vlaneseq
        %v2806 = vshrl.u32 %v2805, 7
        %v2807 = vsub.s32 0, %v2806
        %v2808 = vrot.slane %v2788, %v2807
        %v2809 = vlaneseq
        %v2810 = vshrl.u32 %v2809, 7
        %v2811 = vsub.s32 0, %v2810
        %v2812 = vrot.slane %v2792, %v2811
        %v2813 = vlaneseq
        %v2814 = vshrl.u32 %v2813, 7
        %v2815 = vsub.s32 0, %v2814
        %v2816 = vrot.slane %v2796, %v2815
        %v2817 = vmul.f32 %v2778, %v2804
        %v2818 = vmul.f32 %v2778, %v2808
        %v2819 = vmul.f32 %v2778, %v2812
        %v2820 = vmul.f32 %v2778, %v2816
        %v2821 = vadd.f32 %v2767, %v2817
        %v2822 = vadd.f32 %v2768, %v2818
        %v2823 = vadd.f32 %v2769, %v2819
        %v2824 = vadd.f32 %v2770, %v2820
        %2825 = vset.pattern.permute.xlu0 1
        %2826 = vperm.xlu0 %2825, %v2774
        %v2827 = vpop.permute.xlu0 %2826
        %v2829 = vlaneseq
        %v2830 = vshrl.u32 %v2829, 7
        %v2831 = vsub.s32 1, %v2830
        %v2832 = vrot.slane %v2772, %v2831
        %v2833 = vlaneseq
        %v2834 = vshrl.u32 %v2833, 7
        %v2835 = vsub.s32 3, %v2834
        %v2836 = vrot.slane %v2772, %v2835
        %v2837 = vlaneseq
        %v2838 = vshrl.u32 %v2837, 7
        %v2839 = vsub.s32 5, %v2838
        %v2840 = vrot.slane %v2772, %v2839
        %v2841 = vlaneseq
        %v2842 = vshrl.u32 %v2841, 7
        %v2843 = vsub.s32 7, %v2842
        %v2844 = vrot.slane %v2772, %v2843
        %v2849 = vlaneseq
        %v2850 = vshrl.u32 %v2849, 7
        %v2851 = vsub.s32 1, %v2850
        %v2852 = vrot.slane %v2832, %v2851
        %v2853 = vlaneseq
        %v2854 = vshrl.u32 %v2853, 7
        %v2855 = vsub.s32 1, %v2854
        %v2856 = vrot.slane %v2836, %v2855
        %v2857 = vlaneseq
        %v2858 = vshrl.u32 %v2857, 7
        %v2859 = vsub.s32 1, %v2858
        %v2860 = vrot.slane %v2840, %v2859
        %v2861 = vlaneseq
        %v2862 = vshrl.u32 %v2861, 7
        %v2863 = vsub.s32 1, %v2862
        %v2864 = vrot.slane %v2844, %v2863
        %v2865 = vmul.f32 %v2827, %v2852
        %v2866 = vmul.f32 %v2827, %v2856
        %v2867 = vmul.f32 %v2827, %v2860
        %v2868 = vmul.f32 %v2827, %v2864
        %v2869 = vadd.f32 %v2821, %v2865
        %v2870 = vadd.f32 %v2822, %v2866
        %v2871 = vadd.f32 %v2823, %v2867
        %v2872 = vadd.f32 %v2824, %v2868
        %s2873 = scalar_lea.vmem %s276, 200 [#allocation2]
        %v2874 = vld [vmem:[%s2873] sm:$0xff]
        %s2875 = scalar_lea.vmem %s2, 50
        %v2876 = vld [vmem:[%s2875] sm:$0x3]
        %2878 = vset.pattern.permute.xlu0 0
        %2879 = vperm.xlu0 %2878, %v2876
        %v2880 = vpop.permute.xlu0 %2879
        %v2883 = vlaneseq
        %v2884 = vshrl.u32 %v2883, 7
        %v2885 = vsub.s32 0, %v2884
        %v2886 = vrot.slane %v2874, %v2885
        %v2887 = vlaneseq
        %v2888 = vshrl.u32 %v2887, 7
        %v2889 = vsub.s32 2, %v2888
        %v2890 = vrot.slane %v2874, %v2889
        %v2891 = vlaneseq
        %v2892 = vshrl.u32 %v2891, 7
        %v2893 = vsub.s32 4, %v2892
        %v2894 = vrot.slane %v2874, %v2893
        %v2895 = vlaneseq
        %v2896 = vshrl.u32 %v2895, 7
        %v2897 = vsub.s32 6, %v2896
        %v2898 = vrot.slane %v2874, %v2897
        %v2903 = vlaneseq
        %v2904 = vshrl.u32 %v2903, 7
        %v2905 = vsub.s32 0, %v2904
        %v2906 = vrot.slane %v2886, %v2905
        %v2907 = vlaneseq
        %v2908 = vshrl.u32 %v2907, 7
        %v2909 = vsub.s32 0, %v2908
        %v2910 = vrot.slane %v2890, %v2909
        %v2911 = vlaneseq
        %v2912 = vshrl.u32 %v2911, 7
        %v2913 = vsub.s32 0, %v2912
        %v2914 = vrot.slane %v2894, %v2913
        %v2915 = vlaneseq
        %v2916 = vshrl.u32 %v2915, 7
        %v2917 = vsub.s32 0, %v2916
        %v2918 = vrot.slane %v2898, %v2917
        %v2919 = vmul.f32 %v2880, %v2906
        %v2920 = vmul.f32 %v2880, %v2910
        %v2921 = vmul.f32 %v2880, %v2914
        %v2922 = vmul.f32 %v2880, %v2918
        %v2923 = vadd.f32 %v2869, %v2919
        %v2924 = vadd.f32 %v2870, %v2920
        %v2925 = vadd.f32 %v2871, %v2921
        %v2926 = vadd.f32 %v2872, %v2922
        %2927 = vset.pattern.permute.xlu0 1
        %2928 = vperm.xlu0 %2927, %v2876
        %v2929 = vpop.permute.xlu0 %2928
        %v2931 = vlaneseq
        %v2932 = vshrl.u32 %v2931, 7
        %v2933 = vsub.s32 1, %v2932
        %v2934 = vrot.slane %v2874, %v2933
        %v2935 = vlaneseq
        %v2936 = vshrl.u32 %v2935, 7
        %v2937 = vsub.s32 3, %v2936
        %v2938 = vrot.slane %v2874, %v2937
        %v2939 = vlaneseq
        %v2940 = vshrl.u32 %v2939, 7
        %v2941 = vsub.s32 5, %v2940
        %v2942 = vrot.slane %v2874, %v2941
        %v2943 = vlaneseq
        %v2944 = vshrl.u32 %v2943, 7
        %v2945 = vsub.s32 7, %v2944
        %v2946 = vrot.slane %v2874, %v2945
        %v2951 = vlaneseq
        %v2952 = vshrl.u32 %v2951, 7
        %v2953 = vsub.s32 1, %v2952
        %v2954 = vrot.slane %v2934, %v2953
        %v2955 = vlaneseq
        %v2956 = vshrl.u32 %v2955, 7
        %v2957 = vsub.s32 1, %v2956
        %v2958 = vrot.slane %v2938, %v2957
        %v2959 = vlaneseq
        %v2960 = vshrl.u32 %v2959, 7
        %v2961 = vsub.s32 1, %v2960
        %v2962 = vrot.slane %v2942, %v2961
        %v2963 = vlaneseq
        %v2964 = vshrl.u32 %v2963, 7
        %v2965 = vsub.s32 1, %v2964
        %v2966 = vrot.slane %v2946, %v2965
        %v2967 = vmul.f32 %v2929, %v2954
        %v2968 = vmul.f32 %v2929, %v2958
        %v2969 = vmul.f32 %v2929, %v2962
        %v2970 = vmul.f32 %v2929, %v2966
        %v2971 = vadd.f32 %v2923, %v2967
        %v2972 = vadd.f32 %v2924, %v2968
        %v2973 = vadd.f32 %v2925, %v2969
        %v2974 = vadd.f32 %v2926, %v2970
        %s2975 = scalar_lea.vmem %s276, 208 [#allocation2]
        %v2976 = vld [vmem:[%s2975] sm:$0xff]
        %s2977 = scalar_lea.vmem %s2, 52
        %v2978 = vld [vmem:[%s2977] sm:$0x3]
        %2980 = vset.pattern.permute.xlu0 0
        %2981 = vperm.xlu0 %2980, %v2978
        %v2982 = vpop.permute.xlu0 %2981
        %v2985 = vlaneseq
        %v2986 = vshrl.u32 %v2985, 7
        %v2987 = vsub.s32 0, %v2986
        %v2988 = vrot.slane %v2976, %v2987
        %v2989 = vlaneseq
        %v2990 = vshrl.u32 %v2989, 7
        %v2991 = vsub.s32 2, %v2990
        %v2992 = vrot.slane %v2976, %v2991
        %v2993 = vlaneseq
        %v2994 = vshrl.u32 %v2993, 7
        %v2995 = vsub.s32 4, %v2994
        %v2996 = vrot.slane %v2976, %v2995
        %v2997 = vlaneseq
        %v2998 = vshrl.u32 %v2997, 7
        %v2999 = vsub.s32 6, %v2998
        %v3000 = vrot.slane %v2976, %v2999
        %v3005 = vlaneseq
        %v3006 = vshrl.u32 %v3005, 7
        %v3007 = vsub.s32 0, %v3006
        %v3008 = vrot.slane %v2988, %v3007
        %v3009 = vlaneseq
        %v3010 = vshrl.u32 %v3009, 7
        %v3011 = vsub.s32 0, %v3010
        %v3012 = vrot.slane %v2992, %v3011
        %v3013 = vlaneseq
        %v3014 = vshrl.u32 %v3013, 7
        %v3015 = vsub.s32 0, %v3014
        %v3016 = vrot.slane %v2996, %v3015
        %v3017 = vlaneseq
        %v3018 = vshrl.u32 %v3017, 7
        %v3019 = vsub.s32 0, %v3018
        %v3020 = vrot.slane %v3000, %v3019
        %v3021 = vmul.f32 %v2982, %v3008
        %v3022 = vmul.f32 %v2982, %v3012
        %v3023 = vmul.f32 %v2982, %v3016
        %v3024 = vmul.f32 %v2982, %v3020
        %v3025 = vadd.f32 %v2971, %v3021
        %v3026 = vadd.f32 %v2972, %v3022
        %v3027 = vadd.f32 %v2973, %v3023
        %v3028 = vadd.f32 %v2974, %v3024
        %3029 = vset.pattern.permute.xlu0 1
        %3030 = vperm.xlu0 %3029, %v2978
        %v3031 = vpop.permute.xlu0 %3030
        %v3033 = vlaneseq
        %v3034 = vshrl.u32 %v3033, 7
        %v3035 = vsub.s32 1, %v3034
        %v3036 = vrot.slane %v2976, %v3035
        %v3037 = vlaneseq
        %v3038 = vshrl.u32 %v3037, 7
        %v3039 = vsub.s32 3, %v3038
        %v3040 = vrot.slane %v2976, %v3039
        %v3041 = vlaneseq
        %v3042 = vshrl.u32 %v3041, 7
        %v3043 = vsub.s32 5, %v3042
        %v3044 = vrot.slane %v2976, %v3043
        %v3045 = vlaneseq
        %v3046 = vshrl.u32 %v3045, 7
        %v3047 = vsub.s32 7, %v3046
        %v3048 = vrot.slane %v2976, %v3047
        %v3053 = vlaneseq
        %v3054 = vshrl.u32 %v3053, 7
        %v3055 = vsub.s32 1, %v3054
        %v3056 = vrot.slane %v3036, %v3055
        %v3057 = vlaneseq
        %v3058 = vshrl.u32 %v3057, 7
        %v3059 = vsub.s32 1, %v3058
        %v3060 = vrot.slane %v3040, %v3059
        %v3061 = vlaneseq
        %v3062 = vshrl.u32 %v3061, 7
        %v3063 = vsub.s32 1, %v3062
        %v3064 = vrot.slane %v3044, %v3063
        %v3065 = vlaneseq
        %v3066 = vshrl.u32 %v3065, 7
        %v3067 = vsub.s32 1, %v3066
        %v3068 = vrot.slane %v3048, %v3067
        %v3069 = vmul.f32 %v3031, %v3056
        %v3070 = vmul.f32 %v3031, %v3060
        %v3071 = vmul.f32 %v3031, %v3064
        %v3072 = vmul.f32 %v3031, %v3068
        %v3073 = vadd.f32 %v3025, %v3069
        %v3074 = vadd.f32 %v3026, %v3070
        %v3075 = vadd.f32 %v3027, %v3071
        %v3076 = vadd.f32 %v3028, %v3072
        %vm3077 = vcmask 1041408
        %v3078 = vsel %vm3077, %v3073, 0.0
        %v3079 = vsel %vm3077, %v3074, 0.0
        %v3080 = vadd.f32 %v3078, %v3079
        %v3081 = vsel %vm3077, %v3075, 0.0
        %v3082 = vadd.f32 %v3080, %v3081
        %v3083 = vsel %vm3077, %v3076, 0.0
        %v3084 = vadd.f32 %v3082, %v3083
        %3085 = vadd.xlane.f32.xlu0 %v3084
        %v3086 = vpop.xlane.xlu0 %3085
        %v3087 = vrcp.pop 512.0
        %v3088 = vmul.f32 %v3086, %v3087
        %v3089 = vsub.f32 %v3073, %v3088
        %v3090 = vsub.f32 %v3074, %v3088
        %v3091 = vsub.f32 %v3075, %v3088
        %v3092 = vsub.f32 %v3076, %v3088
        %v3093 = vmul.f32 %v3089, %v3089
        %v3094 = vmul.f32 %v3090, %v3090
        %v3095 = vmul.f32 %v3091, %v3091
        %v3096 = vmul.f32 %v3092, %v3092
        %v3097 = vsel %vm3077, %v3093, 0.0
        %v3098 = vsel %vm3077, %v3094, 0.0
        %v3099 = vadd.f32 %v3097, %v3098
        %v3100 = vsel %vm3077, %v3095, 0.0
        %v3101 = vadd.f32 %v3099, %v3100
        %v3102 = vsel %vm3077, %v3096, 0.0
        %v3103 = vadd.f32 %v3101, %v3102
        %3104 = vadd.xlane.f32.xlu0 %v3103
        %v3105 = vpop.xlane.xlu0 %3104
        %v3106 = vmul.f32 %v3105, %v3087
        %v3107 = vadd.f32 %v3106, 1e-05
        %v3108 = vrsqrt.pop %v3107
        %v3109 = vmul.f32 %v3089, %v3108
        %v3110 = vmul.f32 %v3090, %v3108
        %v3111 = vmul.f32 %v3091, %v3108
        %v3112 = vmul.f32 %v3092, %v3108
        %3114 = vset.pattern.permute.xlu0 0
        %3115 = vperm.xlu0 %3114, %v321
        %v3116 = vpop.permute.xlu0 %3115
        %v3118 = vmul.f32 %v3116, %v3109
        %v3119 = vmul.f32 %v3116, %v3110
        %v3120 = vmul.f32 %v3116, %v3111
        %v3121 = vmul.f32 %v3116, %v3112
        %3123 = vset.pattern.permute.xlu0 0
        %3124 = vperm.xlu0 %3123, %v322
        %v3125 = vpop.permute.xlu0 %3124
        %v3127 = vadd.f32 %v3118, %v3125
        %v3128 = vadd.f32 %v3119, %v3125
        %v3129 = vadd.f32 %v3120, %v3125
        %v3130 = vadd.f32 %v3121, %v3125
        %vm3131 = vcmp.ge.f32.partialorder %v3127, 0.0
        %vm3132 = vcmp.ge.f32.partialorder %v3128, 0.0
        %vm3133 = vcmp.ge.f32.partialorder %v3129, 0.0
        %vm3134 = vcmp.ge.f32.partialorder %v3130, 0.0
        %v3135 = vmul.f32 %v3127, 0.01
        %v3136 = vmul.f32 %v3128, 0.01
        %v3137 = vmul.f32 %v3129, 0.01
        %v3138 = vmul.f32 %v3130, 0.01
        %v3139 = vsel %vm3131, %v3127, %v3135
        %v3140 = vsel %vm3132, %v3128, %v3136
        %v3141 = vsel %vm3133, %v3129, %v3137
        %v3142 = vsel %vm3134, %v3130, %v3138
        %3144 = vset.pattern.permute.xlu0 0
        %3145 = vperm.xlu0 %3144, %v323
        %v3146 = vpop.permute.xlu0 %3145
        %v3148 = vmul.f32 %v3146, %v3139
        %v3149 = vmul.f32 %v3146, %v3140
        %v3150 = vmul.f32 %v3146, %v3141
        %v3151 = vmul.f32 %v3146, %v3142
        %v3152 = vadd.f32 %v3148, 0.0
        %v3153 = vadd.f32 %v3149, 0.0
        %v3154 = vadd.f32 %v3150, 0.0
        %v3155 = vadd.f32 %v3151, 0.0
        %3156 = vset.pattern.permute.xlu0 1
        %3157 = vperm.xlu0 %3156, %v321
        %v3158 = vpop.permute.xlu0 %3157
        %v3160 = vmul.f32 %v3158, %v3109
        %v3161 = vmul.f32 %v3158, %v3110
        %v3162 = vmul.f32 %v3158, %v3111
        %v3163 = vmul.f32 %v3158, %v3112
        %3164 = vset.pattern.permute.xlu0 1
        %3165 = vperm.xlu0 %3164, %v322
        %v3166 = vpop.permute.xlu0 %3165
        %v3168 = vadd.f32 %v3160, %v3166
        %v3169 = vadd.f32 %v3161, %v3166
        %v3170 = vadd.f32 %v3162, %v3166
        %v3171 = vadd.f32 %v3163, %v3166
        %vm3172 = vcmp.ge.f32.partialorder %v3168, 0.0
        %vm3173 = vcmp.ge.f32.partialorder %v3169, 0.0
        %vm3174 = vcmp.ge.f32.partialorder %v3170, 0.0
        %vm3175 = vcmp.ge.f32.partialorder %v3171, 0.0
        %v3176 = vmul.f32 %v3168, 0.01
        %v3177 = vmul.f32 %v3169, 0.01
        %v3178 = vmul.f32 %v3170, 0.01
        %v3179 = vmul.f32 %v3171, 0.01
        %v3180 = vsel %vm3172, %v3168, %v3176
        %v3181 = vsel %vm3173, %v3169, %v3177
        %v3182 = vsel %vm3174, %v3170, %v3178
        %v3183 = vsel %vm3175, %v3171, %v3179
        %3184 = vset.pattern.permute.xlu0 1
        %3185 = vperm.xlu0 %3184, %v323
        %v3186 = vpop.permute.xlu0 %3185
        %v3188 = vmul.f32 %v3186, %v3180
        %v3189 = vmul.f32 %v3186, %v3181
        %v3190 = vmul.f32 %v3186, %v3182
        %v3191 = vmul.f32 %v3186, %v3183
        %v3192 = vadd.f32 %v3152, %v3188
        %v3193 = vadd.f32 %v3153, %v3189
        %v3194 = vadd.f32 %v3154, %v3190
        %v3195 = vadd.f32 %v3155, %v3191
        %3196 = vset.pattern.permute.xlu0 2
        %3197 = vperm.xlu0 %3196, %v321
        %v3198 = vpop.permute.xlu0 %3197
        %v3200 = vmul.f32 %v3198, %v3109
        %v3201 = vmul.f32 %v3198, %v3110
        %v3202 = vmul.f32 %v3198, %v3111
        %v3203 = vmul.f32 %v3198, %v3112
        %3204 = vset.pattern.permute.xlu0 2
        %3205 = vperm.xlu0 %3204, %v322
        %v3206 = vpop.permute.xlu0 %3205
        %v3208 = vadd.f32 %v3200, %v3206
        %v3209 = vadd.f32 %v3201, %v3206
        %v3210 = vadd.f32 %v3202, %v3206
        %v3211 = vadd.f32 %v3203, %v3206
        %vm3212 = vcmp.ge.f32.partialorder %v3208, 0.0
        %vm3213 = vcmp.ge.f32.partialorder %v3209, 0.0
        %vm3214 = vcmp.ge.f32.partialorder %v3210, 0.0
        %vm3215 = vcmp.ge.f32.partialorder %v3211, 0.0
        %v3216 = vmul.f32 %v3208, 0.01
        %v3217 = vmul.f32 %v3209, 0.01
        %v3218 = vmul.f32 %v3210, 0.01
        %v3219 = vmul.f32 %v3211, 0.01
        %v3220 = vsel %vm3212, %v3208, %v3216
        %v3221 = vsel %vm3213, %v3209, %v3217
        %v3222 = vsel %vm3214, %v3210, %v3218
        %v3223 = vsel %vm3215, %v3211, %v3219
        %3224 = vset.pattern.permute.xlu0 2
        %3225 = vperm.xlu0 %3224, %v323
        %v3226 = vpop.permute.xlu0 %3225
        %v3228 = vmul.f32 %v3226, %v3220
        %v3229 = vmul.f32 %v3226, %v3221
        %v3230 = vmul.f32 %v3226, %v3222
        %v3231 = vmul.f32 %v3226, %v3223
        %v3232 = vadd.f32 %v3192, %v3228
        %v3233 = vadd.f32 %v3193, %v3229
        %v3234 = vadd.f32 %v3194, %v3230
        %v3235 = vadd.f32 %v3195, %v3231
        %3236 = vset.pattern.permute.xlu0 3
        %3237 = vperm.xlu0 %3236, %v321
        %v3238 = vpop.permute.xlu0 %3237
        %v3240 = vmul.f32 %v3238, %v3109
        %v3241 = vmul.f32 %v3238, %v3110
        %v3242 = vmul.f32 %v3238, %v3111
        %v3243 = vmul.f32 %v3238, %v3112
        %3244 = vset.pattern.permute.xlu0 3
        %3245 = vperm.xlu0 %3244, %v322
        %v3246 = vpop.permute.xlu0 %3245
        %v3248 = vadd.f32 %v3240, %v3246
        %v3249 = vadd.f32 %v3241, %v3246
        %v3250 = vadd.f32 %v3242, %v3246
        %v3251 = vadd.f32 %v3243, %v3246
        %vm3252 = vcmp.ge.f32.partialorder %v3248, 0.0
        %vm3253 = vcmp.ge.f32.partialorder %v3249, 0.0
        %vm3254 = vcmp.ge.f32.partialorder %v3250, 0.0
        %vm3255 = vcmp.ge.f32.partialorder %v3251, 0.0
        %v3256 = vmul.f32 %v3248, 0.01
        %v3257 = vmul.f32 %v3249, 0.01
        %v3258 = vmul.f32 %v3250, 0.01
        %v3259 = vmul.f32 %v3251, 0.01
        %v3260 = vsel %vm3252, %v3248, %v3256
        %v3261 = vsel %vm3253, %v3249, %v3257
        %v3262 = vsel %vm3254, %v3250, %v3258
        %v3263 = vsel %vm3255, %v3251, %v3259
        %3264 = vset.pattern.permute.xlu0 3
        %3265 = vperm.xlu0 %3264, %v323
        %v3266 = vpop.permute.xlu0 %3265
        %v3268 = vmul.f32 %v3266, %v3260
        %v3269 = vmul.f32 %v3266, %v3261
        %v3270 = vmul.f32 %v3266, %v3262
        %v3271 = vmul.f32 %v3266, %v3263
        %v3272 = vadd.f32 %v3232, %v3268
        %v3273 = vadd.f32 %v3233, %v3269
        %v3274 = vadd.f32 %v3234, %v3270
        %v3275 = vadd.f32 %v3235, %v3271
        %v3276 = vadd.f32 %v317, %v3272
        %v3277 = vadd.f32 %v318, %v3273
        %v3278 = vadd.f32 %v319, %v3274
        %v3279 = vadd.f32 %v320, %v3275
        %3281 = vset.pattern.permute.xlu0 0
        %3282 = vperm.xlu0 %3281, %v324
        %v3283 = vpop.permute.xlu0 %3282
        %v3285 = vadd.f32 %v3276, %v3283
        %v3286 = vadd.f32 %v3277, %v3283
        %v3287 = vadd.f32 %v3278, %v3283
        %v3288 = vadd.f32 %v3279, %v3283
        %3289 = vst [vmem:[%s311] sm:$0x3] %v3285
        %3290 = vst [vmem:[%s311 + $0x8] sm:$0x3] %v3286
        %3291 = vst [vmem:[%s311 + $0x10] sm:$0x3] %v3287
        %3292 = vst [vmem:[%s311 + $0x18] sm:$0x3] %v3288
        %vm3293 = vcmask 1047554
        %v3294 = vsel %vm3293, %v317, 0.0
        %v3295 = vsel %vm3293, %v318, 0.0
        %v3296 = vadd.f32 %v3294, %v3295
        %v3297 = vsel %vm3293, %v319, 0.0
        %v3298 = vadd.f32 %v3296, %v3297
        %v3299 = vsel %vm3293, %v320, 0.0
        %v3300 = vadd.f32 %v3298, %v3299
        %3301 = vadd.xlane.f32.xlu0 %v3300
        %v3302 = vpop.xlane.xlu0 %3301
        %v3303 = vmul.f32 %v3302, %v3087
        %v3304 = vsub.f32 %v317, %v3303
        %v3305 = vsub.f32 %v318, %v3303
        %v3306 = vsub.f32 %v319, %v3303
        %v3307 = vsub.f32 %v320, %v3303
        %v3308 = vmul.f32 %v3304, %v3304
        %v3309 = vmul.f32 %v3305, %v3305
        %v3310 = vmul.f32 %v3306, %v3306
        %v3311 = vmul.f32 %v3307, %v3307
        %v3312 = vsel %vm3293, %v3308, 0.0
        %v3313 = vsel %vm3293, %v3309, 0.0
        %v3314 = vadd.f32 %v3312, %v3313
        %v3315 = vsel %vm3293, %v3310, 0.0
        %v3316 = vadd.f32 %v3314, %v3315
        %v3317 = vsel %vm3293, %v3311, 0.0
        %v3318 = vadd.f32 %v3316, %v3317
        %3319 = vadd.xlane.f32.xlu0 %v3318
        %v3320 = vpop.xlane.xlu0 %3319
        %v3321 = vmul.f32 %v3320, %v3087
        %v3322 = vadd.f32 %v3321, 1e-05
        %v3323 = vrsqrt.pop %v3322
        %v3324 = vmul.f32 %v3304, %v3323
        %v3325 = vmul.f32 %v3305, %v3323
        %v3326 = vmul.f32 %v3306, %v3323
        %v3327 = vmul.f32 %v3307, %v3323
        %v3328 = vmul.f32 %v3116, %v3324
        %v3329 = vmul.f32 %v3116, %v3325
        %v3330 = vmul.f32 %v3116, %v3326
        %v3331 = vmul.f32 %v3116, %v3327
        %v3332 = vadd.f32 %v3328, %v3125
        %v3333 = vadd.f32 %v3329, %v3125
        %v3334 = vadd.f32 %v3330, %v3125
        %v3335 = vadd.f32 %v3331, %v3125
        %vm3336 = vcmp.ge.f32.partialorder %v3332, 0.0
        %vm3337 = vcmp.ge.f32.partialorder %v3333, 0.0
        %vm3338 = vcmp.ge.f32.partialorder %v3334, 0.0
        %vm3339 = vcmp.ge.f32.partialorder %v3335, 0.0
        %v3340 = vmul.f32 %v3332, 0.01
        %v3341 = vmul.f32 %v3333, 0.01
        %v3342 = vmul.f32 %v3334, 0.01
        %v3343 = vmul.f32 %v3335, 0.01
        %v3344 = vsel %vm3336, %v3332, %v3340
        %v3345 = vsel %vm3337, %v3333, %v3341
        %v3346 = vsel %vm3338, %v3334, %v3342
        %v3347 = vsel %vm3339, %v3335, %v3343
        %v3348 = vmul.f32 %v3146, %v3344
        %v3349 = vmul.f32 %v3146, %v3345
        %v3350 = vmul.f32 %v3146, %v3346
        %v3351 = vmul.f32 %v3146, %v3347
        %v3352 = vadd.f32 %v3348, 0.0
        %v3353 = vadd.f32 %v3349, 0.0
        %v3354 = vadd.f32 %v3350, 0.0
        %v3355 = vadd.f32 %v3351, 0.0
        %v3356 = vmul.f32 %v3158, %v3324
        %v3357 = vmul.f32 %v3158, %v3325
        %v3358 = vmul.f32 %v3158, %v3326
        %v3359 = vmul.f32 %v3158, %v3327
        %v3360 = vadd.f32 %v3356, %v3166
        %v3361 = vadd.f32 %v3357, %v3166
        %v3362 = vadd.f32 %v3358, %v3166
        %v3363 = vadd.f32 %v3359, %v3166
        %vm3364 = vcmp.ge.f32.partialorder %v3360, 0.0
        %vm3365 = vcmp.ge.f32.partialorder %v3361, 0.0
        %vm3366 = vcmp.ge.f32.partialorder %v3362, 0.0
        %vm3367 = vcmp.ge.f32.partialorder %v3363, 0.0
        %v3368 = vmul.f32 %v3360, 0.01
        %v3369 = vmul.f32 %v3361, 0.01
        %v3370 = vmul.f32 %v3362, 0.01
        %v3371 = vmul.f32 %v3363, 0.01
        %v3372 = vsel %vm3364, %v3360, %v3368
        %v3373 = vsel %vm3365, %v3361, %v3369
        %v3374 = vsel %vm3366, %v3362, %v3370
        %v3375 = vsel %vm3367, %v3363, %v3371
        %v3376 = vmul.f32 %v3186, %v3372
        %v3377 = vmul.f32 %v3186, %v3373
        %v3378 = vmul.f32 %v3186, %v3374
        %v3379 = vmul.f32 %v3186, %v3375
        %v3380 = vadd.f32 %v3352, %v3376
        %v3381 = vadd.f32 %v3353, %v3377
        %v3382 = vadd.f32 %v3354, %v3378
        %v3383 = vadd.f32 %v3355, %v3379
        %v3384 = vmul.f32 %v3198, %v3324
        %v3385 = vmul.f32 %v3198, %v3325
        %v3386 = vmul.f32 %v3198, %v3326
        %v3387 = vmul.f32 %v3198, %v3327
        %v3388 = vadd.f32 %v3384, %v3206
        %v3389 = vadd.f32 %v3385, %v3206
        %v3390 = vadd.f32 %v3386, %v3206
        %v3391 = vadd.f32 %v3387, %v3206
        %vm3392 = vcmp.ge.f32.partialorder %v3388, 0.0
        %vm3393 = vcmp.ge.f32.partialorder %v3389, 0.0
        %vm3394 = vcmp.ge.f32.partialorder %v3390, 0.0
        %vm3395 = vcmp.ge.f32.partialorder %v3391, 0.0
        %v3396 = vmul.f32 %v3388, 0.01
        %v3397 = vmul.f32 %v3389, 0.01
        %v3398 = vmul.f32 %v3390, 0.01
        %v3399 = vmul.f32 %v3391, 0.01
        %v3400 = vsel %vm3392, %v3388, %v3396
        %v3401 = vsel %vm3393, %v3389, %v3397
        %v3402 = vsel %vm3394, %v3390, %v3398
        %v3403 = vsel %vm3395, %v3391, %v3399
        %v3404 = vmul.f32 %v3226, %v3400
        %v3405 = vmul.f32 %v3226, %v3401
        %v3406 = vmul.f32 %v3226, %v3402
        %v3407 = vmul.f32 %v3226, %v3403
        %v3408 = vadd.f32 %v3380, %v3404
        %v3409 = vadd.f32 %v3381, %v3405
        %v3410 = vadd.f32 %v3382, %v3406
        %v3411 = vadd.f32 %v3383, %v3407
        %v3412 = vmul.f32 %v3238, %v3324
        %v3413 = vmul.f32 %v3238, %v3325
        %v3414 = vmul.f32 %v3238, %v3326
        %v3415 = vmul.f32 %v3238, %v3327
        %v3416 = vadd.f32 %v3412, %v3246
        %v3417 = vadd.f32 %v3413, %v3246
        %v3418 = vadd.f32 %v3414, %v3246
        %v3419 = vadd.f32 %v3415, %v3246
        %vm3420 = vcmp.ge.f32.partialorder %v3416, 0.0
        %vm3421 = vcmp.ge.f32.partialorder %v3417, 0.0
        %vm3422 = vcmp.ge.f32.partialorder %v3418, 0.0
        %vm3423 = vcmp.ge.f32.partialorder %v3419, 0.0
        %v3424 = vmul.f32 %v3416, 0.01
        %v3425 = vmul.f32 %v3417, 0.01
        %v3426 = vmul.f32 %v3418, 0.01
        %v3427 = vmul.f32 %v3419, 0.01
        %v3428 = vsel %vm3420, %v3416, %v3424
        %v3429 = vsel %vm3421, %v3417, %v3425
        %v3430 = vsel %vm3422, %v3418, %v3426
        %v3431 = vsel %vm3423, %v3419, %v3427
        %v3432 = vmul.f32 %v3266, %v3428
        %v3433 = vmul.f32 %v3266, %v3429
        %v3434 = vmul.f32 %v3266, %v3430
        %v3435 = vmul.f32 %v3266, %v3431
        %v3436 = vadd.f32 %v3408, %v3432
        %v3437 = vadd.f32 %v3409, %v3433
        %v3438 = vadd.f32 %v3410, %v3434
        %v3439 = vadd.f32 %v3411, %v3435
        %v3440 = vadd.f32 %v317, %v3436
        %v3441 = vadd.f32 %v318, %v3437
        %v3442 = vadd.f32 %v319, %v3438
        %v3443 = vadd.f32 %v320, %v3439
        %v3444 = vadd.f32 %v3440, %v3283
        %v3445 = vadd.f32 %v3441, %v3283
        %v3446 = vadd.f32 %v3442, %v3283
        %v3447 = vadd.f32 %v3443, %v3283
        %3448 = vst [vmem:[%s311] sm:$0xfc] %v3444
        %3449 = vst [vmem:[%s311 + $0x8] sm:$0xfc] %v3445
        %3450 = vst [vmem:[%s311 + $0x10] sm:$0xfc] %v3446
        %3451 = vst [vmem:[%s311 + $0x18] sm:$0xfc] %v3447
        %s3452 = sand.u32 %s189, 1
        %s3453 = scalar_lea.sflag [#allocation4], %s3452
        %s3454 = sand.u32 %s189, 1
        %s3455 = smul.addr %s3454, 32
        %s3456 = scalar_lea.vmem [#allocation5], %s3455
        // Predicated region
        $region53: #{tpu_custom_call.1} parent=47 // pred_check
          %p3457 = pneg %p199
        $region54: #{tpu_custom_call.1} parent=47 // pred_check_branch
          %3459 = sbr.rel (%p3457) target = $region56
        $region55: #{tpu_custom_call.1} parent=47 // pred_region
          %s3461 = ssub.s32 512, 512
          %3462 = vsyncadd %s3453, %s3461
          %s3463 = smul.addr %s24, 4
          %s3464 = smul.addr %s3463, 128
          %s3465 = scalar_lea.hbm %s7, %s3464
          %s3467 = sshll.u32 %s3456, 4
          %s3468 = int_to_ptr.vmem [resolvable:$true] %s3467
          %3470 = dma.vmem_to_hbm [thread:$0]  %s3468, 512, %s3465, %s3453
        $region56: #{tpu_custom_call.1} parent=47 // pred_fallthru
          _
      $region48: #{tpu_custom_call.1} parent=5 // pred_fallthru
        _
      %p3471 = scmp.le.s32.totalorder 2, %s19
      // Predicated region
      $region57: #{tpu_custom_call.1} parent=5 // pred_check
        %p3472 = pneg %p3471
      $region58: #{tpu_custom_call.1} parent=5 // pred_check_branch
        %3474 = sbr.rel (%p3472) target = $region60
      $region59: #{tpu_custom_call.1} parent=5 // pred_region
        %s3475 = ssub.s32 %s19, 2
        // Predicated region
        $region61: #{tpu_custom_call.1} parent=59 // pred_check
          %p3476 = pneg %p205
        $region62: #{tpu_custom_call.1} parent=59 // pred_check_branch
          %3478 = sbr.rel (%p3476) target = $region64
        $region63: #{tpu_custom_call.1} parent=59 // pred_region
          %s3479 = sand.u32 %s190, 1
          %s3480 = scalar_lea.sflag [#allocation4], %s3479
          %s3481 = sand.u32 %s190, 1
          %s3482 = smul.addr %s3481, 32
          %s3483 = scalar_lea.vmem [#allocation5], %s3482
          %3484 = dma.done %s3480, 512
        $region64: #{tpu_custom_call.1} parent=59 // pred_fallthru
          _
      $region60: #{tpu_custom_call.1} parent=5 // pred_fallthru
        _
    $region6: #{tpu_custom_call.1} parent=1 // loop_footer
      %s23 = sadd.s32 1, %s19
    $region7: #{tpu_custom_call.1} parent=1 // loop_footer_branch
      %18 = sbr.rel target = $region3
    $region8: #{tpu_custom_call.1} parent=1 // loop_exit
      _
    %3485 = vsyncpa [#allocation3], 1
    %s3486 = scalar_lea.sflag [#allocation3], 1
    %3487 = vsyncpa %s3486, 1
    %3488 = vsyncpa [#allocation4], 1
    %s3489 = scalar_lea.sflag [#allocation4], 1
    %3490 = vsyncpa %s3489, 1

</llo_original>
